<compile_context>
chip_gen: v6e
topology: v6e:2x2x1
jax: 0.10.0
libtpu: 0.0.40
codegen_flags: <defaults>
</compile_context>

<pallas_src>
import math

import jax
import jax.numpy as jnp
from jax.experimental import pallas as pl
from jax.experimental.pallas import tpu as pltpu


def _round_up(x, m):
    return (x + m - 1) // m * m


def make_decoder_kernel(n_blocks):
    """Builds the fused kernel body for a given number of MLP blocks."""

    def kernel(*refs):
        (x_ref, t_ref, le_ref, freqs_ref, phase_ref,
         te_w1_ref, te_b1_ref, te_w2_ref, te_b2_ref,
         proj_w_ref, proj_b_ref) = refs[:11]
        idx = 11
        blk_refs = []
        for _ in range(n_blocks):
            blk_refs.append((refs[idx], refs[idx + 1]))
            idx += 2
        head_w_ref, head_b_ref = refs[idx], refs[idx + 1]
        out_ref = refs[idx + 2]

        # ---- timestep_embedding via a single sin: cos(x) == sin(x + pi/2) ----
        t = t_ref[...]                                           # [TB, 1] f32
        emb0 = jnp.sin(t * freqs_ref[...] + phase_ref[...])      # [TB, dim_t] f32

        # ---- time_embed: Linear -> SiLU -> Linear (bf16 MXU, f32 accumulate) ----
        h = jnp.dot(emb0.astype(jnp.bfloat16), te_w1_ref[...],
                    preferred_element_type=jnp.float32) + te_b1_ref[...]
        h = h * jax.nn.sigmoid(h)                                # SiLU in f32
        emb = jnp.dot(h.astype(jnp.bfloat16), te_w2_ref[...],
                      preferred_element_type=jnp.float32) + te_b2_ref[...]

        # ---- label embedding (SiLU pre-applied to the table in the wrapper) ----
        emb = emb + le_ref[...].astype(jnp.float32)

        # ---- proj(x) + emb ----
        h = jnp.dot(x_ref[...], proj_w_ref[...],
                    preferred_element_type=jnp.float32) + proj_b_ref[...] + emb

        # ---- MLP blocks: Linear -> ReLU (dropout is identity in eval) ----
        for w_ref, b_ref in blk_refs:
            h = jnp.dot(h.astype(jnp.bfloat16), w_ref[...],
                        preferred_element_type=jnp.float32) + b_ref[...]
            h = jnp.maximum(h, 0.0)

        # ---- head (lane-dense 128-multiple output store) ----
        out = jnp.dot(h.astype(jnp.bfloat16), head_w_ref[...],
                      preferred_element_type=jnp.float32) + head_b_ref[...]
        out_ref[...] = out.astype(out_ref.dtype)

    return kernel


def conditional_mlp_decoder(x, timesteps, y, params, *, dim_t, num_classes,
                            max_period=10000.0, block_b=None,
                            out_dtype=jnp.float32):
    """Packs inputs, launches the fused batch-tiled Pallas kernel."""
    B, d_in = x.shape
    half = dim_t // 2
    assert dim_t % 2 == 0 and dim_t % 128 == 0, "dim_t must be a multiple of 128"

    d_in_p = _round_up(d_in, 128)     # only the output is padded (lane-dense store)

    # ---- batch tile: fill the MXU M dimension; >=2 grid steps for large B (v7x) ----
    if block_b is None:
        if B <= 256:
            block_b = _round_up(B, 128)
        else:
            block_b = min(512, max(256, _round_up(pl.cdiv(B, 2), 128)))
    TB = max(_round_up(block_b, 128), 128)
    B_p = _round_up(B, TB)
    grid = (pl.cdiv(B_p, TB),)

    # ---- glue: pack / pad streamed inputs ----
    xp = jnp.zeros((B_p, d_in), jnp.bfloat16).at[:B].set(x.astype(jnp.bfloat16))
    tp = jnp.zeros((B_p, 1), jnp.float32).at[:B, 0].set(timesteps.astype(jnp.float32))

    le_tab = params["label_emb"].astype(jnp.float32)
    le_tab = le_tab * jax.nn.sigmoid(le_tab)                    # SiLU once, in XLA
    le = le_tab[y.astype(jnp.int32)]                            # XLA gather
    lep = jnp.zeros((B_p, dim_t), jnp.bfloat16).at[:B].set(le.astype(jnp.bfloat16))

    freqs = jnp.exp(-math.log(max_period) *
                    jnp.arange(half, dtype=jnp.float32) / half)
    freqs_full = jnp.concatenate([freqs, freqs]).reshape(1, dim_t)          # [1, dim_t]
    phase_full = jnp.where(jnp.arange(dim_t) < half,
                           jnp.float32(math.pi / 2.0),
                           jnp.float32(0.0)).reshape(1, dim_t)              # [1, dim_t]

    # ---- pad weights to lane-dense shapes; weights bf16, biases f32 ----
    def pad_w(w, din_p, dout_p):
        di, do = w.shape
        return (jnp.zeros((din_p, dout_p), jnp.float32)
                .at[:di, :do].set(w).astype(jnp.bfloat16))

    def pad_b(b, dout_p):
        return jnp.zeros((1, dout_p), jnp.float32).at[:, :b.shape[1]].set(b)

    te_w1 = pad_w(params["te_w1"], dim_t, dim_t); te_b1 = pad_b(params["te_b1"], dim_t)
    te_w2 = pad_w(params["te_w2"], dim_t, dim_t); te_b2 = pad_b(params["te_b2"], dim_t)
    proj_w = pad_w(params["proj_w"], d_in, dim_t)               # K = true d_in
    proj_b = pad_b(params["proj_b"], dim_t)

    blocks_p = []
    prev_p = dim_t
    for (w, b) in params["blocks"]:
        dout_p = _round_up(w.shape[1], 128)
        blocks_p.append((pad_w(w, prev_p, dout_p), pad_b(b, dout_p)))
        prev_p = dout_p
    head_w = pad_w(params["head_w"], prev_p, d_in_p)
    head_b = pad_b(params["head_b"], d_in_p)

    n_blocks = len(blocks_p)

    inputs = [xp, tp, lep, freqs_full, phase_full,
              te_w1, te_b1, te_w2, te_b2, proj_w, proj_b]
    for (w, b) in blocks_p:
        inputs += [w, b]
    inputs += [head_w, head_b]

    # ---- BlockSpecs: batch-streamed tensors double-buffered, weights single-buffer ----
    def stream(width):
        return pl.BlockSpec((TB, width), lambda i: (i, 0))

    def resident(arr):
        return pl.BlockSpec(arr.shape, lambda i: (0, 0),
                            pipeline_mode=pl.Buffered(1))

    in_specs = [stream(d_in), stream(1), stream(dim_t)]
    in_specs += [resident(a) for a in inputs[3:]]
    out_spec = pl.BlockSpec((TB, d_in_p), lambda i: (i, 0))

    # ---- explicit VMEM budget (resident weights x1 buffer + streamed tiles x2) ----
    nbytes = lambda a: int(a.size) * a.dtype.itemsize
    resident_bytes = sum(nbytes(a) for a in inputs[3:])
    stream_tile_bytes = TB * (d_in * 2 + 1 * 4 + dim_t * 2)
    out_tile_bytes = TB * d_in_p * jnp.dtype(out_dtype).itemsize
    widths = [dim_t, d_in_p] + [w.shape[1] for (w, _b) in blocks_p]
    act_bytes = 6 * TB * max(widths) * 4                        # f32 intermediates
    vmem_bytes = int(1.3 * (resident_bytes + 2 * stream_tile_bytes
                            + 2 * out_tile_bytes + act_bytes))
    vmem_bytes = min(max(vmem_bytes, 8 << 20), 100 << 20)

    # ---- advisory cost estimate for the XLA scheduler ----
    matmul_dims = ([(dim_t, dim_t), (dim_t, dim_t), (d_in, dim_t)]
                   + [w.shape for (w, _b) in blocks_p] + [head_w.shape])
    flops = int(sum(2 * B_p * k * n for (k, n) in matmul_dims))
    bytes_accessed = int(resident_bytes + B_p * (d_in * 2 + 4 + dim_t * 2)
                         + B_p * d_in_p * jnp.dtype(out_dtype).itemsize)
    cost = pl.CostEstimate(flops=flops,
                           transcendentals=int(2 * B_p * dim_t),
                           bytes_accessed=bytes_accessed)

    kernel = make_decoder_kernel(n_blocks)

    out = pl.pallas_call(
        kernel,
        out_shape=jax.ShapeDtypeStruct((B_p, d_in_p), out_dtype),
        grid=grid,
        in_specs=in_specs,
        out_specs=out_spec,
        compiler_params=pltpu.CompilerParams(
            dimension_semantics=("parallel",),
            vmem_limit_bytes=vmem_bytes),
        cost_estimate=cost,
    )(*inputs)

    return out[:B, :d_in]


def reference_forward(x, timesteps, y, params, *, dim_t, max_period=10000.0):
    """Pure-JAX f32 reference for correctness checking."""
    half = dim_t // 2
    freqs = jnp.exp(-math.log(max_period) * jnp.arange(half, dtype=jnp.float32) / half)
    args = timesteps.astype(jnp.float32)[:, None] * freqs[None, :]
    emb0 = jnp.concatenate([jnp.cos(args), jnp.sin(args)], axis=-1)

    h = emb0 @ params["te_w1"] + params["te_b1"]
    h = h * jax.nn.sigmoid(h)
    emb = h @ params["te_w2"] + params["te_b2"]

    le = params["label_emb"][y]
    emb = emb + le * jax.nn.sigmoid(le)

    h = x.astype(jnp.float32) @ params["proj_w"] + params["proj_b"] + emb
    for (w, b) in params["blocks"]:
        h = jnp.maximum(h @ w + b, 0.0)
    return h @ params["head_w"] + params["head_b"]


def init_params(key, *, d_in, dim_t, d_layers, num_classes):
    """Deterministic synthetic parameters (weights [in, out], biases [1, out])."""
    ks = iter(jax.random.split(key, 64))

    def lin(din, dout):
        w = jax.random.normal(next(ks), (din, dout), jnp.float32) * 0.05
        b = jax.random.normal(next(ks), (1, dout), jnp.float32) * 0.01
        return w, b

    params = {}
    params["te_w1"], params["te_b1"] = lin(dim_t, dim_t)
    params["te_w2"], params["te_b2"] = lin(dim_t, dim_t)
    params["proj_w"], params["proj_b"] = lin(d_in, dim_t)
    params["label_emb"] = jax.random.normal(
        next(ks), (num_classes, dim_t), jnp.float32) * 0.05

    blocks = []
    prev = dim_t
    for d in d_layers:
        blocks.append(lin(prev, d))
        prev = d
    params["blocks"] = blocks
    params["head_w"], params["head_b"] = lin(prev, d_in)
    return params


if __name__ == "__main__":
    B = 300
    d_in = 24
    dim_t = 128
    d_layers = [256, 192]        # 192 exercises the 128-multiple padding path
    num_classes = 10

    key = jax.random.PRNGKey(0)
    k_x, k_t, k_y, k_p = jax.random.split(key, 4)

    x = jax.random.normal(k_x, (B, d_in), jnp.float32)
    timesteps = jax.random.uniform(k_t, (B,), jnp.float32, 0.0, 1000.0)
    y = jax.random.randint(k_y, (B,), 0, num_classes, jnp.int32)
    params = init_params(k_p, d_in=d_in, dim_t=dim_t,
                         d_layers=d_layers, num_classes=num_classes)

    # block_b=128 -> batch padded to 384, grid=(3,): exercises the pipelined batch grid.
    out = conditional_mlp_decoder(x, timesteps, y, params,
                                  dim_t=dim_t, num_classes=num_classes,
                                  block_b=128)
    out = jax.block_until_ready(out)

    ref = reference_forward(x, timesteps, y, params, dim_t=dim_t)
    assert out.shape == (B, d_in)
    # bf16 weights/activations with f32 accumulation: loose-ish tolerance vs f32 ref.
    assert jnp.allclose(out, ref, atol=3e-2, rtol=3e-2), "mismatch vs JAX reference"

    print("KERNEL_OK")
</pallas_src>

<mosaic_0001>
module attributes {stable_mosaic.version = 11 : i64} {
  func.func @kernel(%arg0: i32, %arg1: memref<128x24xbf16, #tpu.memory_space<vmem>>, %arg2: memref<128x1xf32, #tpu.memory_space<vmem>>, %arg3: memref<128x128xbf16, #tpu.memory_space<vmem>>, %arg4: memref<1x128xf32, #tpu.memory_space<vmem>>, %arg5: memref<1x128xf32, #tpu.memory_space<vmem>>, %arg6: memref<128x128xbf16, #tpu.memory_space<vmem>>, %arg7: memref<1x128xf32, #tpu.memory_space<vmem>>, %arg8: memref<128x128xbf16, #tpu.memory_space<vmem>>, %arg9: memref<1x128xf32, #tpu.memory_space<vmem>>, %arg10: memref<24x128xbf16, #tpu.memory_space<vmem>>, %arg11: memref<1x128xf32, #tpu.memory_space<vmem>>, %arg12: memref<128x256xbf16, #tpu.memory_space<vmem>>, %arg13: memref<1x256xf32, #tpu.memory_space<vmem>>, %arg14: memref<256x256xbf16, #tpu.memory_space<vmem>>, %arg15: memref<1x256xf32, #tpu.memory_space<vmem>>, %arg16: memref<256x128xbf16, #tpu.memory_space<vmem>>, %arg17: memref<1x128xf32, #tpu.memory_space<vmem>>, %arg18: memref<128x128xf32, #tpu.memory_space<vmem>>) attributes {dimension_semantics = [#tpu.dimension_semantics<parallel>], iteration_bounds = array<i64: 3>, scalar_prefetch = 0 : i64, scratch_operands = 0 : i64, tpu.core_type = #tpu.core_type<tc>, window_params = [{transform_indices = @transform_0, window_bounds = array<i64: 128, 24>}, {transform_indices = @transform_1, window_bounds = array<i64: 128, 1>}, {transform_indices = @transform_2, window_bounds = array<i64: 128, 128>}, {pipeline_mode = #tpu.pipeline_mode<synchronous>, transform_indices = @transform_3, window_bounds = array<i64: 1, 128>}, {pipeline_mode = #tpu.pipeline_mode<synchronous>, transform_indices = @transform_4, window_bounds = array<i64: 1, 128>}, {pipeline_mode = #tpu.pipeline_mode<synchronous>, transform_indices = @transform_5, window_bounds = array<i64: 128, 128>}, {pipeline_mode = #tpu.pipeline_mode<synchronous>, transform_indices = @transform_6, window_bounds = array<i64: 1, 128>}, {pipeline_mode = #tpu.pipeline_mode<synchronous>, transform_indices = @transform_7, window_bounds = array<i64: 128, 128>}, {pipeline_mode = #tpu.pipeline_mode<synchronous>, transform_indices = @transform_8, window_bounds = array<i64: 1, 128>}, {pipeline_mode = #tpu.pipeline_mode<synchronous>, transform_indices = @transform_9, window_bounds = array<i64: 24, 128>}, {pipeline_mode = #tpu.pipeline_mode<synchronous>, transform_indices = @transform_10, window_bounds = array<i64: 1, 128>}, {pipeline_mode = #tpu.pipeline_mode<synchronous>, transform_indices = @transform_11, window_bounds = array<i64: 128, 256>}, {pipeline_mode = #tpu.pipeline_mode<synchronous>, transform_indices = @transform_12, window_bounds = array<i64: 1, 256>}, {pipeline_mode = #tpu.pipeline_mode<synchronous>, transform_indices = @transform_13, window_bounds = array<i64: 256, 256>}, {pipeline_mode = #tpu.pipeline_mode<synchronous>, transform_indices = @transform_14, window_bounds = array<i64: 1, 256>}, {pipeline_mode = #tpu.pipeline_mode<synchronous>, transform_indices = @transform_15, window_bounds = array<i64: 256, 128>}, {pipeline_mode = #tpu.pipeline_mode<synchronous>, transform_indices = @transform_16, window_bounds = array<i64: 1, 128>}, {transform_indices = @transform_17, window_bounds = array<i64: 128, 128>}]} {
    %c0 = arith.constant 0 : index
    %c0_0 = arith.constant 0 : index
    %0 = vector.load %arg2[%c0, %c0_0] : memref<128x1xf32, #tpu.memory_space<vmem>>, vector<128x1xf32>
    %c0_1 = arith.constant 0 : index
    %c0_2 = arith.constant 0 : index
    %1 = vector.load %arg4[%c0_1, %c0_2] : memref<1x128xf32, #tpu.memory_space<vmem>>, vector<1x128xf32>
    %2 = vector.broadcast %0 : vector<128x1xf32> to vector<128x128xf32>
    %3 = vector.broadcast %1 : vector<1x128xf32> to vector<128x128xf32>
    %4 = arith.mulf %2, %3 : vector<128x128xf32>
    %c0_3 = arith.constant 0 : index
    %c0_4 = arith.constant 0 : index
    %5 = vector.load %arg5[%c0_3, %c0_4] : memref<1x128xf32, #tpu.memory_space<vmem>>, vector<1x128xf32>
    %6 = vector.broadcast %5 : vector<1x128xf32> to vector<128x128xf32>
    %7 = arith.addf %4, %6 : vector<128x128xf32>
    %8 = math.sin %7 : vector<128x128xf32>
    %9 = arith.truncf %8 : vector<128x128xf32> to vector<128x128xbf16>
    %c0_5 = arith.constant 0 : index
    %c0_6 = arith.constant 0 : index
    %10 = vector.load %arg6[%c0_5, %c0_6] : memref<128x128xbf16, #tpu.memory_space<vmem>>, vector<128x128xbf16>
    %cst = arith.constant dense<0.000000e+00> : vector<128x128xf32>
    %11 = tpu.matmul %9, %10, %cst {dimension_numbers = #tpu.dot_dimension_numbers<[1], [0], [0], [1], [0, 0, 1, 1], [], []>} : vector<128x128xbf16>, vector<128x128xbf16>, vector<128x128xf32> -> vector<128x128xf32>
    %c0_7 = arith.constant 0 : index
    %c0_8 = arith.constant 0 : index
    %12 = vector.load %arg7[%c0_7, %c0_8] : memref<1x128xf32, #tpu.memory_space<vmem>>, vector<1x128xf32>
    %13 = vector.broadcast %12 : vector<1x128xf32> to vector<128x128xf32>
    %14 = arith.addf %11, %13 : vector<128x128xf32>
    %15 = arith.negf %14 : vector<128x128xf32>
    %16 = math.exp %15 : vector<128x128xf32>
    %cst_9 = arith.constant 1.000000e+00 : f32
    %17 = vector.broadcast %cst_9 : f32 to vector<128x128xf32>
    %18 = arith.addf %17, %16 : vector<128x128xf32>
    %19 = arith.divf %17, %18 : vector<128x128xf32>
    %20 = arith.mulf %14, %19 : vector<128x128xf32>
    %21 = arith.truncf %20 : vector<128x128xf32> to vector<128x128xbf16>
    %c0_10 = arith.constant 0 : index
    %c0_11 = arith.constant 0 : index
    %22 = vector.load %arg8[%c0_10, %c0_11] : memref<128x128xbf16, #tpu.memory_space<vmem>>, vector<128x128xbf16>
    %cst_12 = arith.constant dense<0.000000e+00> : vector<128x128xf32>
    %23 = tpu.matmul %21, %22, %cst_12 {dimension_numbers = #tpu.dot_dimension_numbers<[1], [0], [0], [1], [0, 0, 1, 1], [], []>} : vector<128x128xbf16>, vector<128x128xbf16>, vector<128x128xf32> -> vector<128x128xf32>
    %c0_13 = arith.constant 0 : index
    %c0_14 = arith.constant 0 : index
    %24 = vector.load %arg9[%c0_13, %c0_14] : memref<1x128xf32, #tpu.memory_space<vmem>>, vector<1x128xf32>
    %25 = vector.broadcast %24 : vector<1x128xf32> to vector<128x128xf32>
    %26 = arith.addf %23, %25 : vector<128x128xf32>
    %c0_15 = arith.constant 0 : index
    %c0_16 = arith.constant 0 : index
    %27 = vector.load %arg3[%c0_15, %c0_16] : memref<128x128xbf16, #tpu.memory_space<vmem>>, vector<128x128xbf16>
    %28 = arith.extf %27 : vector<128x128xbf16> to vector<128x128xf32>
    %29 = arith.addf %26, %28 : vector<128x128xf32>
    %c0_17 = arith.constant 0 : index
    %c0_18 = arith.constant 0 : index
    %30 = vector.load %arg1[%c0_17, %c0_18] : memref<128x24xbf16, #tpu.memory_space<vmem>>, vector<128x24xbf16>
    %c0_19 = arith.constant 0 : index
    %c0_20 = arith.constant 0 : index
    %31 = vector.load %arg10[%c0_19, %c0_20] : memref<24x128xbf16, #tpu.memory_space<vmem>>, vector<24x128xbf16>
    %cst_21 = arith.constant dense<0.000000e+00> : vector<128x128xf32>
    %32 = tpu.matmul %30, %31, %cst_21 {dimension_numbers = #tpu.dot_dimension_numbers<[1], [0], [0], [1], [0, 0, 1, 1], [], []>} : vector<128x24xbf16>, vector<24x128xbf16>, vector<128x128xf32> -> vector<128x128xf32>
    %c0_22 = arith.constant 0 : index
    %c0_23 = arith.constant 0 : index
    %33 = vector.load %arg11[%c0_22, %c0_23] : memref<1x128xf32, #tpu.memory_space<vmem>>, vector<1x128xf32>
    %34 = vector.broadcast %33 : vector<1x128xf32> to vector<128x128xf32>
    %35 = arith.addf %32, %34 : vector<128x128xf32>
    %36 = arith.addf %35, %29 : vector<128x128xf32>
    %37 = arith.truncf %36 : vector<128x128xf32> to vector<128x128xbf16>
    %c0_24 = arith.constant 0 : index
    %c0_25 = arith.constant 0 : index
    %38 = vector.load %arg12[%c0_24, %c0_25] : memref<128x256xbf16, #tpu.memory_space<vmem>>, vector<128x256xbf16>
    %cst_26 = arith.constant dense<0.000000e+00> : vector<128x256xf32>
    %39 = tpu.matmul %37, %38, %cst_26 {dimension_numbers = #tpu.dot_dimension_numbers<[1], [0], [0], [1], [0, 0, 1, 1], [], []>} : vector<128x128xbf16>, vector<128x256xbf16>, vector<128x256xf32> -> vector<128x256xf32>
    %c0_27 = arith.constant 0 : index
    %c0_28 = arith.constant 0 : index
    %40 = vector.load %arg13[%c0_27, %c0_28] : memref<1x256xf32, #tpu.memory_space<vmem>>, vector<1x256xf32>
    %41 = vector.broadcast %40 : vector<1x256xf32> to vector<128x256xf32>
    %42 = arith.addf %39, %41 : vector<128x256xf32>
    %cst_29 = arith.constant 0.000000e+00 : f32
    %43 = vector.broadcast %cst_29 : f32 to vector<128x256xf32>
    %44 = arith.maximumf %42, %43 : vector<128x256xf32>
    %45 = arith.truncf %44 : vector<128x256xf32> to vector<128x256xbf16>
    %c0_30 = arith.constant 0 : index
    %c0_31 = arith.constant 0 : index
    %46 = vector.load %arg14[%c0_30, %c0_31] : memref<256x256xbf16, #tpu.memory_space<vmem>>, vector<256x256xbf16>
    %cst_32 = arith.constant dense<0.000000e+00> : vector<128x256xf32>
    %47 = tpu.matmul %45, %46, %cst_32 {dimension_numbers = #tpu.dot_dimension_numbers<[1], [0], [0], [1], [0, 0, 1, 1], [], []>} : vector<128x256xbf16>, vector<256x256xbf16>, vector<128x256xf32> -> vector<128x256xf32>
    %c0_33 = arith.constant 0 : index
    %c0_34 = arith.constant 0 : index
    %48 = vector.load %arg15[%c0_33, %c0_34] : memref<1x256xf32, #tpu.memory_space<vmem>>, vector<1x256xf32>
    %49 = vector.broadcast %48 : vector<1x256xf32> to vector<128x256xf32>
    %50 = arith.addf %47, %49 : vector<128x256xf32>
    %cst_35 = arith.constant 0.000000e+00 : f32
    %51 = vector.broadcast %cst_35 : f32 to vector<128x256xf32>
    %52 = arith.maximumf %50, %51 : vector<128x256xf32>
    %53 = arith.truncf %52 : vector<128x256xf32> to vector<128x256xbf16>
    %c0_36 = arith.constant 0 : index
    %c0_37 = arith.constant 0 : index
    %54 = vector.load %arg16[%c0_36, %c0_37] : memref<256x128xbf16, #tpu.memory_space<vmem>>, vector<256x128xbf16>
    %cst_38 = arith.constant dense<0.000000e+00> : vector<128x128xf32>
    %55 = tpu.matmul %53, %54, %cst_38 {dimension_numbers = #tpu.dot_dimension_numbers<[1], [0], [0], [1], [0, 0, 1, 1], [], []>} : vector<128x256xbf16>, vector<256x128xbf16>, vector<128x128xf32> -> vector<128x128xf32>
    %c0_39 = arith.constant 0 : index
    %c0_40 = arith.constant 0 : index
    %56 = vector.load %arg17[%c0_39, %c0_40] : memref<1x128xf32, #tpu.memory_space<vmem>>, vector<1x128xf32>
    %57 = vector.broadcast %56 : vector<1x128xf32> to vector<128x128xf32>
    %58 = arith.addf %55, %57 : vector<128x128xf32>
    %c0_41 = arith.constant 0 : index
    %c0_42 = arith.constant 0 : index
    %59 = vector.load %arg18[%c0_41, %c0_42] : memref<128x128xf32, #tpu.memory_space<vmem>>, vector<128x128xf32>
    tpu.vector_store %arg18[%c0_41, %c0_42], %58 {strides = array<i32>} : memref<128x128xf32, #tpu.memory_space<vmem>>, vector<128x128xf32>,
    return
  }
  func.func @transform_0(%arg0: i32) -> (i32, i32) {
    %c0_i32 = arith.constant 0 : i32
    %c0_i32_0 = arith.constant 0 : i32
    return %arg0, %c0_i32 : i32, i32
  }
  func.func @transform_1(%arg0: i32) -> (i32, i32) {
    %c0_i32 = arith.constant 0 : i32
    %c0_i32_0 = arith.constant 0 : i32
    return %arg0, %c0_i32 : i32, i32
  }
  func.func @transform_2(%arg0: i32) -> (i32, i32) {
    %c0_i32 = arith.constant 0 : i32
    %c0_i32_0 = arith.constant 0 : i32
    return %arg0, %c0_i32 : i32, i32
  }
  func.func @transform_3(%arg0: i32) -> (i32, i32) {
    %c0_i32 = arith.constant 0 : i32
    %c0_i32_0 = arith.constant 0 : i32
    %c0_i32_1 = arith.constant 0 : i32
    return %c0_i32, %c0_i32_0 : i32, i32
  }
  func.func @transform_4(%arg0: i32) -> (i32, i32) {
    %c0_i32 = arith.constant 0 : i32
    %c0_i32_0 = arith.constant 0 : i32
    %c0_i32_1 = arith.constant 0 : i32
    return %c0_i32, %c0_i32_0 : i32, i32
  }
  func.func @transform_5(%arg0: i32) -> (i32, i32) {
    %c0_i32 = arith.constant 0 : i32
    %c0_i32_0 = arith.constant 0 : i32
    %c0_i32_1 = arith.constant 0 : i32
    return %c0_i32, %c0_i32_0 : i32, i32
  }
  func.func @transform_6(%arg0: i32) -> (i32, i32) {
    %c0_i32 = arith.constant 0 : i32
    %c0_i32_0 = arith.constant 0 : i32
    %c0_i32_1 = arith.constant 0 : i32
    return %c0_i32, %c0_i32_0 : i32, i32
  }
  func.func @transform_7(%arg0: i32) -> (i32, i32) {
    %c0_i32 = arith.constant 0 : i32
    %c0_i32_0 = arith.constant 0 : i32
    %c0_i32_1 = arith.constant 0 : i32
    return %c0_i32, %c0_i32_0 : i32, i32
  }
  func.func @transform_8(%arg0: i32) -> (i32, i32) {
    %c0_i32 = arith.constant 0 : i32
    %c0_i32_0 = arith.constant 0 : i32
    %c0_i32_1 = arith.constant 0 : i32
    return %c0_i32, %c0_i32_0 : i32, i32
  }
  func.func @transform_9(%arg0: i32) -> (i32, i32) {
    %c0_i32 = arith.constant 0 : i32
    %c0_i32_0 = arith.constant 0 : i32
    %c0_i32_1 = arith.constant 0 : i32
    return %c0_i32, %c0_i32_0 : i32, i32
  }
  func.func @transform_10(%arg0: i32) -> (i32, i32) {
    %c0_i32 = arith.constant 0 : i32
    %c0_i32_0 = arith.constant 0 : i32
    %c0_i32_1 = arith.constant 0 : i32
    return %c0_i32, %c0_i32_0 : i32, i32
  }
  func.func @transform_11(%arg0: i32) -> (i32, i32) {
    %c0_i32 = arith.constant 0 : i32
    %c0_i32_0 = arith.constant 0 : i32
    %c0_i32_1 = arith.constant 0 : i32
    return %c0_i32, %c0_i32_0 : i32, i32
  }
  func.func @transform_12(%arg0: i32) -> (i32, i32) {
    %c0_i32 = arith.constant 0 : i32
    %c0_i32_0 = arith.constant 0 : i32
    %c0_i32_1 = arith.constant 0 : i32
    return %c0_i32, %c0_i32_0 : i32, i32
  }
  func.func @transform_13(%arg0: i32) -> (i32, i32) {
    %c0_i32 = arith.constant 0 : i32
    %c0_i32_0 = arith.constant 0 : i32
    %c0_i32_1 = arith.constant 0 : i32
    return %c0_i32, %c0_i32_0 : i32, i32
  }
  func.func @transform_14(%arg0: i32) -> (i32, i32) {
    %c0_i32 = arith.constant 0 : i32
    %c0_i32_0 = arith.constant 0 : i32
    %c0_i32_1 = arith.constant 0 : i32
    return %c0_i32, %c0_i32_0 : i32, i32
  }
  func.func @transform_15(%arg0: i32) -> (i32, i32) {
    %c0_i32 = arith.constant 0 : i32
    %c0_i32_0 = arith.constant 0 : i32
    %c0_i32_1 = arith.constant 0 : i32
    return %c0_i32, %c0_i32_0 : i32, i32
  }
  func.func @transform_16(%arg0: i32) -> (i32, i32) {
    %c0_i32 = arith.constant 0 : i32
    %c0_i32_0 = arith.constant 0 : i32
    %c0_i32_1 = arith.constant 0 : i32
    return %c0_i32, %c0_i32_0 : i32, i32
  }
  func.func @transform_17(%arg0: i32) -> (i32, i32) {
    %c0_i32 = arith.constant 0 : i32
    %c0_i32_0 = arith.constant 0 : i32
    return %arg0, %c0_i32 : i32, i32
  }
}

</mosaic_0001>

<llo_original>
// kernel: tpu_custom_call.1
$region0: #{tpu_custom_call.1}
  #allocation0 [shape = 'u32[]', space=smem, size = 0x4, offset = 0x4, fixed_abs, tag = 'smem constant byte address 0x4 - core index']
  #allocation1 [shape = 'u32[144,128]{1,0:T(1,128)}', space=vmem, size = 0x12000, scoped, tag = 'internal scratch']
  %s0 = inlined_call_operand.vmem [shape: bf16[384,24], index: 0, kind: input, shape index: {}]
  %s1 = inlined_call_operand.vmem [shape: f32[384,1], index: 1, kind: input, shape index: {}]
  %s2 = inlined_call_operand.vmem [shape: bf16[384,128], index: 2, kind: input, shape index: {}]
  %s3 = inlined_call_operand.vmem [shape: f32[1,128], index: 3, kind: input, shape index: {}]
  %s4 = inlined_call_operand.vmem [shape: f32[1,128], index: 4, kind: input, shape index: {}]
  %s5 = inlined_call_operand.hbm [shape: bf16[128,128], index: 5, kind: input, shape index: {}]
  %s6 = inlined_call_operand.vmem [shape: f32[1,128], index: 6, kind: input, shape index: {}]
  %s7 = inlined_call_operand.hbm [shape: bf16[128,128], index: 7, kind: input, shape index: {}]
  %s8 = inlined_call_operand.vmem [shape: f32[1,128], index: 8, kind: input, shape index: {}]
  %s9 = inlined_call_operand.vmem [shape: bf16[24,128], index: 9, kind: input, shape index: {}]
  %s10 = inlined_call_operand.vmem [shape: f32[1,128], index: 10, kind: input, shape index: {}]
  %s11 = inlined_call_operand.vmem [shape: bf16[128,256], index: 11, kind: input, shape index: {}]
  %s12 = inlined_call_operand.vmem [shape: f32[1,256], index: 12, kind: input, shape index: {}]
  %s13 = inlined_call_operand.vmem [shape: bf16[256,256], index: 13, kind: input, shape index: {}]
  %s14 = inlined_call_operand.vmem [shape: f32[1,256], index: 14, kind: input, shape index: {}]
  %s15 = inlined_call_operand.hbm [shape: bf16[256,128], index: 15, kind: input, shape index: {}]
  %s16 = inlined_call_operand.vmem [shape: f32[1,128], index: 16, kind: input, shape index: {}]
  %s17 = inlined_call_operand.hbm [shape: f32[384,128], index: 17, kind: output, shape index: {}]
  %s18 = sld [smem:[#allocation0]]
  $region113: #{tpu_custom_call.1} parent=0
    _
  %s20 = ssub.s32 1, %s18
  %s21 = scalar_select 0, %s20, %s18
  $region1: #{tpu_custom_call.1} parent=0
    #allocation2 [shape = 'u8[32768]{0}', space=vmem, size = 0x8000, scoped, tag = 'input window, operand 5, single buffered']
    #allocation3 [shape = 's32[2]{0}', space=sflag, size = 0x8, scoped, tag = 'scoped memory for tpu_custom_call.1']
    #allocation4 [shape = 's32[2]{0}', space=sflag, size = 0x8, scoped, tag = 'scoped memory for tpu_custom_call.1']
    #allocation5 [shape = 'u8[32768]{0}', space=vmem, size = 0x8000, scoped, tag = 'input window, operand 7, single buffered']
    #allocation6 [shape = 's32[1]{0}', space=sflag, size = 0x4, scoped, tag = 'scoped memory for tpu_custom_call.1']
    #allocation7 [shape = 'u8[65536]{0}', space=vmem, size = 0x10000, scoped, tag = 'input window, operand 15, single buffered']
    #allocation8 [shape = 'u8[131072]{0}', space=vmem, size = 0x20000, scoped, tag = 'output window, operand 0']
    %22 = vsyncpa [#allocation3], 0
    %23 = vsyncpa [#allocation6], 0
    %24 = vsyncpa [#allocation4], 0
    %s25 = scalar_lea.sflag [#allocation4], 1
    %26 = vsyncpa %s25, 0
    loop: start=0, step=1, limit=5
    $region2: #{tpu_custom_call.1} parent=1 // loop_pre_header
      _
    $region3: #{tpu_custom_call.1} parent=1 // loop_header
      %s28 = sphi 0, %s32
      %p29 = scmp.ge.s32.totalorder %s28, 5
      %s38 = sphi 0, %s40
      %s41 = sphi 0, %s38
      %s42 = sphi 0, %s41
      %s58 = sphi 0, %s42
      %s64 = sphi 0, %s66
      %s67 = sphi 0, %s64
      %s68 = sphi 0, %s67
      %s84 = sphi 0, %s68
      %s90 = sphi 0, %s92
      %s93 = sphi 0, %s90
      %s94 = sphi 0, %s93
      %s110 = sphi 0, %s94
      %s114 = sphi 0, %s114
      %s116 = sphi 0, %s114
      %s117 = sphi 0, %s116
      %s131 = sphi 0, %s117
      %s135 = sphi 0, %s135
      %s137 = sphi 0, %s135
      %s138 = sphi 0, %s137
      %s152 = sphi 0, %s138
      %s156 = sphi 0, %s156
      %s158 = sphi 0, %s156
      %s159 = sphi 0, %s158
      %s173 = sphi 0, %s159
      %s177 = sphi 0, %s177
      %s179 = sphi 0, %s177
      %s180 = sphi 0, %s179
      %s194 = sphi 0, %s180
      %s198 = sphi 0, %s198
      %s200 = sphi 0, %s198
      %s201 = sphi 0, %s200
      %s215 = sphi 0, %s201
      %s219 = sphi 0, %s219
      %s221 = sphi 0, %s219
      %s222 = sphi 0, %s221
      %s236 = sphi 0, %s222
      %s240 = sphi 0, %s240
      %s242 = sphi 0, %s240
      %s243 = sphi 0, %s242
      %s257 = sphi 0, %s243
      %s261 = sphi 0, %s261
      %s263 = sphi 0, %s261
      %s264 = sphi 0, %s263
      %s278 = sphi 0, %s264
      %s282 = sphi 0, %s282
      %s284 = sphi 0, %s282
      %s285 = sphi 0, %s284
      %s299 = sphi 0, %s285
      %s303 = sphi 0, %s303
      %s305 = sphi 0, %s303
      %s306 = sphi 0, %s305
      %s320 = sphi 0, %s306
      %s324 = sphi 0, %s324
      %s326 = sphi 0, %s324
      %s327 = sphi 0, %s326
      %s341 = sphi 0, %s327
      %s345 = sphi 0, %s345
      %s347 = sphi 0, %s345
      %s348 = sphi 0, %s347
      %s362 = sphi 0, %s348
      %s366 = sphi 0, %s366
      %s368 = sphi 0, %s366
      %s369 = sphi 0, %s368
      %s383 = sphi 0, %s369
      %s387 = sphi 0, %s387
      %s389 = sphi 0, %s387
      %s390 = sphi 0, %s389
      %s404 = sphi 0, %s390
      %s410 = sphi 0, %s412
      %s413 = sphi 0, %s410
      %s414 = sphi 0, %s413
      %s430 = sphi 0, %s414
    $region4: #{tpu_custom_call.1} parent=1 // loop_header_branch
      %31 = sbr.rel (%p29) target = $region8
    $region5: #{tpu_custom_call.1} parent=1 // loop_body
      %s33 = ssub.s32 %s28, 1
      %s34 = ssub.s32 %s28, 2
      %s35 = sadd.s32 %s28, 1
      %s36 = ssub.s32 %s28, %s35
      %p37 = scmp.eq.s32.totalorder %s36, 0
      %s39 = sadd.s32 %s38, 1
      %s40 = scalar_select %p37, %s38, %s39
      %p43 = pneg %p37
      %p44 = scmp.eq.s32.totalorder %s28, 2
      %p45 = por %p43, %p44
      %p46 = scmp.ne.s32.totalorder %s38, %s41
      %p47 = scmp.eq.s32.totalorder %s28, 0
      %p48 = por %p46, %p47
      %p49 = scmp.ne.s32.totalorder %s38, %s41
      %p50 = scmp.eq.s32.totalorder %s33, 2
      %p51 = por %p49, %p50
      %p52 = scmp.ne.s32.totalorder %s41, %s42
      %p53 = scmp.eq.s32.totalorder %s33, 0
      %p54 = por %p52, %p53
      %p55 = scmp.ne.s32.totalorder %s41, %s42
      %p56 = scmp.eq.s32.totalorder %s34, 2
      %p57 = por %p55, %p56
      %p59 = scmp.ne.s32.totalorder %s42, %s58
      %p60 = scmp.eq.s32.totalorder %s34, 0
      %p61 = por %p59, %p60
      %s62 = ssub.s32 %s28, %s35
      %p63 = scmp.eq.s32.totalorder %s62, 0
      %s65 = sadd.s32 %s64, 1
      %s66 = scalar_select %p63, %s64, %s65
      %p69 = pneg %p63
      %p70 = scmp.eq.s32.totalorder %s28, 2
      %p71 = por %p69, %p70
      %p72 = scmp.ne.s32.totalorder %s64, %s67
      %p73 = scmp.eq.s32.totalorder %s28, 0
      %p74 = por %p72, %p73
      %p75 = scmp.ne.s32.totalorder %s64, %s67
      %p76 = scmp.eq.s32.totalorder %s33, 2
      %p77 = por %p75, %p76
      %p78 = scmp.ne.s32.totalorder %s67, %s68
      %p79 = scmp.eq.s32.totalorder %s33, 0
      %p80 = por %p78, %p79
      %p81 = scmp.ne.s32.totalorder %s67, %s68
      %p82 = scmp.eq.s32.totalorder %s34, 2
      %p83 = por %p81, %p82
      %p85 = scmp.ne.s32.totalorder %s68, %s84
      %p86 = scmp.eq.s32.totalorder %s34, 0
      %p87 = por %p85, %p86
      %s88 = ssub.s32 %s28, %s35
      %p89 = scmp.eq.s32.totalorder %s88, 0
      %s91 = sadd.s32 %s90, 1
      %s92 = scalar_select %p89, %s90, %s91
      %p95 = pneg %p89
      %p96 = scmp.eq.s32.totalorder %s28, 2
      %p97 = por %p95, %p96
      %p98 = scmp.ne.s32.totalorder %s90, %s93
      %p99 = scmp.eq.s32.totalorder %s28, 0
      %p100 = por %p98, %p99
      %p101 = scmp.ne.s32.totalorder %s90, %s93
      %p102 = scmp.eq.s32.totalorder %s33, 2
      %p103 = por %p101, %p102
      %p104 = scmp.ne.s32.totalorder %s93, %s94
      %p105 = scmp.eq.s32.totalorder %s33, 0
      %p106 = por %p104, %p105
      %p107 = scmp.ne.s32.totalorder %s93, %s94
      %p108 = scmp.eq.s32.totalorder %s34, 2
      %p109 = por %p107, %p108
      %p111 = scmp.ne.s32.totalorder %s94, %s110
      %p112 = scmp.eq.s32.totalorder %s34, 0
      %p113 = por %p111, %p112
      %s115 = sadd.s32 %s114, 1
      %p118 = scmp.eq.s32.totalorder %s28, 2
      %p119 = scmp.ne.s32.totalorder %s114, %s116
      %p120 = scmp.eq.s32.totalorder %s28, 0
      %p121 = por %p119, %p120
      %p122 = scmp.ne.s32.totalorder %s114, %s116
      %p123 = scmp.eq.s32.totalorder %s33, 2
      %p124 = por %p122, %p123
      %p125 = scmp.ne.s32.totalorder %s116, %s117
      %p126 = scmp.eq.s32.totalorder %s33, 0
      %p127 = por %p125, %p126
      %p128 = scmp.ne.s32.totalorder %s116, %s117
      %p129 = scmp.eq.s32.totalorder %s34, 2
      %p130 = por %p128, %p129
      %p132 = scmp.ne.s32.totalorder %s117, %s131
      %p133 = scmp.eq.s32.totalorder %s34, 0
      %p134 = por %p132, %p133
      %s136 = sadd.s32 %s135, 1
      %p139 = scmp.eq.s32.totalorder %s28, 2
      %p140 = scmp.ne.s32.totalorder %s135, %s137
      %p141 = scmp.eq.s32.totalorder %s28, 0
      %p142 = por %p140, %p141
      %p143 = scmp.ne.s32.totalorder %s135, %s137
      %p144 = scmp.eq.s32.totalorder %s33, 2
      %p145 = por %p143, %p144
      %p146 = scmp.ne.s32.totalorder %s137, %s138
      %p147 = scmp.eq.s32.totalorder %s33, 0
      %p148 = por %p146, %p147
      %p149 = scmp.ne.s32.totalorder %s137, %s138
      %p150 = scmp.eq.s32.totalorder %s34, 2
      %p151 = por %p149, %p150
      %p153 = scmp.ne.s32.totalorder %s138, %s152
      %p154 = scmp.eq.s32.totalorder %s34, 0
      %p155 = por %p153, %p154
      %s157 = sadd.s32 %s156, 1
      %p160 = scmp.eq.s32.totalorder %s28, 2
      %p161 = scmp.ne.s32.totalorder %s156, %s158
      %p162 = scmp.eq.s32.totalorder %s28, 0
      %p163 = por %p161, %p162
      %p164 = scmp.ne.s32.totalorder %s156, %s158
      %p165 = scmp.eq.s32.totalorder %s33, 2
      %p166 = por %p164, %p165
      %p167 = scmp.ne.s32.totalorder %s158, %s159
      %p168 = scmp.eq.s32.totalorder %s33, 0
      %p169 = por %p167, %p168
      %p170 = scmp.ne.s32.totalorder %s158, %s159
      %p171 = scmp.eq.s32.totalorder %s34, 2
      %p172 = por %p170, %p171
      %p174 = scmp.ne.s32.totalorder %s159, %s173
      %p175 = scmp.eq.s32.totalorder %s34, 0
      %p176 = por %p174, %p175
      %s178 = sadd.s32 %s177, 1
      %p181 = scmp.eq.s32.totalorder %s28, 2
      %p182 = scmp.ne.s32.totalorder %s177, %s179
      %p183 = scmp.eq.s32.totalorder %s28, 0
      %p184 = por %p182, %p183
      %p185 = scmp.ne.s32.totalorder %s177, %s179
      %p186 = scmp.eq.s32.totalorder %s33, 2
      %p187 = por %p185, %p186
      %p188 = scmp.ne.s32.totalorder %s179, %s180
      %p189 = scmp.eq.s32.totalorder %s33, 0
      %p190 = por %p188, %p189
      %p191 = scmp.ne.s32.totalorder %s179, %s180
      %p192 = scmp.eq.s32.totalorder %s34, 2
      %p193 = por %p191, %p192
      %p195 = scmp.ne.s32.totalorder %s180, %s194
      %p196 = scmp.eq.s32.totalorder %s34, 0
      %p197 = por %p195, %p196
      %s199 = sadd.s32 %s198, 1
      %p202 = scmp.eq.s32.totalorder %s28, 2
      %p203 = scmp.ne.s32.totalorder %s198, %s200
      %p204 = scmp.eq.s32.totalorder %s28, 0
      %p205 = por %p203, %p204
      %p206 = scmp.ne.s32.totalorder %s198, %s200
      %p207 = scmp.eq.s32.totalorder %s33, 2
      %p208 = por %p206, %p207
      %p209 = scmp.ne.s32.totalorder %s200, %s201
      %p210 = scmp.eq.s32.totalorder %s33, 0
      %p211 = por %p209, %p210
      %p212 = scmp.ne.s32.totalorder %s200, %s201
      %p213 = scmp.eq.s32.totalorder %s34, 2
      %p214 = por %p212, %p213
      %p216 = scmp.ne.s32.totalorder %s201, %s215
      %p217 = scmp.eq.s32.totalorder %s34, 0
      %p218 = por %p216, %p217
      %s220 = sadd.s32 %s219, 1
      %p223 = scmp.eq.s32.totalorder %s28, 2
      %p224 = scmp.ne.s32.totalorder %s219, %s221
      %p225 = scmp.eq.s32.totalorder %s28, 0
      %p226 = por %p224, %p225
      %p227 = scmp.ne.s32.totalorder %s219, %s221
      %p228 = scmp.eq.s32.totalorder %s33, 2
      %p229 = por %p227, %p228
      %p230 = scmp.ne.s32.totalorder %s221, %s222
      %p231 = scmp.eq.s32.totalorder %s33, 0
      %p232 = por %p230, %p231
      %p233 = scmp.ne.s32.totalorder %s221, %s222
      %p234 = scmp.eq.s32.totalorder %s34, 2
      %p235 = por %p233, %p234
      %p237 = scmp.ne.s32.totalorder %s222, %s236
      %p238 = scmp.eq.s32.totalorder %s34, 0
      %p239 = por %p237, %p238
      %s241 = sadd.s32 %s240, 1
      %p244 = scmp.eq.s32.totalorder %s28, 2
      %p245 = scmp.ne.s32.totalorder %s240, %s242
      %p246 = scmp.eq.s32.totalorder %s28, 0
      %p247 = por %p245, %p246
      %p248 = scmp.ne.s32.totalorder %s240, %s242
      %p249 = scmp.eq.s32.totalorder %s33, 2
      %p250 = por %p248, %p249
      %p251 = scmp.ne.s32.totalorder %s242, %s243
      %p252 = scmp.eq.s32.totalorder %s33, 0
      %p253 = por %p251, %p252
      %p254 = scmp.ne.s32.totalorder %s242, %s243
      %p255 = scmp.eq.s32.totalorder %s34, 2
      %p256 = por %p254, %p255
      %p258 = scmp.ne.s32.totalorder %s243, %s257
      %p259 = scmp.eq.s32.totalorder %s34, 0
      %p260 = por %p258, %p259
      %s262 = sadd.s32 %s261, 1
      %p265 = scmp.eq.s32.totalorder %s28, 2
      %p266 = scmp.ne.s32.totalorder %s261, %s263
      %p267 = scmp.eq.s32.totalorder %s28, 0
      %p268 = por %p266, %p267
      %p269 = scmp.ne.s32.totalorder %s261, %s263
      %p270 = scmp.eq.s32.totalorder %s33, 2
      %p271 = por %p269, %p270
      %p272 = scmp.ne.s32.totalorder %s263, %s264
      %p273 = scmp.eq.s32.totalorder %s33, 0
      %p274 = por %p272, %p273
      %p275 = scmp.ne.s32.totalorder %s263, %s264
      %p276 = scmp.eq.s32.totalorder %s34, 2
      %p277 = por %p275, %p276
      %p279 = scmp.ne.s32.totalorder %s264, %s278
      %p280 = scmp.eq.s32.totalorder %s34, 0
      %p281 = por %p279, %p280
      %s283 = sadd.s32 %s282, 1
      %p286 = scmp.eq.s32.totalorder %s28, 2
      %p287 = scmp.ne.s32.totalorder %s282, %s284
      %p288 = scmp.eq.s32.totalorder %s28, 0
      %p289 = por %p287, %p288
      %p290 = scmp.ne.s32.totalorder %s282, %s284
      %p291 = scmp.eq.s32.totalorder %s33, 2
      %p292 = por %p290, %p291
      %p293 = scmp.ne.s32.totalorder %s284, %s285
      %p294 = scmp.eq.s32.totalorder %s33, 0
      %p295 = por %p293, %p294
      %p296 = scmp.ne.s32.totalorder %s284, %s285
      %p297 = scmp.eq.s32.totalorder %s34, 2
      %p298 = por %p296, %p297
      %p300 = scmp.ne.s32.totalorder %s285, %s299
      %p301 = scmp.eq.s32.totalorder %s34, 0
      %p302 = por %p300, %p301
      %s304 = sadd.s32 %s303, 1
      %p307 = scmp.eq.s32.totalorder %s28, 2
      %p308 = scmp.ne.s32.totalorder %s303, %s305
      %p309 = scmp.eq.s32.totalorder %s28, 0
      %p310 = por %p308, %p309
      %p311 = scmp.ne.s32.totalorder %s303, %s305
      %p312 = scmp.eq.s32.totalorder %s33, 2
      %p313 = por %p311, %p312
      %p314 = scmp.ne.s32.totalorder %s305, %s306
      %p315 = scmp.eq.s32.totalorder %s33, 0
      %p316 = por %p314, %p315
      %p317 = scmp.ne.s32.totalorder %s305, %s306
      %p318 = scmp.eq.s32.totalorder %s34, 2
      %p319 = por %p317, %p318
      %p321 = scmp.ne.s32.totalorder %s306, %s320
      %p322 = scmp.eq.s32.totalorder %s34, 0
      %p323 = por %p321, %p322
      %s325 = sadd.s32 %s324, 1
      %p328 = scmp.eq.s32.totalorder %s28, 2
      %p329 = scmp.ne.s32.totalorder %s324, %s326
      %p330 = scmp.eq.s32.totalorder %s28, 0
      %p331 = por %p329, %p330
      %p332 = scmp.ne.s32.totalorder %s324, %s326
      %p333 = scmp.eq.s32.totalorder %s33, 2
      %p334 = por %p332, %p333
      %p335 = scmp.ne.s32.totalorder %s326, %s327
      %p336 = scmp.eq.s32.totalorder %s33, 0
      %p337 = por %p335, %p336
      %p338 = scmp.ne.s32.totalorder %s326, %s327
      %p339 = scmp.eq.s32.totalorder %s34, 2
      %p340 = por %p338, %p339
      %p342 = scmp.ne.s32.totalorder %s327, %s341
      %p343 = scmp.eq.s32.totalorder %s34, 0
      %p344 = por %p342, %p343
      %s346 = sadd.s32 %s345, 1
      %p349 = scmp.eq.s32.totalorder %s28, 2
      %p350 = scmp.ne.s32.totalorder %s345, %s347
      %p351 = scmp.eq.s32.totalorder %s28, 0
      %p352 = por %p350, %p351
      %p353 = scmp.ne.s32.totalorder %s345, %s347
      %p354 = scmp.eq.s32.totalorder %s33, 2
      %p355 = por %p353, %p354
      %p356 = scmp.ne.s32.totalorder %s347, %s348
      %p357 = scmp.eq.s32.totalorder %s33, 0
      %p358 = por %p356, %p357
      %p359 = scmp.ne.s32.totalorder %s347, %s348
      %p360 = scmp.eq.s32.totalorder %s34, 2
      %p361 = por %p359, %p360
      %p363 = scmp.ne.s32.totalorder %s348, %s362
      %p364 = scmp.eq.s32.totalorder %s34, 0
      %p365 = por %p363, %p364
      %s367 = sadd.s32 %s366, 1
      %p370 = scmp.eq.s32.totalorder %s28, 2
      %p371 = scmp.ne.s32.totalorder %s366, %s368
      %p372 = scmp.eq.s32.totalorder %s28, 0
      %p373 = por %p371, %p372
      %p374 = scmp.ne.s32.totalorder %s366, %s368
      %p375 = scmp.eq.s32.totalorder %s33, 2
      %p376 = por %p374, %p375
      %p377 = scmp.ne.s32.totalorder %s368, %s369
      %p378 = scmp.eq.s32.totalorder %s33, 0
      %p379 = por %p377, %p378
      %p380 = scmp.ne.s32.totalorder %s368, %s369
      %p381 = scmp.eq.s32.totalorder %s34, 2
      %p382 = por %p380, %p381
      %p384 = scmp.ne.s32.totalorder %s369, %s383
      %p385 = scmp.eq.s32.totalorder %s34, 0
      %p386 = por %p384, %p385
      %s388 = sadd.s32 %s387, 1
      %p391 = scmp.eq.s32.totalorder %s28, 2
      %p392 = scmp.ne.s32.totalorder %s387, %s389
      %p393 = scmp.eq.s32.totalorder %s28, 0
      %p394 = por %p392, %p393
      %p395 = scmp.ne.s32.totalorder %s387, %s389
      %p396 = scmp.eq.s32.totalorder %s33, 2
      %p397 = por %p395, %p396
      %p398 = scmp.ne.s32.totalorder %s389, %s390
      %p399 = scmp.eq.s32.totalorder %s33, 0
      %p400 = por %p398, %p399
      %p401 = scmp.ne.s32.totalorder %s389, %s390
      %p402 = scmp.eq.s32.totalorder %s34, 2
      %p403 = por %p401, %p402
      %p405 = scmp.ne.s32.totalorder %s390, %s404
      %p406 = scmp.eq.s32.totalorder %s34, 0
      %p407 = por %p405, %p406
      %s408 = ssub.s32 %s28, %s35
      %p409 = scmp.eq.s32.totalorder %s408, 0
      %s411 = sadd.s32 %s410, 1
      %s412 = scalar_select %p409, %s410, %s411
      %p415 = pneg %p409
      %p416 = scmp.eq.s32.totalorder %s28, 2
      %p417 = por %p415, %p416
      %p418 = scmp.ne.s32.totalorder %s410, %s413
      %p419 = scmp.eq.s32.totalorder %s28, 0
      %p420 = por %p418, %p419
      %p421 = scmp.ne.s32.totalorder %s410, %s413
      %p422 = scmp.eq.s32.totalorder %s33, 2
      %p423 = por %p421, %p422
      %p424 = scmp.ne.s32.totalorder %s413, %s414
      %p425 = scmp.eq.s32.totalorder %s33, 0
      %p426 = por %p424, %p425
      %p427 = scmp.ne.s32.totalorder %s413, %s414
      %p428 = scmp.eq.s32.totalorder %s34, 2
      %p429 = por %p427, %p428
      %p431 = scmp.ne.s32.totalorder %s414, %s430
      %p432 = scmp.eq.s32.totalorder %s34, 0
      %p433 = por %p431, %p432
      %p434 = scmp.le.s32.totalorder 1, %s28
      %p435 = scmp.lt.s32.totalorder %s28, 4
      %p436 = pnand %p434, %p435
      %p437 = pneg %p436
      // Predicated region
      $region9: #{tpu_custom_call.1} parent=5 // pred_check
        _
      $region10: #{tpu_custom_call.1} parent=5 // pred_check_branch
        %439 = sbr.rel (%p436) target = $region12
      $region11: #{tpu_custom_call.1} parent=5 // pred_region
        %s440 = ssub.s32 %s28, 1
        // Predicated region
        $region13: #{tpu_custom_call.1} parent=11 // pred_check
          %p441 = pneg %p127
        $region14: #{tpu_custom_call.1} parent=11 // pred_check_branch
          %443 = sbr.rel (%p441) target = $region16
        $region15: #{tpu_custom_call.1} parent=11 // pred_region
          _
        $region16: #{tpu_custom_call.1} parent=11 // pred_fallthru
          _
        // Predicated region
        $region17: #{tpu_custom_call.1} parent=11 // pred_check
          %p444 = pneg %p148
        $region18: #{tpu_custom_call.1} parent=11 // pred_check_branch
          %446 = sbr.rel (%p444) target = $region20
        $region19: #{tpu_custom_call.1} parent=11 // pred_region
          _
        $region20: #{tpu_custom_call.1} parent=11 // pred_fallthru
          _
        // Predicated region
        $region21: #{tpu_custom_call.1} parent=11 // pred_check
          %p447 = pneg %p169
        $region22: #{tpu_custom_call.1} parent=11 // pred_check_branch
          %449 = sbr.rel (%p447) target = $region24
        $region23: #{tpu_custom_call.1} parent=11 // pred_region
          %s451 = ssub.s32 1024, 1024
          %452 = vsyncadd [#allocation3], %s451
          %s453 = sshll.u32 [#allocation2], 4
          %s454 = int_to_ptr.vmem [resolvable:$true] %s453
          %459 = dma.hbm_to_vmem [thread:$0]  %s5, 1024, %s454, [#allocation3], 64, 64, 4
        $region24: #{tpu_custom_call.1} parent=11 // pred_fallthru
          _
        // Predicated region
        $region25: #{tpu_custom_call.1} parent=11 // pred_check
          %p460 = pneg %p190
        $region26: #{tpu_custom_call.1} parent=11 // pred_check_branch
          %462 = sbr.rel (%p460) target = $region28
        $region27: #{tpu_custom_call.1} parent=11 // pred_region
          _
        $region28: #{tpu_custom_call.1} parent=11 // pred_fallthru
          _
        // Predicated region
        $region29: #{tpu_custom_call.1} parent=11 // pred_check
          %p463 = pneg %p211
        $region30: #{tpu_custom_call.1} parent=11 // pred_check_branch
          %465 = sbr.rel (%p463) target = $region32
        $region31: #{tpu_custom_call.1} parent=11 // pred_region
          %s467 = ssub.s32 1024, 1024
          %468 = vsyncadd [#allocation6], %s467
          %s469 = sshll.u32 [#allocation5], 4
          %s470 = int_to_ptr.vmem [resolvable:$true] %s469
          %475 = dma.hbm_to_vmem [thread:$0]  %s7, 1024, %s470, [#allocation6], 64, 64, 4
        $region32: #{tpu_custom_call.1} parent=11 // pred_fallthru
          _
        // Predicated region
        $region33: #{tpu_custom_call.1} parent=11 // pred_check
          %p476 = pneg %p232
        $region34: #{tpu_custom_call.1} parent=11 // pred_check_branch
          %478 = sbr.rel (%p476) target = $region36
        $region35: #{tpu_custom_call.1} parent=11 // pred_region
          _
        $region36: #{tpu_custom_call.1} parent=11 // pred_fallthru
          _
        // Predicated region
        $region37: #{tpu_custom_call.1} parent=11 // pred_check
          %p479 = pneg %p253
        $region38: #{tpu_custom_call.1} parent=11 // pred_check_branch
          %481 = sbr.rel (%p479) target = $region40
        $region39: #{tpu_custom_call.1} parent=11 // pred_region
          _
        $region40: #{tpu_custom_call.1} parent=11 // pred_fallthru
          _
        // Predicated region
        $region41: #{tpu_custom_call.1} parent=11 // pred_check
          %p482 = pneg %p274
        $region42: #{tpu_custom_call.1} parent=11 // pred_check_branch
          %484 = sbr.rel (%p482) target = $region44
        $region43: #{tpu_custom_call.1} parent=11 // pred_region
          _
        $region44: #{tpu_custom_call.1} parent=11 // pred_fallthru
          _
        // Predicated region
        $region45: #{tpu_custom_call.1} parent=11 // pred_check
          %p485 = pneg %p295
        $region46: #{tpu_custom_call.1} parent=11 // pred_check_branch
          %487 = sbr.rel (%p485) target = $region48
        $region47: #{tpu_custom_call.1} parent=11 // pred_region
          _
        $region48: #{tpu_custom_call.1} parent=11 // pred_fallthru
          _
        // Predicated region
        $region49: #{tpu_custom_call.1} parent=11 // pred_check
          %p488 = pneg %p316
        $region50: #{tpu_custom_call.1} parent=11 // pred_check_branch
          %490 = sbr.rel (%p488) target = $region52
        $region51: #{tpu_custom_call.1} parent=11 // pred_region
          _
        $region52: #{tpu_custom_call.1} parent=11 // pred_fallthru
          _
        // Predicated region
        $region53: #{tpu_custom_call.1} parent=11 // pred_check
          %p491 = pneg %p337
        $region54: #{tpu_custom_call.1} parent=11 // pred_check_branch
          %493 = sbr.rel (%p491) target = $region56
        $region55: #{tpu_custom_call.1} parent=11 // pred_region
          _
        $region56: #{tpu_custom_call.1} parent=11 // pred_fallthru
          _
        // Predicated region
        $region57: #{tpu_custom_call.1} parent=11 // pred_check
          %p494 = pneg %p358
        $region58: #{tpu_custom_call.1} parent=11 // pred_check_branch
          %496 = sbr.rel (%p494) target = $region60
        $region59: #{tpu_custom_call.1} parent=11 // pred_region
          _
        $region60: #{tpu_custom_call.1} parent=11 // pred_fallthru
          _
        // Predicated region
        $region61: #{tpu_custom_call.1} parent=11 // pred_check
          %p497 = pneg %p379
        $region62: #{tpu_custom_call.1} parent=11 // pred_check_branch
          %499 = sbr.rel (%p497) target = $region64
        $region63: #{tpu_custom_call.1} parent=11 // pred_region
          %s501 = ssub.s32 2048, 2048
          %502 = vsyncadd [#allocation6], %s501
          %s503 = sshll.u32 [#allocation7], 4
          %s504 = int_to_ptr.vmem [resolvable:$true] %s503
          %509 = dma.hbm_to_vmem [thread:$0]  %s15, 2048, %s504, [#allocation6], 64, 64, 4
        $region64: #{tpu_custom_call.1} parent=11 // pred_fallthru
          _
        // Predicated region
        $region65: #{tpu_custom_call.1} parent=11 // pred_check
          %p510 = pneg %p400
        $region66: #{tpu_custom_call.1} parent=11 // pred_check_branch
          %512 = sbr.rel (%p510) target = $region68
        $region67: #{tpu_custom_call.1} parent=11 // pred_region
          _
        $region68: #{tpu_custom_call.1} parent=11 // pred_fallthru
          _
      $region12: #{tpu_custom_call.1} parent=5 // pred_fallthru
        _
      %p513 = scmp.lt.s32.totalorder %s28, 3
      // Predicated region
      $region69: #{tpu_custom_call.1} parent=5 // pred_check
        %p514 = pneg %p513
      $region70: #{tpu_custom_call.1} parent=5 // pred_check_branch
        %516 = sbr.rel (%p514) target = $region72
      $region71: #{tpu_custom_call.1} parent=5 // pred_region
        // Predicated region
        $region73: #{tpu_custom_call.1} parent=71 // pred_check
          %p517 = pneg %p48
        $region74: #{tpu_custom_call.1} parent=71 // pred_check_branch
          %519 = sbr.rel (%p517) target = $region76
        $region75: #{tpu_custom_call.1} parent=71 // pred_region
          %s520 = smul.u32 16, %s28
          %p521 = scmp.lt.s32.totalorder %s520, 47
          %s522 = scalar_select %p521, %s520, 47
          %s523 = smul.addr %s522, 4
          %s524 = scalar_lea.vmem %s0, %s523
          %s525 = smul.u32 16, %s28
        $region76: #{tpu_custom_call.1} parent=71 // pred_fallthru
          _
        // Predicated region
        $region77: #{tpu_custom_call.1} parent=71 // pred_check
          %p526 = pneg %p74
        $region78: #{tpu_custom_call.1} parent=71 // pred_check_branch
          %528 = sbr.rel (%p526) target = $region80
        $region79: #{tpu_custom_call.1} parent=71 // pred_region
          %s529 = smul.u32 16, %s28
          %p530 = scmp.lt.s32.totalorder %s529, 47
          %s531 = scalar_select %p530, %s529, 47
          %s532 = smul.addr %s531, 8
          %s533 = scalar_lea.vmem %s1, %s532
          %s534 = smul.u32 16, %s28
        $region80: #{tpu_custom_call.1} parent=71 // pred_fallthru
          _
        // Predicated region
        $region81: #{tpu_custom_call.1} parent=71 // pred_check
          %p535 = pneg %p100
        $region82: #{tpu_custom_call.1} parent=71 // pred_check_branch
          %537 = sbr.rel (%p535) target = $region84
        $region83: #{tpu_custom_call.1} parent=71 // pred_region
          %s538 = smul.u32 16, %s28
          %p539 = scmp.lt.s32.totalorder %s538, 47
          %s540 = scalar_select %p539, %s538, 47
          %s541 = smul.addr %s540, 4
          %s542 = scalar_lea.vmem %s2, %s541
          %s543 = smul.u32 16, %s28
        $region84: #{tpu_custom_call.1} parent=71 // pred_fallthru
          _
      $region72: #{tpu_custom_call.1} parent=5 // pred_fallthru
        _
      %p544 = scmp.le.s32.totalorder 1, %s28
      %p545 = scmp.lt.s32.totalorder %s28, 4
      %p546 = pnand %p544, %p545
      %p547 = pneg %p546
      // Predicated region
      $region85: #{tpu_custom_call.1} parent=5 // pred_check
        _
      $region86: #{tpu_custom_call.1} parent=5 // pred_check_branch
        %549 = sbr.rel (%p546) target = $region88
      $region87: #{tpu_custom_call.1} parent=5 // pred_region
        %s550 = ssub.s32 %s28, 1
        // Predicated region
        $region89: #{tpu_custom_call.1} parent=87 // pred_check
          %p551 = pneg %p169
        $region90: #{tpu_custom_call.1} parent=87 // pred_check_branch
          %553 = sbr.rel (%p551) target = $region92
        $region91: #{tpu_custom_call.1} parent=87 // pred_region
          %554 = dma.done [#allocation3], 1024
        $region92: #{tpu_custom_call.1} parent=87 // pred_fallthru
          _
        // Predicated region
        $region93: #{tpu_custom_call.1} parent=87 // pred_check
          %p555 = pneg %p211
        $region94: #{tpu_custom_call.1} parent=87 // pred_check_branch
          %557 = sbr.rel (%p555) target = $region96
        $region95: #{tpu_custom_call.1} parent=87 // pred_region
          %558 = dma.done [#allocation6], 1024
        $region96: #{tpu_custom_call.1} parent=87 // pred_fallthru
          _
        // Predicated region
        $region97: #{tpu_custom_call.1} parent=87 // pred_check
          %p559 = pneg %p379
        $region98: #{tpu_custom_call.1} parent=87 // pred_check_branch
          %561 = sbr.rel (%p559) target = $region100
        $region99: #{tpu_custom_call.1} parent=87 // pred_region
          %562 = dma.done [#allocation6], 2048
        $region100: #{tpu_custom_call.1} parent=87 // pred_fallthru
          _
        %s563 = smul.u32 16, %s33
        %p564 = scmp.lt.s32.totalorder %s563, 47
        %s565 = scalar_select %p564, %s563, 47
        %s566 = smul.addr %s565, 4
        %s567 = scalar_lea.vmem %s0, %s566
        %p568 = pneg %p54
        %p569 = pneg %p51
        %s570 = smul.u32 16, %s33
        %p571 = scmp.lt.s32.totalorder %s570, 47
        %s572 = scalar_select %p571, %s570, 47
        %s573 = smul.addr %s572, 8
        %s574 = scalar_lea.vmem %s1, %s573
        %p575 = pneg %p80
        %p576 = pneg %p77
        %s577 = smul.u32 16, %s33
        %p578 = scmp.lt.s32.totalorder %s577, 47
        %s579 = scalar_select %p578, %s577, 47
        %s580 = smul.addr %s579, 4
        %s581 = scalar_lea.vmem %s2, %s580
        %p582 = pneg %p106
        %p583 = pneg %p103
        %p584 = pneg %p127
        %p585 = pneg %p124
        %p586 = pneg %p148
        %p587 = pneg %p145
        %p588 = pneg %p169
        %p589 = pneg %p166
        %p590 = pneg %p190
        %p591 = pneg %p187
        %p592 = pneg %p211
        %p593 = pneg %p208
        %p594 = pneg %p232
        %p595 = pneg %p229
        %p596 = pneg %p253
        %p597 = pneg %p250
        %p598 = pneg %p274
        %p599 = pneg %p271
        %p600 = pneg %p295
        %p601 = pneg %p292
        %p602 = pneg %p316
        %p603 = pneg %p313
        %p604 = pneg %p337
        %p605 = pneg %p334
        %p606 = pneg %p358
        %p607 = pneg %p355
        %p608 = pneg %p379
        %p609 = pneg %p376
        %p610 = pneg %p400
        %p611 = pneg %p397
        %p612 = pneg %p426
        %p613 = pneg %p423
        %s614 = sand.u32 %s413, 1
        %s615 = scalar_lea.sflag [#allocation4], %s614
        %s616 = sand.u32 %s413, 1
        %s617 = smul.addr %s616, 128
        %s618 = scalar_lea.vmem [#allocation8], %s617
        %s619 = smul.u32 16, %s33
        %p620 = scmp.lt.s32.totalorder %s619, 47
        %s621 = scalar_select %p620, %s619, 47
        %s622 = smul.addr %s621, 4
        %s623 = scalar_lea.vmem %s0, %s622
        %s624 = smul.u32 16, %s33
        %s625 = smul.u32 16, %s33
        %p626 = scmp.lt.s32.totalorder %s625, 47
        %s627 = scalar_select %p626, %s625, 47
        %s628 = smul.addr %s627, 8
        %s629 = scalar_lea.vmem %s1, %s628
        %s630 = smul.u32 16, %s33
        %s631 = smul.u32 16, %s33
        %p632 = scmp.lt.s32.totalorder %s631, 47
        %s633 = scalar_select %p632, %s631, 47
        %s634 = smul.addr %s633, 4
        %s635 = scalar_lea.vmem %s2, %s634
        %s636 = smul.u32 16, %s33
        %s637 = smul.u32 16, %s33
        %v639 = vld [vmem:[%s629] sm:$0xff]
        %v640 = vld [vmem:[%s629 + $0x8] sm:$0xff]
        %v641 = vld [vmem:[%s629 + $0x10] sm:$0xff]
        %v642 = vld [vmem:[%s629 + $0x18] sm:$0xff]
        %v643 = vld [vmem:[%s629 + $0x20] sm:$0xff]
        %v644 = vld [vmem:[%s629 + $0x28] sm:$0xff]
        %v645 = vld [vmem:[%s629 + $0x30] sm:$0xff]
        %v646 = vld [vmem:[%s629 + $0x38] sm:$0xff]
        %v647 = vld [vmem:[%s629 + $0x40] sm:$0xff]
        %v648 = vld [vmem:[%s629 + $0x48] sm:$0xff]
        %v649 = vld [vmem:[%s629 + $0x50] sm:$0xff]
        %v650 = vld [vmem:[%s629 + $0x58] sm:$0xff]
        %v651 = vld [vmem:[%s629 + $0x60] sm:$0xff]
        %v652 = vld [vmem:[%s629 + $0x68] sm:$0xff]
        %v653 = vld [vmem:[%s629 + $0x70] sm:$0xff]
        %v654 = vld [vmem:[%s629 + $0x78] sm:$0xff]
        %v655 = vld [vmem:[%s3] sm:$0x1]
        %657 = vset.pattern.permute.xlu0 0
        %658 = vperm.xlu0 %657, %v639
        %v659 = vpop.permute.xlu0 %658
        %662 = vset.pattern.permute.xlu0 0
        %663 = vperm.xlu0 %662, %v640
        %v664 = vpop.permute.xlu0 %663
        %667 = vset.pattern.permute.xlu0 0
        %668 = vperm.xlu0 %667, %v641
        %v669 = vpop.permute.xlu0 %668
        %672 = vset.pattern.permute.xlu0 0
        %673 = vperm.xlu0 %672, %v642
        %v674 = vpop.permute.xlu0 %673
        %677 = vset.pattern.permute.xlu0 0
        %678 = vperm.xlu0 %677, %v643
        %v679 = vpop.permute.xlu0 %678
        %682 = vset.pattern.permute.xlu0 0
        %683 = vperm.xlu0 %682, %v644
        %v684 = vpop.permute.xlu0 %683
        %687 = vset.pattern.permute.xlu0 0
        %688 = vperm.xlu0 %687, %v645
        %v689 = vpop.permute.xlu0 %688
        %692 = vset.pattern.permute.xlu0 0
        %693 = vperm.xlu0 %692, %v646
        %v694 = vpop.permute.xlu0 %693
        %697 = vset.pattern.permute.xlu0 0
        %698 = vperm.xlu0 %697, %v647
        %v699 = vpop.permute.xlu0 %698
        %702 = vset.pattern.permute.xlu0 0
        %703 = vperm.xlu0 %702, %v648
        %v704 = vpop.permute.xlu0 %703
        %707 = vset.pattern.permute.xlu0 0
        %708 = vperm.xlu0 %707, %v649
        %v709 = vpop.permute.xlu0 %708
        %712 = vset.pattern.permute.xlu0 0
        %713 = vperm.xlu0 %712, %v650
        %v714 = vpop.permute.xlu0 %713
        %717 = vset.pattern.permute.xlu0 0
        %718 = vperm.xlu0 %717, %v651
        %v719 = vpop.permute.xlu0 %718
        %722 = vset.pattern.permute.xlu0 0
        %723 = vperm.xlu0 %722, %v652
        %v724 = vpop.permute.xlu0 %723
        %727 = vset.pattern.permute.xlu0 0
        %728 = vperm.xlu0 %727, %v653
        %v729 = vpop.permute.xlu0 %728
        %732 = vset.pattern.permute.xlu0 0
        %733 = vperm.xlu0 %732, %v654
        %v734 = vpop.permute.xlu0 %733
        %v737 = vlaneseq
        %v738 = vshrl.u32 %v737, 7
        %v739 = vsub.s32 0, %v738
        %v740 = vrot.slane %v655, %v739
        %v742 = vmul.f32 %v659, %v740
        %v743 = vmul.f32 %v664, %v740
        %v744 = vmul.f32 %v669, %v740
        %v745 = vmul.f32 %v674, %v740
        %v746 = vmul.f32 %v679, %v740
        %v747 = vmul.f32 %v684, %v740
        %v748 = vmul.f32 %v689, %v740
        %v749 = vmul.f32 %v694, %v740
        %v750 = vmul.f32 %v699, %v740
        %v751 = vmul.f32 %v704, %v740
        %v752 = vmul.f32 %v709, %v740
        %v753 = vmul.f32 %v714, %v740
        %v754 = vmul.f32 %v719, %v740
        %v755 = vmul.f32 %v724, %v740
        %v756 = vmul.f32 %v729, %v740
        %v757 = vmul.f32 %v734, %v740
        %v758 = vld [vmem:[%s4] sm:$0x1]
        %v760 = vlaneseq
        %v761 = vshrl.u32 %v760, 7
        %v762 = vsub.s32 0, %v761
        %v763 = vrot.slane %v758, %v762
        %v765 = vadd.f32 %v742, %v763
        %v766 = vadd.f32 %v743, %v763
        %v767 = vadd.f32 %v744, %v763
        %v768 = vadd.f32 %v745, %v763
        %v769 = vadd.f32 %v746, %v763
        %v770 = vadd.f32 %v747, %v763
        %v771 = vadd.f32 %v748, %v763
        %v772 = vadd.f32 %v749, %v763
        %v773 = vadd.f32 %v750, %v763
        %v774 = vadd.f32 %v751, %v763
        %v775 = vadd.f32 %v752, %v763
        %v776 = vadd.f32 %v753, %v763
        %v777 = vadd.f32 %v754, %v763
        %v778 = vadd.f32 %v755, %v763
        %v779 = vadd.f32 %v756, %v763
        %v780 = vadd.f32 %v757, %v763
        %v781 = vand.u32 2147483647, %v765
        %vm782 = vcmp.le.f32.partialorder %v781, 0.7853982
        %vm783 = vcmp.lt.s32.totalorder %v765, 0
        %v784 = vand.u32 %v765, 2139095040
        %v785 = vshrl.u32 %v784, 23
        %v786 = vsub.s32 %v785, 127
        %v787 = vand.u32 2147483647, %v765
        %v788 = vand.u32 %v787, 8388607
        %v789 = vor.u32 %v788, 8388608
        %v790 = vsub.s32 0, %v789
        %v791 = vadd.s32 %v786, 1
        %vm792 = vcmp.gt.s32.totalorder %v791, 0
        %v793 = vsel %vm792, %v791, 0
        %v794 = vshrl.u32 %v793, 5
        %v795 = vand.u32 %v793, 31
        %v796 = vsub.s32 32, %v795
        %v797 = vshrl.u32 683565275, %v796
        %v798 = vshll.u32 683565275, %v795
        %v799 = vshrl.u32 2475754826, %v796
        %v800 = vor.u32 %v798, %v799
        %v801 = vshll.u32 2475754826, %v795
        %v802 = vshrl.u32 2131351028, %v796
        %v803 = vor.u32 %v801, %v802
        %v804 = vshll.u32 2131351028, %v795
        %v805 = vshrl.u32 2102212464, %v796
        %v806 = vor.u32 %v804, %v805
        %v807 = vshll.u32 2102212464, %v795
        %v808 = vshrl.u32 920167782, %v796
        %v809 = vor.u32 %v807, %v808
        %v810 = vshll.u32 920167782, %v795
        %v811 = vshrl.u32 1326507024, %v796
        %v812 = vor.u32 %v810, %v811
        %vm813 = vcmp.lt.s32.totalorder %v794, 1
        %vm814 = vcmp.lt.s32.totalorder %v794, 2
        %vm815 = vcmp.lt.s32.totalorder %v794, 3
        %vm816 = vcmp.lt.s32.totalorder %v794, 4
        %v817 = vsel %vm813, %v797, %v800
        %v818 = vsel %vm816, %v806, 2102212464
        %v819 = vsel %vm815, %v803, %v818
        %v820 = vsel %vm814, %v817, %v819
        %v821 = vsel %vm813, %v800, %v803
        %v822 = vsel %vm816, %v809, 920167782
        %v823 = vsel %vm815, %v806, %v822
        %v824 = vsel %vm814, %v821, %v823
        %v825 = vsel %vm813, %v803, %v806
        %v826 = vsel %vm816, %v812, 1326507024
        %v827 = vsel %vm815, %v809, %v826
        %v828 = vsel %vm814, %v825, %v827
        %v829 = vshll.u32 %v789, 8
        %v830 = vmul.u32.u64.compose %v829, %v828
        %v831 = vextract.low.u32 %v830
        %v832 = vextract.high.u32 %v830
        %v833 = vmul.u32.u64.compose %v829, %v824
        %v834 = vextract.low.u32 %v833
        %v835 = vextract.high.u32 %v833
        %v836 = vmul.u32 %v829, %v820
        %v837 = vadd.s32 %v832, %v834
        %vm838 = vc.u32 %v832, %v834
        %v839 = vadd.s32 %v835, 1
        %v840 = vsel %vm838, %v839, %v835
        %v841 = vadd.s32 %v836, %v840
        %v842 = vadd.s32 %v841, 536870912
        %v843 = vshrl.u32 %v842, 30
        %v844 = vshll.u32 %v843, 30
        %v845 = vsub.s32 %v841, %v844
        %vm846 = vcmp.lt.s32.totalorder %v845, 0
        %v847 = vsub.s32 0, %v845
        %v848 = vsel %vm846, %v847, %v845
        %v849 = vclz %v848
        %v850 = vsub.s32 %v849, 2
        %vm851 = vcmp.gt.s32.totalorder 0, %v850
        %v852 = vsel %vm851, 0, %v850
        %v853 = vsub.s32 32, %v852
        %v854 = vshll.u32 %v845, %v852
        %v855 = vshrl.u32 %v837, %v853
        %v856 = vor.u32 %v854, %v855
        %v857 = vsub.s32 4294967266, %v852
        %v858 = vadd.s32 %v857, 127
        %v859 = vshll.u32 %v858, 23
        %v860 = vor.u32 4788187, %v859
        %v861 = vand.u32 2147483647, %v860
        %v863 = vcvt.s32.f32 %v856
        %v864 = vmul.f32 %v863, %v861
        %v865 = vxor.u32 %v864, 2147483648
        %v866 = vsel %vm783, %v865, %v864
        %v867 = vsub.s32 4, %v843
        %v868 = vsel %vm783, %v867, %v843
        %v869 = vsel %vm782, %v765, %v866
        %v870 = vsel %vm782, 0, %v868
        %v871 = vcosq.f32.pop %v869
        %v872 = vsinq.f32.pop %v869
        %vm873 = vweird.f32 %v765
        %v874 = vadd.s32 %v870, 3
        %v875 = vand.u32 %v874, 3
        %vm876 = vcmp.lt.s32.totalorder %v875, 2
        %vm877 = vcmp.eq.s32.totalorder %v875, 0
        %v878 = vxor.u32 %v872, 2147483648
        %v879 = vsel %vm877, %v871, %v878
        %vm880 = vcmp.eq.s32.totalorder %v875, 2
        %v881 = vxor.u32 %v871, 2147483648
        %v882 = vsel %vm880, %v881, %v872
        %v883 = vsel %vm876, %v879, %v882
        %v884 = vsel %vm873, nan, %v883
        %v885 = vand.u32 2147483647, %v766
        %vm886 = vcmp.le.f32.partialorder %v885, 0.7853982
        %vm887 = vcmp.lt.s32.totalorder %v766, 0
        %v888 = vand.u32 %v766, 2139095040
        %v889 = vshrl.u32 %v888, 23
        %v890 = vsub.s32 %v889, 127
        %v891 = vand.u32 2147483647, %v766
        %v892 = vand.u32 %v891, 8388607
        %v893 = vor.u32 %v892, 8388608
        %v894 = vsub.s32 0, %v893
        %v895 = vadd.s32 %v890, 1
        %vm896 = vcmp.gt.s32.totalorder %v895, 0
        %v897 = vsel %vm896, %v895, 0
        %v898 = vshrl.u32 %v897, 5
        %v899 = vand.u32 %v897, 31
        %v900 = vsub.s32 32, %v899
        %v901 = vshrl.u32 683565275, %v900
        %v902 = vshll.u32 683565275, %v899
        %v903 = vshrl.u32 2475754826, %v900
        %v904 = vor.u32 %v902, %v903
        %v905 = vshll.u32 2475754826, %v899
        %v906 = vshrl.u32 2131351028, %v900
        %v907 = vor.u32 %v905, %v906
        %v908 = vshll.u32 2131351028, %v899
        %v909 = vshrl.u32 2102212464, %v900
        %v910 = vor.u32 %v908, %v909
        %v911 = vshll.u32 2102212464, %v899
        %v912 = vshrl.u32 920167782, %v900
        %v913 = vor.u32 %v911, %v912
        %v914 = vshll.u32 920167782, %v899
        %v915 = vshrl.u32 1326507024, %v900
        %v916 = vor.u32 %v914, %v915
        %vm917 = vcmp.lt.s32.totalorder %v898, 1
        %vm918 = vcmp.lt.s32.totalorder %v898, 2
        %vm919 = vcmp.lt.s32.totalorder %v898, 3
        %vm920 = vcmp.lt.s32.totalorder %v898, 4
        %v921 = vsel %vm917, %v901, %v904
        %v922 = vsel %vm920, %v910, 2102212464
        %v923 = vsel %vm919, %v907, %v922
        %v924 = vsel %vm918, %v921, %v923
        %v925 = vsel %vm917, %v904, %v907
        %v926 = vsel %vm920, %v913, 920167782
        %v927 = vsel %vm919, %v910, %v926
        %v928 = vsel %vm918, %v925, %v927
        %v929 = vsel %vm917, %v907, %v910
        %v930 = vsel %vm920, %v916, 1326507024
        %v931 = vsel %vm919, %v913, %v930
        %v932 = vsel %vm918, %v929, %v931
        %v933 = vshll.u32 %v893, 8
        %v934 = vmul.u32.u64.compose %v933, %v932
        %v935 = vextract.low.u32 %v934
        %v936 = vextract.high.u32 %v934
        %v937 = vmul.u32.u64.compose %v933, %v928
        %v938 = vextract.low.u32 %v937
        %v939 = vextract.high.u32 %v937
        %v940 = vmul.u32 %v933, %v924
        %v941 = vadd.s32 %v936, %v938
        %vm942 = vc.u32 %v936, %v938
        %v943 = vadd.s32 %v939, 1
        %v944 = vsel %vm942, %v943, %v939
        %v945 = vadd.s32 %v940, %v944
        %v946 = vadd.s32 %v945, 536870912
        %v947 = vshrl.u32 %v946, 30
        %v948 = vshll.u32 %v947, 30
        %v949 = vsub.s32 %v945, %v948
        %vm950 = vcmp.lt.s32.totalorder %v949, 0
        %v951 = vsub.s32 0, %v949
        %v952 = vsel %vm950, %v951, %v949
        %v953 = vclz %v952
        %v954 = vsub.s32 %v953, 2
        %vm955 = vcmp.gt.s32.totalorder 0, %v954
        %v956 = vsel %vm955, 0, %v954
        %v957 = vsub.s32 32, %v956
        %v958 = vshll.u32 %v949, %v956
        %v959 = vshrl.u32 %v941, %v957
        %v960 = vor.u32 %v958, %v959
        %v961 = vsub.s32 4294967266, %v956
        %v962 = vadd.s32 %v961, 127
        %v963 = vshll.u32 %v962, 23
        %v964 = vor.u32 4788187, %v963
        %v965 = vand.u32 2147483647, %v964
        %v967 = vcvt.s32.f32 %v960
        %v968 = vmul.f32 %v967, %v965
        %v969 = vxor.u32 %v968, 2147483648
        %v970 = vsel %vm887, %v969, %v968
        %v971 = vsub.s32 4, %v947
        %v972 = vsel %vm887, %v971, %v947
        %v973 = vsel %vm886, %v766, %v970
        %v974 = vsel %vm886, 0, %v972
        %v975 = vcosq.f32.pop %v973
        %v976 = vsinq.f32.pop %v973
        %vm977 = vweird.f32 %v766
        %v978 = vadd.s32 %v974, 3
        %v979 = vand.u32 %v978, 3
        %vm980 = vcmp.lt.s32.totalorder %v979, 2
        %vm981 = vcmp.eq.s32.totalorder %v979, 0
        %v982 = vxor.u32 %v976, 2147483648
        %v983 = vsel %vm981, %v975, %v982
        %vm984 = vcmp.eq.s32.totalorder %v979, 2
        %v985 = vxor.u32 %v975, 2147483648
        %v986 = vsel %vm984, %v985, %v976
        %v987 = vsel %vm980, %v983, %v986
        %v988 = vsel %vm977, nan, %v987
        %v989 = vand.u32 2147483647, %v767
        %vm990 = vcmp.le.f32.partialorder %v989, 0.7853982
        %vm991 = vcmp.lt.s32.totalorder %v767, 0
        %v992 = vand.u32 %v767, 2139095040
        %v993 = vshrl.u32 %v992, 23
        %v994 = vsub.s32 %v993, 127
        %v995 = vand.u32 2147483647, %v767
        %v996 = vand.u32 %v995, 8388607
        %v997 = vor.u32 %v996, 8388608
        %v998 = vsub.s32 0, %v997
        %v999 = vadd.s32 %v994, 1
        %vm1000 = vcmp.gt.s32.totalorder %v999, 0
        %v1001 = vsel %vm1000, %v999, 0
        %v1002 = vshrl.u32 %v1001, 5
        %v1003 = vand.u32 %v1001, 31
        %v1004 = vsub.s32 32, %v1003
        %v1005 = vshrl.u32 683565275, %v1004
        %v1006 = vshll.u32 683565275, %v1003
        %v1007 = vshrl.u32 2475754826, %v1004
        %v1008 = vor.u32 %v1006, %v1007
        %v1009 = vshll.u32 2475754826, %v1003
        %v1010 = vshrl.u32 2131351028, %v1004
        %v1011 = vor.u32 %v1009, %v1010
        %v1012 = vshll.u32 2131351028, %v1003
        %v1013 = vshrl.u32 2102212464, %v1004
        %v1014 = vor.u32 %v1012, %v1013
        %v1015 = vshll.u32 2102212464, %v1003
        %v1016 = vshrl.u32 920167782, %v1004
        %v1017 = vor.u32 %v1015, %v1016
        %v1018 = vshll.u32 920167782, %v1003
        %v1019 = vshrl.u32 1326507024, %v1004
        %v1020 = vor.u32 %v1018, %v1019
        %vm1021 = vcmp.lt.s32.totalorder %v1002, 1
        %vm1022 = vcmp.lt.s32.totalorder %v1002, 2
        %vm1023 = vcmp.lt.s32.totalorder %v1002, 3
        %vm1024 = vcmp.lt.s32.totalorder %v1002, 4
        %v1025 = vsel %vm1021, %v1005, %v1008
        %v1026 = vsel %vm1024, %v1014, 2102212464
        %v1027 = vsel %vm1023, %v1011, %v1026
        %v1028 = vsel %vm1022, %v1025, %v1027
        %v1029 = vsel %vm1021, %v1008, %v1011
        %v1030 = vsel %vm1024, %v1017, 920167782
        %v1031 = vsel %vm1023, %v1014, %v1030
        %v1032 = vsel %vm1022, %v1029, %v1031
        %v1033 = vsel %vm1021, %v1011, %v1014
        %v1034 = vsel %vm1024, %v1020, 1326507024
        %v1035 = vsel %vm1023, %v1017, %v1034
        %v1036 = vsel %vm1022, %v1033, %v1035
        %v1037 = vshll.u32 %v997, 8
        %v1038 = vmul.u32.u64.compose %v1037, %v1036
        %v1039 = vextract.low.u32 %v1038
        %v1040 = vextract.high.u32 %v1038
        %v1041 = vmul.u32.u64.compose %v1037, %v1032
        %v1042 = vextract.low.u32 %v1041
        %v1043 = vextract.high.u32 %v1041
        %v1044 = vmul.u32 %v1037, %v1028
        %v1045 = vadd.s32 %v1040, %v1042
        %vm1046 = vc.u32 %v1040, %v1042
        %v1047 = vadd.s32 %v1043, 1
        %v1048 = vsel %vm1046, %v1047, %v1043
        %v1049 = vadd.s32 %v1044, %v1048
        %v1050 = vadd.s32 %v1049, 536870912
        %v1051 = vshrl.u32 %v1050, 30
        %v1052 = vshll.u32 %v1051, 30
        %v1053 = vsub.s32 %v1049, %v1052
        %vm1054 = vcmp.lt.s32.totalorder %v1053, 0
        %v1055 = vsub.s32 0, %v1053
        %v1056 = vsel %vm1054, %v1055, %v1053
        %v1057 = vclz %v1056
        %v1058 = vsub.s32 %v1057, 2
        %vm1059 = vcmp.gt.s32.totalorder 0, %v1058
        %v1060 = vsel %vm1059, 0, %v1058
        %v1061 = vsub.s32 32, %v1060
        %v1062 = vshll.u32 %v1053, %v1060
        %v1063 = vshrl.u32 %v1045, %v1061
        %v1064 = vor.u32 %v1062, %v1063
        %v1065 = vsub.s32 4294967266, %v1060
        %v1066 = vadd.s32 %v1065, 127
        %v1067 = vshll.u32 %v1066, 23
        %v1068 = vor.u32 4788187, %v1067
        %v1069 = vand.u32 2147483647, %v1068
        %v1071 = vcvt.s32.f32 %v1064
        %v1072 = vmul.f32 %v1071, %v1069
        %v1073 = vxor.u32 %v1072, 2147483648
        %v1074 = vsel %vm991, %v1073, %v1072
        %v1075 = vsub.s32 4, %v1051
        %v1076 = vsel %vm991, %v1075, %v1051
        %v1077 = vsel %vm990, %v767, %v1074
        %v1078 = vsel %vm990, 0, %v1076
        %v1079 = vcosq.f32.pop %v1077
        %v1080 = vsinq.f32.pop %v1077
        %vm1081 = vweird.f32 %v767
        %v1082 = vadd.s32 %v1078, 3
        %v1083 = vand.u32 %v1082, 3
        %vm1084 = vcmp.lt.s32.totalorder %v1083, 2
        %vm1085 = vcmp.eq.s32.totalorder %v1083, 0
        %v1086 = vxor.u32 %v1080, 2147483648
        %v1087 = vsel %vm1085, %v1079, %v1086
        %vm1088 = vcmp.eq.s32.totalorder %v1083, 2
        %v1089 = vxor.u32 %v1079, 2147483648
        %v1090 = vsel %vm1088, %v1089, %v1080
        %v1091 = vsel %vm1084, %v1087, %v1090
        %v1092 = vsel %vm1081, nan, %v1091
        %v1093 = vand.u32 2147483647, %v768
        %vm1094 = vcmp.le.f32.partialorder %v1093, 0.7853982
        %vm1095 = vcmp.lt.s32.totalorder %v768, 0
        %v1096 = vand.u32 %v768, 2139095040
        %v1097 = vshrl.u32 %v1096, 23
        %v1098 = vsub.s32 %v1097, 127
        %v1099 = vand.u32 2147483647, %v768
        %v1100 = vand.u32 %v1099, 8388607
        %v1101 = vor.u32 %v1100, 8388608
        %v1102 = vsub.s32 0, %v1101
        %v1103 = vadd.s32 %v1098, 1
        %vm1104 = vcmp.gt.s32.totalorder %v1103, 0
        %v1105 = vsel %vm1104, %v1103, 0
        %v1106 = vshrl.u32 %v1105, 5
        %v1107 = vand.u32 %v1105, 31
        %v1108 = vsub.s32 32, %v1107
        %v1109 = vshrl.u32 683565275, %v1108
        %v1110 = vshll.u32 683565275, %v1107
        %v1111 = vshrl.u32 2475754826, %v1108
        %v1112 = vor.u32 %v1110, %v1111
        %v1113 = vshll.u32 2475754826, %v1107
        %v1114 = vshrl.u32 2131351028, %v1108
        %v1115 = vor.u32 %v1113, %v1114
        %v1116 = vshll.u32 2131351028, %v1107
        %v1117 = vshrl.u32 2102212464, %v1108
        %v1118 = vor.u32 %v1116, %v1117
        %v1119 = vshll.u32 2102212464, %v1107
        %v1120 = vshrl.u32 920167782, %v1108
        %v1121 = vor.u32 %v1119, %v1120
        %v1122 = vshll.u32 920167782, %v1107
        %v1123 = vshrl.u32 1326507024, %v1108
        %v1124 = vor.u32 %v1122, %v1123
        %vm1125 = vcmp.lt.s32.totalorder %v1106, 1
        %vm1126 = vcmp.lt.s32.totalorder %v1106, 2
        %vm1127 = vcmp.lt.s32.totalorder %v1106, 3
        %vm1128 = vcmp.lt.s32.totalorder %v1106, 4
        %v1129 = vsel %vm1125, %v1109, %v1112
        %v1130 = vsel %vm1128, %v1118, 2102212464
        %v1131 = vsel %vm1127, %v1115, %v1130
        %v1132 = vsel %vm1126, %v1129, %v1131
        %v1133 = vsel %vm1125, %v1112, %v1115
        %v1134 = vsel %vm1128, %v1121, 920167782
        %v1135 = vsel %vm1127, %v1118, %v1134
        %v1136 = vsel %vm1126, %v1133, %v1135
        %v1137 = vsel %vm1125, %v1115, %v1118
        %v1138 = vsel %vm1128, %v1124, 1326507024
        %v1139 = vsel %vm1127, %v1121, %v1138
        %v1140 = vsel %vm1126, %v1137, %v1139
        %v1141 = vshll.u32 %v1101, 8
        %v1142 = vmul.u32.u64.compose %v1141, %v1140
        %v1143 = vextract.low.u32 %v1142
        %v1144 = vextract.high.u32 %v1142
        %v1145 = vmul.u32.u64.compose %v1141, %v1136
        %v1146 = vextract.low.u32 %v1145
        %v1147 = vextract.high.u32 %v1145
        %v1148 = vmul.u32 %v1141, %v1132
        %v1149 = vadd.s32 %v1144, %v1146
        %vm1150 = vc.u32 %v1144, %v1146
        %v1151 = vadd.s32 %v1147, 1
        %v1152 = vsel %vm1150, %v1151, %v1147
        %v1153 = vadd.s32 %v1148, %v1152
        %v1154 = vadd.s32 %v1153, 536870912
        %v1155 = vshrl.u32 %v1154, 30
        %v1156 = vshll.u32 %v1155, 30
        %v1157 = vsub.s32 %v1153, %v1156
        %vm1158 = vcmp.lt.s32.totalorder %v1157, 0
        %v1159 = vsub.s32 0, %v1157
        %v1160 = vsel %vm1158, %v1159, %v1157
        %v1161 = vclz %v1160
        %v1162 = vsub.s32 %v1161, 2
        %vm1163 = vcmp.gt.s32.totalorder 0, %v1162
        %v1164 = vsel %vm1163, 0, %v1162
        %v1165 = vsub.s32 32, %v1164
        %v1166 = vshll.u32 %v1157, %v1164
        %v1167 = vshrl.u32 %v1149, %v1165
        %v1168 = vor.u32 %v1166, %v1167
        %v1169 = vsub.s32 4294967266, %v1164
        %v1170 = vadd.s32 %v1169, 127
        %v1171 = vshll.u32 %v1170, 23
        %v1172 = vor.u32 4788187, %v1171
        %v1173 = vand.u32 2147483647, %v1172
        %v1175 = vcvt.s32.f32 %v1168
        %v1176 = vmul.f32 %v1175, %v1173
        %v1177 = vxor.u32 %v1176, 2147483648
        %v1178 = vsel %vm1095, %v1177, %v1176
        %v1179 = vsub.s32 4, %v1155
        %v1180 = vsel %vm1095, %v1179, %v1155
        %v1181 = vsel %vm1094, %v768, %v1178
        %v1182 = vsel %vm1094, 0, %v1180
        %v1183 = vcosq.f32.pop %v1181
        %v1184 = vsinq.f32.pop %v1181
        %vm1185 = vweird.f32 %v768
        %v1186 = vadd.s32 %v1182, 3
        %v1187 = vand.u32 %v1186, 3
        %vm1188 = vcmp.lt.s32.totalorder %v1187, 2
        %vm1189 = vcmp.eq.s32.totalorder %v1187, 0
        %v1190 = vxor.u32 %v1184, 2147483648
        %v1191 = vsel %vm1189, %v1183, %v1190
        %vm1192 = vcmp.eq.s32.totalorder %v1187, 2
        %v1193 = vxor.u32 %v1183, 2147483648
        %v1194 = vsel %vm1192, %v1193, %v1184
        %v1195 = vsel %vm1188, %v1191, %v1194
        %v1196 = vsel %vm1185, nan, %v1195
        %v1197 = vand.u32 2147483647, %v769
        %vm1198 = vcmp.le.f32.partialorder %v1197, 0.7853982
        %vm1199 = vcmp.lt.s32.totalorder %v769, 0
        %v1200 = vand.u32 %v769, 2139095040
        %v1201 = vshrl.u32 %v1200, 23
        %v1202 = vsub.s32 %v1201, 127
        %v1203 = vand.u32 2147483647, %v769
        %v1204 = vand.u32 %v1203, 8388607
        %v1205 = vor.u32 %v1204, 8388608
        %v1206 = vsub.s32 0, %v1205
        %v1207 = vadd.s32 %v1202, 1
        %vm1208 = vcmp.gt.s32.totalorder %v1207, 0
        %v1209 = vsel %vm1208, %v1207, 0
        %v1210 = vshrl.u32 %v1209, 5
        %v1211 = vand.u32 %v1209, 31
        %v1212 = vsub.s32 32, %v1211
        %v1213 = vshrl.u32 683565275, %v1212
        %v1214 = vshll.u32 683565275, %v1211
        %v1215 = vshrl.u32 2475754826, %v1212
        %v1216 = vor.u32 %v1214, %v1215
        %v1217 = vshll.u32 2475754826, %v1211
        %v1218 = vshrl.u32 2131351028, %v1212
        %v1219 = vor.u32 %v1217, %v1218
        %v1220 = vshll.u32 2131351028, %v1211
        %v1221 = vshrl.u32 2102212464, %v1212
        %v1222 = vor.u32 %v1220, %v1221
        %v1223 = vshll.u32 2102212464, %v1211
        %v1224 = vshrl.u32 920167782, %v1212
        %v1225 = vor.u32 %v1223, %v1224
        %v1226 = vshll.u32 920167782, %v1211
        %v1227 = vshrl.u32 1326507024, %v1212
        %v1228 = vor.u32 %v1226, %v1227
        %vm1229 = vcmp.lt.s32.totalorder %v1210, 1
        %vm1230 = vcmp.lt.s32.totalorder %v1210, 2
        %vm1231 = vcmp.lt.s32.totalorder %v1210, 3
        %vm1232 = vcmp.lt.s32.totalorder %v1210, 4
        %v1233 = vsel %vm1229, %v1213, %v1216
        %v1234 = vsel %vm1232, %v1222, 2102212464
        %v1235 = vsel %vm1231, %v1219, %v1234
        %v1236 = vsel %vm1230, %v1233, %v1235
        %v1237 = vsel %vm1229, %v1216, %v1219
        %v1238 = vsel %vm1232, %v1225, 920167782
        %v1239 = vsel %vm1231, %v1222, %v1238
        %v1240 = vsel %vm1230, %v1237, %v1239
        %v1241 = vsel %vm1229, %v1219, %v1222
        %v1242 = vsel %vm1232, %v1228, 1326507024
        %v1243 = vsel %vm1231, %v1225, %v1242
        %v1244 = vsel %vm1230, %v1241, %v1243
        %v1245 = vshll.u32 %v1205, 8
        %v1246 = vmul.u32.u64.compose %v1245, %v1244
        %v1247 = vextract.low.u32 %v1246
        %v1248 = vextract.high.u32 %v1246
        %v1249 = vmul.u32.u64.compose %v1245, %v1240
        %v1250 = vextract.low.u32 %v1249
        %v1251 = vextract.high.u32 %v1249
        %v1252 = vmul.u32 %v1245, %v1236
        %v1253 = vadd.s32 %v1248, %v1250
        %vm1254 = vc.u32 %v1248, %v1250
        %v1255 = vadd.s32 %v1251, 1
        %v1256 = vsel %vm1254, %v1255, %v1251
        %v1257 = vadd.s32 %v1252, %v1256
        %v1258 = vadd.s32 %v1257, 536870912
        %v1259 = vshrl.u32 %v1258, 30
        %v1260 = vshll.u32 %v1259, 30
        %v1261 = vsub.s32 %v1257, %v1260
        %vm1262 = vcmp.lt.s32.totalorder %v1261, 0
        %v1263 = vsub.s32 0, %v1261
        %v1264 = vsel %vm1262, %v1263, %v1261
        %v1265 = vclz %v1264
        %v1266 = vsub.s32 %v1265, 2
        %vm1267 = vcmp.gt.s32.totalorder 0, %v1266
        %v1268 = vsel %vm1267, 0, %v1266
        %v1269 = vsub.s32 32, %v1268
        %v1270 = vshll.u32 %v1261, %v1268
        %v1271 = vshrl.u32 %v1253, %v1269
        %v1272 = vor.u32 %v1270, %v1271
        %v1273 = vsub.s32 4294967266, %v1268
        %v1274 = vadd.s32 %v1273, 127
        %v1275 = vshll.u32 %v1274, 23
        %v1276 = vor.u32 4788187, %v1275
        %v1277 = vand.u32 2147483647, %v1276
        %v1279 = vcvt.s32.f32 %v1272
        %v1280 = vmul.f32 %v1279, %v1277
        %v1281 = vxor.u32 %v1280, 2147483648
        %v1282 = vsel %vm1199, %v1281, %v1280
        %v1283 = vsub.s32 4, %v1259
        %v1284 = vsel %vm1199, %v1283, %v1259
        %v1285 = vsel %vm1198, %v769, %v1282
        %v1286 = vsel %vm1198, 0, %v1284
        %v1287 = vcosq.f32.pop %v1285
        %v1288 = vsinq.f32.pop %v1285
        %vm1289 = vweird.f32 %v769
        %v1290 = vadd.s32 %v1286, 3
        %v1291 = vand.u32 %v1290, 3
        %vm1292 = vcmp.lt.s32.totalorder %v1291, 2
        %vm1293 = vcmp.eq.s32.totalorder %v1291, 0
        %v1294 = vxor.u32 %v1288, 2147483648
        %v1295 = vsel %vm1293, %v1287, %v1294
        %vm1296 = vcmp.eq.s32.totalorder %v1291, 2
        %v1297 = vxor.u32 %v1287, 2147483648
        %v1298 = vsel %vm1296, %v1297, %v1288
        %v1299 = vsel %vm1292, %v1295, %v1298
        %v1300 = vsel %vm1289, nan, %v1299
        %v1301 = vand.u32 2147483647, %v770
        %vm1302 = vcmp.le.f32.partialorder %v1301, 0.7853982
        %vm1303 = vcmp.lt.s32.totalorder %v770, 0
        %v1304 = vand.u32 %v770, 2139095040
        %v1305 = vshrl.u32 %v1304, 23
        %v1306 = vsub.s32 %v1305, 127
        %v1307 = vand.u32 2147483647, %v770
        %v1308 = vand.u32 %v1307, 8388607
        %v1309 = vor.u32 %v1308, 8388608
        %v1310 = vsub.s32 0, %v1309
        %v1311 = vadd.s32 %v1306, 1
        %vm1312 = vcmp.gt.s32.totalorder %v1311, 0
        %v1313 = vsel %vm1312, %v1311, 0
        %v1314 = vshrl.u32 %v1313, 5
        %v1315 = vand.u32 %v1313, 31
        %v1316 = vsub.s32 32, %v1315
        %v1317 = vshrl.u32 683565275, %v1316
        %v1318 = vshll.u32 683565275, %v1315
        %v1319 = vshrl.u32 2475754826, %v1316
        %v1320 = vor.u32 %v1318, %v1319
        %v1321 = vshll.u32 2475754826, %v1315
        %v1322 = vshrl.u32 2131351028, %v1316
        %v1323 = vor.u32 %v1321, %v1322
        %v1324 = vshll.u32 2131351028, %v1315
        %v1325 = vshrl.u32 2102212464, %v1316
        %v1326 = vor.u32 %v1324, %v1325
        %v1327 = vshll.u32 2102212464, %v1315
        %v1328 = vshrl.u32 920167782, %v1316
        %v1329 = vor.u32 %v1327, %v1328
        %v1330 = vshll.u32 920167782, %v1315
        %v1331 = vshrl.u32 1326507024, %v1316
        %v1332 = vor.u32 %v1330, %v1331
        %vm1333 = vcmp.lt.s32.totalorder %v1314, 1
        %vm1334 = vcmp.lt.s32.totalorder %v1314, 2
        %vm1335 = vcmp.lt.s32.totalorder %v1314, 3
        %vm1336 = vcmp.lt.s32.totalorder %v1314, 4
        %v1337 = vsel %vm1333, %v1317, %v1320
        %v1338 = vsel %vm1336, %v1326, 2102212464
        %v1339 = vsel %vm1335, %v1323, %v1338
        %v1340 = vsel %vm1334, %v1337, %v1339
        %v1341 = vsel %vm1333, %v1320, %v1323
        %v1342 = vsel %vm1336, %v1329, 920167782
        %v1343 = vsel %vm1335, %v1326, %v1342
        %v1344 = vsel %vm1334, %v1341, %v1343
        %v1345 = vsel %vm1333, %v1323, %v1326
        %v1346 = vsel %vm1336, %v1332, 1326507024
        %v1347 = vsel %vm1335, %v1329, %v1346
        %v1348 = vsel %vm1334, %v1345, %v1347
        %v1349 = vshll.u32 %v1309, 8
        %v1350 = vmul.u32.u64.compose %v1349, %v1348
        %v1351 = vextract.low.u32 %v1350
        %v1352 = vextract.high.u32 %v1350
        %v1353 = vmul.u32.u64.compose %v1349, %v1344
        %v1354 = vextract.low.u32 %v1353
        %v1355 = vextract.high.u32 %v1353
        %v1356 = vmul.u32 %v1349, %v1340
        %v1357 = vadd.s32 %v1352, %v1354
        %vm1358 = vc.u32 %v1352, %v1354
        %v1359 = vadd.s32 %v1355, 1
        %v1360 = vsel %vm1358, %v1359, %v1355
        %v1361 = vadd.s32 %v1356, %v1360
        %v1362 = vadd.s32 %v1361, 536870912
        %v1363 = vshrl.u32 %v1362, 30
        %v1364 = vshll.u32 %v1363, 30
        %v1365 = vsub.s32 %v1361, %v1364
        %vm1366 = vcmp.lt.s32.totalorder %v1365, 0
        %v1367 = vsub.s32 0, %v1365
        %v1368 = vsel %vm1366, %v1367, %v1365
        %v1369 = vclz %v1368
        %v1370 = vsub.s32 %v1369, 2
        %vm1371 = vcmp.gt.s32.totalorder 0, %v1370
        %v1372 = vsel %vm1371, 0, %v1370
        %v1373 = vsub.s32 32, %v1372
        %v1374 = vshll.u32 %v1365, %v1372
        %v1375 = vshrl.u32 %v1357, %v1373
        %v1376 = vor.u32 %v1374, %v1375
        %v1377 = vsub.s32 4294967266, %v1372
        %v1378 = vadd.s32 %v1377, 127
        %v1379 = vshll.u32 %v1378, 23
        %v1380 = vor.u32 4788187, %v1379
        %v1381 = vand.u32 2147483647, %v1380
        %v1383 = vcvt.s32.f32 %v1376
        %v1384 = vmul.f32 %v1383, %v1381
        %v1385 = vxor.u32 %v1384, 2147483648
        %v1386 = vsel %vm1303, %v1385, %v1384
        %v1387 = vsub.s32 4, %v1363
        %v1388 = vsel %vm1303, %v1387, %v1363
        %v1389 = vsel %vm1302, %v770, %v1386
        %v1390 = vsel %vm1302, 0, %v1388
        %v1391 = vcosq.f32.pop %v1389
        %v1392 = vsinq.f32.pop %v1389
        %vm1393 = vweird.f32 %v770
        %v1394 = vadd.s32 %v1390, 3
        %v1395 = vand.u32 %v1394, 3
        %vm1396 = vcmp.lt.s32.totalorder %v1395, 2
        %vm1397 = vcmp.eq.s32.totalorder %v1395, 0
        %v1398 = vxor.u32 %v1392, 2147483648
        %v1399 = vsel %vm1397, %v1391, %v1398
        %vm1400 = vcmp.eq.s32.totalorder %v1395, 2
        %v1401 = vxor.u32 %v1391, 2147483648
        %v1402 = vsel %vm1400, %v1401, %v1392
        %v1403 = vsel %vm1396, %v1399, %v1402
        %v1404 = vsel %vm1393, nan, %v1403
        %v1405 = vand.u32 2147483647, %v771
        %vm1406 = vcmp.le.f32.partialorder %v1405, 0.7853982
        %vm1407 = vcmp.lt.s32.totalorder %v771, 0
        %v1408 = vand.u32 %v771, 2139095040
        %v1409 = vshrl.u32 %v1408, 23
        %v1410 = vsub.s32 %v1409, 127
        %v1411 = vand.u32 2147483647, %v771
        %v1412 = vand.u32 %v1411, 8388607
        %v1413 = vor.u32 %v1412, 8388608
        %v1414 = vsub.s32 0, %v1413
        %v1415 = vadd.s32 %v1410, 1
        %vm1416 = vcmp.gt.s32.totalorder %v1415, 0
        %v1417 = vsel %vm1416, %v1415, 0
        %v1418 = vshrl.u32 %v1417, 5
        %v1419 = vand.u32 %v1417, 31
        %v1420 = vsub.s32 32, %v1419
        %v1421 = vshrl.u32 683565275, %v1420
        %v1422 = vshll.u32 683565275, %v1419
        %v1423 = vshrl.u32 2475754826, %v1420
        %v1424 = vor.u32 %v1422, %v1423
        %v1425 = vshll.u32 2475754826, %v1419
        %v1426 = vshrl.u32 2131351028, %v1420
        %v1427 = vor.u32 %v1425, %v1426
        %v1428 = vshll.u32 2131351028, %v1419
        %v1429 = vshrl.u32 2102212464, %v1420
        %v1430 = vor.u32 %v1428, %v1429
        %v1431 = vshll.u32 2102212464, %v1419
        %v1432 = vshrl.u32 920167782, %v1420
        %v1433 = vor.u32 %v1431, %v1432
        %v1434 = vshll.u32 920167782, %v1419
        %v1435 = vshrl.u32 1326507024, %v1420
        %v1436 = vor.u32 %v1434, %v1435
        %vm1437 = vcmp.lt.s32.totalorder %v1418, 1
        %vm1438 = vcmp.lt.s32.totalorder %v1418, 2
        %vm1439 = vcmp.lt.s32.totalorder %v1418, 3
        %vm1440 = vcmp.lt.s32.totalorder %v1418, 4
        %v1441 = vsel %vm1437, %v1421, %v1424
        %v1442 = vsel %vm1440, %v1430, 2102212464
        %v1443 = vsel %vm1439, %v1427, %v1442
        %v1444 = vsel %vm1438, %v1441, %v1443
        %v1445 = vsel %vm1437, %v1424, %v1427
        %v1446 = vsel %vm1440, %v1433, 920167782
        %v1447 = vsel %vm1439, %v1430, %v1446
        %v1448 = vsel %vm1438, %v1445, %v1447
        %v1449 = vsel %vm1437, %v1427, %v1430
        %v1450 = vsel %vm1440, %v1436, 1326507024
        %v1451 = vsel %vm1439, %v1433, %v1450
        %v1452 = vsel %vm1438, %v1449, %v1451
        %v1453 = vshll.u32 %v1413, 8
        %v1454 = vmul.u32.u64.compose %v1453, %v1452
        %v1455 = vextract.low.u32 %v1454
        %v1456 = vextract.high.u32 %v1454
        %v1457 = vmul.u32.u64.compose %v1453, %v1448
        %v1458 = vextract.low.u32 %v1457
        %v1459 = vextract.high.u32 %v1457
        %v1460 = vmul.u32 %v1453, %v1444
        %v1461 = vadd.s32 %v1456, %v1458
        %vm1462 = vc.u32 %v1456, %v1458
        %v1463 = vadd.s32 %v1459, 1
        %v1464 = vsel %vm1462, %v1463, %v1459
        %v1465 = vadd.s32 %v1460, %v1464
        %v1466 = vadd.s32 %v1465, 536870912
        %v1467 = vshrl.u32 %v1466, 30
        %v1468 = vshll.u32 %v1467, 30
        %v1469 = vsub.s32 %v1465, %v1468
        %vm1470 = vcmp.lt.s32.totalorder %v1469, 0
        %v1471 = vsub.s32 0, %v1469
        %v1472 = vsel %vm1470, %v1471, %v1469
        %v1473 = vclz %v1472
        %v1474 = vsub.s32 %v1473, 2
        %vm1475 = vcmp.gt.s32.totalorder 0, %v1474
        %v1476 = vsel %vm1475, 0, %v1474
        %v1477 = vsub.s32 32, %v1476
        %v1478 = vshll.u32 %v1469, %v1476
        %v1479 = vshrl.u32 %v1461, %v1477
        %v1480 = vor.u32 %v1478, %v1479
        %v1481 = vsub.s32 4294967266, %v1476
        %v1482 = vadd.s32 %v1481, 127
        %v1483 = vshll.u32 %v1482, 23
        %v1484 = vor.u32 4788187, %v1483
        %v1485 = vand.u32 2147483647, %v1484
        %v1487 = vcvt.s32.f32 %v1480
        %v1488 = vmul.f32 %v1487, %v1485
        %v1489 = vxor.u32 %v1488, 2147483648
        %v1490 = vsel %vm1407, %v1489, %v1488
        %v1491 = vsub.s32 4, %v1467
        %v1492 = vsel %vm1407, %v1491, %v1467
        %v1493 = vsel %vm1406, %v771, %v1490
        %v1494 = vsel %vm1406, 0, %v1492
        %v1495 = vcosq.f32.pop %v1493
        %v1496 = vsinq.f32.pop %v1493
        %vm1497 = vweird.f32 %v771
        %v1498 = vadd.s32 %v1494, 3
        %v1499 = vand.u32 %v1498, 3
        %vm1500 = vcmp.lt.s32.totalorder %v1499, 2
        %vm1501 = vcmp.eq.s32.totalorder %v1499, 0
        %v1502 = vxor.u32 %v1496, 2147483648
        %v1503 = vsel %vm1501, %v1495, %v1502
        %vm1504 = vcmp.eq.s32.totalorder %v1499, 2
        %v1505 = vxor.u32 %v1495, 2147483648
        %v1506 = vsel %vm1504, %v1505, %v1496
        %v1507 = vsel %vm1500, %v1503, %v1506
        %v1508 = vsel %vm1497, nan, %v1507
        %v1509 = vand.u32 2147483647, %v772
        %vm1510 = vcmp.le.f32.partialorder %v1509, 0.7853982
        %vm1511 = vcmp.lt.s32.totalorder %v772, 0
        %v1512 = vand.u32 %v772, 2139095040
        %v1513 = vshrl.u32 %v1512, 23
        %v1514 = vsub.s32 %v1513, 127
        %v1515 = vand.u32 2147483647, %v772
        %v1516 = vand.u32 %v1515, 8388607
        %v1517 = vor.u32 %v1516, 8388608
        %v1518 = vsub.s32 0, %v1517
        %v1519 = vadd.s32 %v1514, 1
        %vm1520 = vcmp.gt.s32.totalorder %v1519, 0
        %v1521 = vsel %vm1520, %v1519, 0
        %v1522 = vshrl.u32 %v1521, 5
        %v1523 = vand.u32 %v1521, 31
        %v1524 = vsub.s32 32, %v1523
        %v1525 = vshrl.u32 683565275, %v1524
        %v1526 = vshll.u32 683565275, %v1523
        %v1527 = vshrl.u32 2475754826, %v1524
        %v1528 = vor.u32 %v1526, %v1527
        %v1529 = vshll.u32 2475754826, %v1523
        %v1530 = vshrl.u32 2131351028, %v1524
        %v1531 = vor.u32 %v1529, %v1530
        %v1532 = vshll.u32 2131351028, %v1523
        %v1533 = vshrl.u32 2102212464, %v1524
        %v1534 = vor.u32 %v1532, %v1533
        %v1535 = vshll.u32 2102212464, %v1523
        %v1536 = vshrl.u32 920167782, %v1524
        %v1537 = vor.u32 %v1535, %v1536
        %v1538 = vshll.u32 920167782, %v1523
        %v1539 = vshrl.u32 1326507024, %v1524
        %v1540 = vor.u32 %v1538, %v1539
        %vm1541 = vcmp.lt.s32.totalorder %v1522, 1
        %vm1542 = vcmp.lt.s32.totalorder %v1522, 2
        %vm1543 = vcmp.lt.s32.totalorder %v1522, 3
        %vm1544 = vcmp.lt.s32.totalorder %v1522, 4
        %v1545 = vsel %vm1541, %v1525, %v1528
        %v1546 = vsel %vm1544, %v1534, 2102212464
        %v1547 = vsel %vm1543, %v1531, %v1546
        %v1548 = vsel %vm1542, %v1545, %v1547
        %v1549 = vsel %vm1541, %v1528, %v1531
        %v1550 = vsel %vm1544, %v1537, 920167782
        %v1551 = vsel %vm1543, %v1534, %v1550
        %v1552 = vsel %vm1542, %v1549, %v1551
        %v1553 = vsel %vm1541, %v1531, %v1534
        %v1554 = vsel %vm1544, %v1540, 1326507024
        %v1555 = vsel %vm1543, %v1537, %v1554
        %v1556 = vsel %vm1542, %v1553, %v1555
        %v1557 = vshll.u32 %v1517, 8
        %v1558 = vmul.u32.u64.compose %v1557, %v1556
        %v1559 = vextract.low.u32 %v1558
        %v1560 = vextract.high.u32 %v1558
        %v1561 = vmul.u32.u64.compose %v1557, %v1552
        %v1562 = vextract.low.u32 %v1561
        %v1563 = vextract.high.u32 %v1561
        %v1564 = vmul.u32 %v1557, %v1548
        %v1565 = vadd.s32 %v1560, %v1562
        %vm1566 = vc.u32 %v1560, %v1562
        %v1567 = vadd.s32 %v1563, 1
        %v1568 = vsel %vm1566, %v1567, %v1563
        %v1569 = vadd.s32 %v1564, %v1568
        %v1570 = vadd.s32 %v1569, 536870912
        %v1571 = vshrl.u32 %v1570, 30
        %v1572 = vshll.u32 %v1571, 30
        %v1573 = vsub.s32 %v1569, %v1572
        %vm1574 = vcmp.lt.s32.totalorder %v1573, 0
        %v1575 = vsub.s32 0, %v1573
        %v1576 = vsel %vm1574, %v1575, %v1573
        %v1577 = vclz %v1576
        %v1578 = vsub.s32 %v1577, 2
        %vm1579 = vcmp.gt.s32.totalorder 0, %v1578
        %v1580 = vsel %vm1579, 0, %v1578
        %v1581 = vsub.s32 32, %v1580
        %v1582 = vshll.u32 %v1573, %v1580
        %v1583 = vshrl.u32 %v1565, %v1581
        %v1584 = vor.u32 %v1582, %v1583
        %v1585 = vsub.s32 4294967266, %v1580
        %v1586 = vadd.s32 %v1585, 127
        %v1587 = vshll.u32 %v1586, 23
        %v1588 = vor.u32 4788187, %v1587
        %v1589 = vand.u32 2147483647, %v1588
        %v1591 = vcvt.s32.f32 %v1584
        %v1592 = vmul.f32 %v1591, %v1589
        %v1593 = vxor.u32 %v1592, 2147483648
        %v1594 = vsel %vm1511, %v1593, %v1592
        %v1595 = vsub.s32 4, %v1571
        %v1596 = vsel %vm1511, %v1595, %v1571
        %v1597 = vsel %vm1510, %v772, %v1594
        %v1598 = vsel %vm1510, 0, %v1596
        %v1599 = vcosq.f32.pop %v1597
        %v1600 = vsinq.f32.pop %v1597
        %vm1601 = vweird.f32 %v772
        %v1602 = vadd.s32 %v1598, 3
        %v1603 = vand.u32 %v1602, 3
        %vm1604 = vcmp.lt.s32.totalorder %v1603, 2
        %vm1605 = vcmp.eq.s32.totalorder %v1603, 0
        %v1606 = vxor.u32 %v1600, 2147483648
        %v1607 = vsel %vm1605, %v1599, %v1606
        %vm1608 = vcmp.eq.s32.totalorder %v1603, 2
        %v1609 = vxor.u32 %v1599, 2147483648
        %v1610 = vsel %vm1608, %v1609, %v1600
        %v1611 = vsel %vm1604, %v1607, %v1610
        %v1612 = vsel %vm1601, nan, %v1611
        %v1613 = vand.u32 2147483647, %v773
        %vm1614 = vcmp.le.f32.partialorder %v1613, 0.7853982
        %vm1615 = vcmp.lt.s32.totalorder %v773, 0
        %v1616 = vand.u32 %v773, 2139095040
        %v1617 = vshrl.u32 %v1616, 23
        %v1618 = vsub.s32 %v1617, 127
        %v1619 = vand.u32 2147483647, %v773
        %v1620 = vand.u32 %v1619, 8388607
        %v1621 = vor.u32 %v1620, 8388608
        %v1622 = vsub.s32 0, %v1621
        %v1623 = vadd.s32 %v1618, 1
        %vm1624 = vcmp.gt.s32.totalorder %v1623, 0
        %v1625 = vsel %vm1624, %v1623, 0
        %v1626 = vshrl.u32 %v1625, 5
        %v1627 = vand.u32 %v1625, 31
        %v1628 = vsub.s32 32, %v1627
        %v1629 = vshrl.u32 683565275, %v1628
        %v1630 = vshll.u32 683565275, %v1627
        %v1631 = vshrl.u32 2475754826, %v1628
        %v1632 = vor.u32 %v1630, %v1631
        %v1633 = vshll.u32 2475754826, %v1627
        %v1634 = vshrl.u32 2131351028, %v1628
        %v1635 = vor.u32 %v1633, %v1634
        %v1636 = vshll.u32 2131351028, %v1627
        %v1637 = vshrl.u32 2102212464, %v1628
        %v1638 = vor.u32 %v1636, %v1637
        %v1639 = vshll.u32 2102212464, %v1627
        %v1640 = vshrl.u32 920167782, %v1628
        %v1641 = vor.u32 %v1639, %v1640
        %v1642 = vshll.u32 920167782, %v1627
        %v1643 = vshrl.u32 1326507024, %v1628
        %v1644 = vor.u32 %v1642, %v1643
        %vm1645 = vcmp.lt.s32.totalorder %v1626, 1
        %vm1646 = vcmp.lt.s32.totalorder %v1626, 2
        %vm1647 = vcmp.lt.s32.totalorder %v1626, 3
        %vm1648 = vcmp.lt.s32.totalorder %v1626, 4
        %v1649 = vsel %vm1645, %v1629, %v1632
        %v1650 = vsel %vm1648, %v1638, 2102212464
        %v1651 = vsel %vm1647, %v1635, %v1650
        %v1652 = vsel %vm1646, %v1649, %v1651
        %v1653 = vsel %vm1645, %v1632, %v1635
        %v1654 = vsel %vm1648, %v1641, 920167782
        %v1655 = vsel %vm1647, %v1638, %v1654
        %v1656 = vsel %vm1646, %v1653, %v1655
        %v1657 = vsel %vm1645, %v1635, %v1638
        %v1658 = vsel %vm1648, %v1644, 1326507024
        %v1659 = vsel %vm1647, %v1641, %v1658
        %v1660 = vsel %vm1646, %v1657, %v1659
        %v1661 = vshll.u32 %v1621, 8
        %v1662 = vmul.u32.u64.compose %v1661, %v1660
        %v1663 = vextract.low.u32 %v1662
        %v1664 = vextract.high.u32 %v1662
        %v1665 = vmul.u32.u64.compose %v1661, %v1656
        %v1666 = vextract.low.u32 %v1665
        %v1667 = vextract.high.u32 %v1665
        %v1668 = vmul.u32 %v1661, %v1652
        %v1669 = vadd.s32 %v1664, %v1666
        %vm1670 = vc.u32 %v1664, %v1666
        %v1671 = vadd.s32 %v1667, 1
        %v1672 = vsel %vm1670, %v1671, %v1667
        %v1673 = vadd.s32 %v1668, %v1672
        %v1674 = vadd.s32 %v1673, 536870912
        %v1675 = vshrl.u32 %v1674, 30
        %v1676 = vshll.u32 %v1675, 30
        %v1677 = vsub.s32 %v1673, %v1676
        %vm1678 = vcmp.lt.s32.totalorder %v1677, 0
        %v1679 = vsub.s32 0, %v1677
        %v1680 = vsel %vm1678, %v1679, %v1677
        %v1681 = vclz %v1680
        %v1682 = vsub.s32 %v1681, 2
        %vm1683 = vcmp.gt.s32.totalorder 0, %v1682
        %v1684 = vsel %vm1683, 0, %v1682
        %v1685 = vsub.s32 32, %v1684
        %v1686 = vshll.u32 %v1677, %v1684
        %v1687 = vshrl.u32 %v1669, %v1685
        %v1688 = vor.u32 %v1686, %v1687
        %v1689 = vsub.s32 4294967266, %v1684
        %v1690 = vadd.s32 %v1689, 127
        %v1691 = vshll.u32 %v1690, 23
        %v1692 = vor.u32 4788187, %v1691
        %v1693 = vand.u32 2147483647, %v1692
        %v1695 = vcvt.s32.f32 %v1688
        %v1696 = vmul.f32 %v1695, %v1693
        %v1697 = vxor.u32 %v1696, 2147483648
        %v1698 = vsel %vm1615, %v1697, %v1696
        %v1699 = vsub.s32 4, %v1675
        %v1700 = vsel %vm1615, %v1699, %v1675
        %v1701 = vsel %vm1614, %v773, %v1698
        %v1702 = vsel %vm1614, 0, %v1700
        %v1703 = vcosq.f32.pop %v1701
        %v1704 = vsinq.f32.pop %v1701
        %vm1705 = vweird.f32 %v773
        %v1706 = vadd.s32 %v1702, 3
        %v1707 = vand.u32 %v1706, 3
        %vm1708 = vcmp.lt.s32.totalorder %v1707, 2
        %vm1709 = vcmp.eq.s32.totalorder %v1707, 0
        %v1710 = vxor.u32 %v1704, 2147483648
        %v1711 = vsel %vm1709, %v1703, %v1710
        %vm1712 = vcmp.eq.s32.totalorder %v1707, 2
        %v1713 = vxor.u32 %v1703, 2147483648
        %v1714 = vsel %vm1712, %v1713, %v1704
        %v1715 = vsel %vm1708, %v1711, %v1714
        %v1716 = vsel %vm1705, nan, %v1715
        %v1717 = vand.u32 2147483647, %v774
        %vm1718 = vcmp.le.f32.partialorder %v1717, 0.7853982
        %vm1719 = vcmp.lt.s32.totalorder %v774, 0
        %v1720 = vand.u32 %v774, 2139095040
        %v1721 = vshrl.u32 %v1720, 23
        %v1722 = vsub.s32 %v1721, 127
        %v1723 = vand.u32 2147483647, %v774
        %v1724 = vand.u32 %v1723, 8388607
        %v1725 = vor.u32 %v1724, 8388608
        %v1726 = vsub.s32 0, %v1725
        %v1727 = vadd.s32 %v1722, 1
        %vm1728 = vcmp.gt.s32.totalorder %v1727, 0
        %v1729 = vsel %vm1728, %v1727, 0
        %v1730 = vshrl.u32 %v1729, 5
        %v1731 = vand.u32 %v1729, 31
        %v1732 = vsub.s32 32, %v1731
        %v1733 = vshrl.u32 683565275, %v1732
        %v1734 = vshll.u32 683565275, %v1731
        %v1735 = vshrl.u32 2475754826, %v1732
        %v1736 = vor.u32 %v1734, %v1735
        %v1737 = vshll.u32 2475754826, %v1731
        %v1738 = vshrl.u32 2131351028, %v1732
        %v1739 = vor.u32 %v1737, %v1738
        %v1740 = vshll.u32 2131351028, %v1731
        %v1741 = vshrl.u32 2102212464, %v1732
        %v1742 = vor.u32 %v1740, %v1741
        %v1743 = vshll.u32 2102212464, %v1731
        %v1744 = vshrl.u32 920167782, %v1732
        %v1745 = vor.u32 %v1743, %v1744
        %v1746 = vshll.u32 920167782, %v1731
        %v1747 = vshrl.u32 1326507024, %v1732
        %v1748 = vor.u32 %v1746, %v1747
        %vm1749 = vcmp.lt.s32.totalorder %v1730, 1
        %vm1750 = vcmp.lt.s32.totalorder %v1730, 2
        %vm1751 = vcmp.lt.s32.totalorder %v1730, 3
        %vm1752 = vcmp.lt.s32.totalorder %v1730, 4
        %v1753 = vsel %vm1749, %v1733, %v1736
        %v1754 = vsel %vm1752, %v1742, 2102212464
        %v1755 = vsel %vm1751, %v1739, %v1754
        %v1756 = vsel %vm1750, %v1753, %v1755
        %v1757 = vsel %vm1749, %v1736, %v1739
        %v1758 = vsel %vm1752, %v1745, 920167782
        %v1759 = vsel %vm1751, %v1742, %v1758
        %v1760 = vsel %vm1750, %v1757, %v1759
        %v1761 = vsel %vm1749, %v1739, %v1742
        %v1762 = vsel %vm1752, %v1748, 1326507024
        %v1763 = vsel %vm1751, %v1745, %v1762
        %v1764 = vsel %vm1750, %v1761, %v1763
        %v1765 = vshll.u32 %v1725, 8
        %v1766 = vmul.u32.u64.compose %v1765, %v1764
        %v1767 = vextract.low.u32 %v1766
        %v1768 = vextract.high.u32 %v1766
        %v1769 = vmul.u32.u64.compose %v1765, %v1760
        %v1770 = vextract.low.u32 %v1769
        %v1771 = vextract.high.u32 %v1769
        %v1772 = vmul.u32 %v1765, %v1756
        %v1773 = vadd.s32 %v1768, %v1770
        %vm1774 = vc.u32 %v1768, %v1770
        %v1775 = vadd.s32 %v1771, 1
        %v1776 = vsel %vm1774, %v1775, %v1771
        %v1777 = vadd.s32 %v1772, %v1776
        %v1778 = vadd.s32 %v1777, 536870912
        %v1779 = vshrl.u32 %v1778, 30
        %v1780 = vshll.u32 %v1779, 30
        %v1781 = vsub.s32 %v1777, %v1780
        %vm1782 = vcmp.lt.s32.totalorder %v1781, 0
        %v1783 = vsub.s32 0, %v1781
        %v1784 = vsel %vm1782, %v1783, %v1781
        %v1785 = vclz %v1784
        %v1786 = vsub.s32 %v1785, 2
        %vm1787 = vcmp.gt.s32.totalorder 0, %v1786
        %v1788 = vsel %vm1787, 0, %v1786
        %v1789 = vsub.s32 32, %v1788
        %v1790 = vshll.u32 %v1781, %v1788
        %v1791 = vshrl.u32 %v1773, %v1789
        %v1792 = vor.u32 %v1790, %v1791
        %v1793 = vsub.s32 4294967266, %v1788
        %v1794 = vadd.s32 %v1793, 127
        %v1795 = vshll.u32 %v1794, 23
        %v1796 = vor.u32 4788187, %v1795
        %v1797 = vand.u32 2147483647, %v1796
        %v1799 = vcvt.s32.f32 %v1792
        %v1800 = vmul.f32 %v1799, %v1797
        %v1801 = vxor.u32 %v1800, 2147483648
        %v1802 = vsel %vm1719, %v1801, %v1800
        %v1803 = vsub.s32 4, %v1779
        %v1804 = vsel %vm1719, %v1803, %v1779
        %v1805 = vsel %vm1718, %v774, %v1802
        %v1806 = vsel %vm1718, 0, %v1804
        %v1807 = vcosq.f32.pop %v1805
        %v1808 = vsinq.f32.pop %v1805
        %vm1809 = vweird.f32 %v774
        %v1810 = vadd.s32 %v1806, 3
        %v1811 = vand.u32 %v1810, 3
        %vm1812 = vcmp.lt.s32.totalorder %v1811, 2
        %vm1813 = vcmp.eq.s32.totalorder %v1811, 0
        %v1814 = vxor.u32 %v1808, 2147483648
        %v1815 = vsel %vm1813, %v1807, %v1814
        %vm1816 = vcmp.eq.s32.totalorder %v1811, 2
        %v1817 = vxor.u32 %v1807, 2147483648
        %v1818 = vsel %vm1816, %v1817, %v1808
        %v1819 = vsel %vm1812, %v1815, %v1818
        %v1820 = vsel %vm1809, nan, %v1819
        %v1821 = vand.u32 2147483647, %v775
        %vm1822 = vcmp.le.f32.partialorder %v1821, 0.7853982
        %vm1823 = vcmp.lt.s32.totalorder %v775, 0
        %v1824 = vand.u32 %v775, 2139095040
        %v1825 = vshrl.u32 %v1824, 23
        %v1826 = vsub.s32 %v1825, 127
        %v1827 = vand.u32 2147483647, %v775
        %v1828 = vand.u32 %v1827, 8388607
        %v1829 = vor.u32 %v1828, 8388608
        %v1830 = vsub.s32 0, %v1829
        %v1831 = vadd.s32 %v1826, 1
        %vm1832 = vcmp.gt.s32.totalorder %v1831, 0
        %v1833 = vsel %vm1832, %v1831, 0
        %v1834 = vshrl.u32 %v1833, 5
        %v1835 = vand.u32 %v1833, 31
        %v1836 = vsub.s32 32, %v1835
        %v1837 = vshrl.u32 683565275, %v1836
        %v1838 = vshll.u32 683565275, %v1835
        %v1839 = vshrl.u32 2475754826, %v1836
        %v1840 = vor.u32 %v1838, %v1839
        %v1841 = vshll.u32 2475754826, %v1835
        %v1842 = vshrl.u32 2131351028, %v1836
        %v1843 = vor.u32 %v1841, %v1842
        %v1844 = vshll.u32 2131351028, %v1835
        %v1845 = vshrl.u32 2102212464, %v1836
        %v1846 = vor.u32 %v1844, %v1845
        %v1847 = vshll.u32 2102212464, %v1835
        %v1848 = vshrl.u32 920167782, %v1836
        %v1849 = vor.u32 %v1847, %v1848
        %v1850 = vshll.u32 920167782, %v1835
        %v1851 = vshrl.u32 1326507024, %v1836
        %v1852 = vor.u32 %v1850, %v1851
        %vm1853 = vcmp.lt.s32.totalorder %v1834, 1
        %vm1854 = vcmp.lt.s32.totalorder %v1834, 2
        %vm1855 = vcmp.lt.s32.totalorder %v1834, 3
        %vm1856 = vcmp.lt.s32.totalorder %v1834, 4
        %v1857 = vsel %vm1853, %v1837, %v1840
        %v1858 = vsel %vm1856, %v1846, 2102212464
        %v1859 = vsel %vm1855, %v1843, %v1858
        %v1860 = vsel %vm1854, %v1857, %v1859
        %v1861 = vsel %vm1853, %v1840, %v1843
        %v1862 = vsel %vm1856, %v1849, 920167782
        %v1863 = vsel %vm1855, %v1846, %v1862
        %v1864 = vsel %vm1854, %v1861, %v1863
        %v1865 = vsel %vm1853, %v1843, %v1846
        %v1866 = vsel %vm1856, %v1852, 1326507024
        %v1867 = vsel %vm1855, %v1849, %v1866
        %v1868 = vsel %vm1854, %v1865, %v1867
        %v1869 = vshll.u32 %v1829, 8
        %v1870 = vmul.u32.u64.compose %v1869, %v1868
        %v1871 = vextract.low.u32 %v1870
        %v1872 = vextract.high.u32 %v1870
        %v1873 = vmul.u32.u64.compose %v1869, %v1864
        %v1874 = vextract.low.u32 %v1873
        %v1875 = vextract.high.u32 %v1873
        %v1876 = vmul.u32 %v1869, %v1860
        %v1877 = vadd.s32 %v1872, %v1874
        %vm1878 = vc.u32 %v1872, %v1874
        %v1879 = vadd.s32 %v1875, 1
        %v1880 = vsel %vm1878, %v1879, %v1875
        %v1881 = vadd.s32 %v1876, %v1880
        %v1882 = vadd.s32 %v1881, 536870912
        %v1883 = vshrl.u32 %v1882, 30
        %v1884 = vshll.u32 %v1883, 30
        %v1885 = vsub.s32 %v1881, %v1884
        %vm1886 = vcmp.lt.s32.totalorder %v1885, 0
        %v1887 = vsub.s32 0, %v1885
        %v1888 = vsel %vm1886, %v1887, %v1885
        %v1889 = vclz %v1888
        %v1890 = vsub.s32 %v1889, 2
        %vm1891 = vcmp.gt.s32.totalorder 0, %v1890
        %v1892 = vsel %vm1891, 0, %v1890
        %v1893 = vsub.s32 32, %v1892
        %v1894 = vshll.u32 %v1885, %v1892
        %v1895 = vshrl.u32 %v1877, %v1893
        %v1896 = vor.u32 %v1894, %v1895
        %v1897 = vsub.s32 4294967266, %v1892
        %v1898 = vadd.s32 %v1897, 127
        %v1899 = vshll.u32 %v1898, 23
        %v1900 = vor.u32 4788187, %v1899
        %v1901 = vand.u32 2147483647, %v1900
        %v1903 = vcvt.s32.f32 %v1896
        %v1904 = vmul.f32 %v1903, %v1901
        %v1905 = vxor.u32 %v1904, 2147483648
        %v1906 = vsel %vm1823, %v1905, %v1904
        %v1907 = vsub.s32 4, %v1883
        %v1908 = vsel %vm1823, %v1907, %v1883
        %v1909 = vsel %vm1822, %v775, %v1906
        %v1910 = vsel %vm1822, 0, %v1908
        %v1911 = vcosq.f32.pop %v1909
        %v1912 = vsinq.f32.pop %v1909
        %vm1913 = vweird.f32 %v775
        %v1914 = vadd.s32 %v1910, 3
        %v1915 = vand.u32 %v1914, 3
        %vm1916 = vcmp.lt.s32.totalorder %v1915, 2
        %vm1917 = vcmp.eq.s32.totalorder %v1915, 0
        %v1918 = vxor.u32 %v1912, 2147483648
        %v1919 = vsel %vm1917, %v1911, %v1918
        %vm1920 = vcmp.eq.s32.totalorder %v1915, 2
        %v1921 = vxor.u32 %v1911, 2147483648
        %v1922 = vsel %vm1920, %v1921, %v1912
        %v1923 = vsel %vm1916, %v1919, %v1922
        %v1924 = vsel %vm1913, nan, %v1923
        %v1925 = vand.u32 2147483647, %v776
        %vm1926 = vcmp.le.f32.partialorder %v1925, 0.7853982
        %vm1927 = vcmp.lt.s32.totalorder %v776, 0
        %v1928 = vand.u32 %v776, 2139095040
        %v1929 = vshrl.u32 %v1928, 23
        %v1930 = vsub.s32 %v1929, 127
        %v1931 = vand.u32 2147483647, %v776
        %v1932 = vand.u32 %v1931, 8388607
        %v1933 = vor.u32 %v1932, 8388608
        %v1934 = vsub.s32 0, %v1933
        %v1935 = vadd.s32 %v1930, 1
        %vm1936 = vcmp.gt.s32.totalorder %v1935, 0
        %v1937 = vsel %vm1936, %v1935, 0
        %v1938 = vshrl.u32 %v1937, 5
        %v1939 = vand.u32 %v1937, 31
        %v1940 = vsub.s32 32, %v1939
        %v1941 = vshrl.u32 683565275, %v1940
        %v1942 = vshll.u32 683565275, %v1939
        %v1943 = vshrl.u32 2475754826, %v1940
        %v1944 = vor.u32 %v1942, %v1943
        %v1945 = vshll.u32 2475754826, %v1939
        %v1946 = vshrl.u32 2131351028, %v1940
        %v1947 = vor.u32 %v1945, %v1946
        %v1948 = vshll.u32 2131351028, %v1939
        %v1949 = vshrl.u32 2102212464, %v1940
        %v1950 = vor.u32 %v1948, %v1949
        %v1951 = vshll.u32 2102212464, %v1939
        %v1952 = vshrl.u32 920167782, %v1940
        %v1953 = vor.u32 %v1951, %v1952
        %v1954 = vshll.u32 920167782, %v1939
        %v1955 = vshrl.u32 1326507024, %v1940
        %v1956 = vor.u32 %v1954, %v1955
        %vm1957 = vcmp.lt.s32.totalorder %v1938, 1
        %vm1958 = vcmp.lt.s32.totalorder %v1938, 2
        %vm1959 = vcmp.lt.s32.totalorder %v1938, 3
        %vm1960 = vcmp.lt.s32.totalorder %v1938, 4
        %v1961 = vsel %vm1957, %v1941, %v1944
        %v1962 = vsel %vm1960, %v1950, 2102212464
        %v1963 = vsel %vm1959, %v1947, %v1962
        %v1964 = vsel %vm1958, %v1961, %v1963
        %v1965 = vsel %vm1957, %v1944, %v1947
        %v1966 = vsel %vm1960, %v1953, 920167782
        %v1967 = vsel %vm1959, %v1950, %v1966
        %v1968 = vsel %vm1958, %v1965, %v1967
        %v1969 = vsel %vm1957, %v1947, %v1950
        %v1970 = vsel %vm1960, %v1956, 1326507024
        %v1971 = vsel %vm1959, %v1953, %v1970
        %v1972 = vsel %vm1958, %v1969, %v1971
        %v1973 = vshll.u32 %v1933, 8
        %v1974 = vmul.u32.u64.compose %v1973, %v1972
        %v1975 = vextract.low.u32 %v1974
        %v1976 = vextract.high.u32 %v1974
        %v1977 = vmul.u32.u64.compose %v1973, %v1968
        %v1978 = vextract.low.u32 %v1977
        %v1979 = vextract.high.u32 %v1977
        %v1980 = vmul.u32 %v1973, %v1964
        %v1981 = vadd.s32 %v1976, %v1978
        %vm1982 = vc.u32 %v1976, %v1978
        %v1983 = vadd.s32 %v1979, 1
        %v1984 = vsel %vm1982, %v1983, %v1979
        %v1985 = vadd.s32 %v1980, %v1984
        %v1986 = vadd.s32 %v1985, 536870912
        %v1987 = vshrl.u32 %v1986, 30
        %v1988 = vshll.u32 %v1987, 30
        %v1989 = vsub.s32 %v1985, %v1988
        %vm1990 = vcmp.lt.s32.totalorder %v1989, 0
        %v1991 = vsub.s32 0, %v1989
        %v1992 = vsel %vm1990, %v1991, %v1989
        %v1993 = vclz %v1992
        %v1994 = vsub.s32 %v1993, 2
        %vm1995 = vcmp.gt.s32.totalorder 0, %v1994
        %v1996 = vsel %vm1995, 0, %v1994
        %v1997 = vsub.s32 32, %v1996
        %v1998 = vshll.u32 %v1989, %v1996
        %v1999 = vshrl.u32 %v1981, %v1997
        %v2000 = vor.u32 %v1998, %v1999
        %v2001 = vsub.s32 4294967266, %v1996
        %v2002 = vadd.s32 %v2001, 127
        %v2003 = vshll.u32 %v2002, 23
        %v2004 = vor.u32 4788187, %v2003
        %v2005 = vand.u32 2147483647, %v2004
        %v2007 = vcvt.s32.f32 %v2000
        %v2008 = vmul.f32 %v2007, %v2005
        %v2009 = vxor.u32 %v2008, 2147483648
        %v2010 = vsel %vm1927, %v2009, %v2008
        %v2011 = vsub.s32 4, %v1987
        %v2012 = vsel %vm1927, %v2011, %v1987
        %v2013 = vsel %vm1926, %v776, %v2010
        %v2014 = vsel %vm1926, 0, %v2012
        %v2015 = vcosq.f32.pop %v2013
        %v2016 = vsinq.f32.pop %v2013
        %vm2017 = vweird.f32 %v776
        %v2018 = vadd.s32 %v2014, 3
        %v2019 = vand.u32 %v2018, 3
        %vm2020 = vcmp.lt.s32.totalorder %v2019, 2
        %vm2021 = vcmp.eq.s32.totalorder %v2019, 0
        %v2022 = vxor.u32 %v2016, 2147483648
        %v2023 = vsel %vm2021, %v2015, %v2022
        %vm2024 = vcmp.eq.s32.totalorder %v2019, 2
        %v2025 = vxor.u32 %v2015, 2147483648
        %v2026 = vsel %vm2024, %v2025, %v2016
        %v2027 = vsel %vm2020, %v2023, %v2026
        %v2028 = vsel %vm2017, nan, %v2027
        %v2029 = vand.u32 2147483647, %v777
        %vm2030 = vcmp.le.f32.partialorder %v2029, 0.7853982
        %vm2031 = vcmp.lt.s32.totalorder %v777, 0
        %v2032 = vand.u32 %v777, 2139095040
        %v2033 = vshrl.u32 %v2032, 23
        %v2034 = vsub.s32 %v2033, 127
        %v2035 = vand.u32 2147483647, %v777
        %v2036 = vand.u32 %v2035, 8388607
        %v2037 = vor.u32 %v2036, 8388608
        %v2038 = vsub.s32 0, %v2037
        %v2039 = vadd.s32 %v2034, 1
        %vm2040 = vcmp.gt.s32.totalorder %v2039, 0
        %v2041 = vsel %vm2040, %v2039, 0
        %v2042 = vshrl.u32 %v2041, 5
        %v2043 = vand.u32 %v2041, 31
        %v2044 = vsub.s32 32, %v2043
        %v2045 = vshrl.u32 683565275, %v2044
        %v2046 = vshll.u32 683565275, %v2043
        %v2047 = vshrl.u32 2475754826, %v2044
        %v2048 = vor.u32 %v2046, %v2047
        %v2049 = vshll.u32 2475754826, %v2043
        %v2050 = vshrl.u32 2131351028, %v2044
        %v2051 = vor.u32 %v2049, %v2050
        %v2052 = vshll.u32 2131351028, %v2043
        %v2053 = vshrl.u32 2102212464, %v2044
        %v2054 = vor.u32 %v2052, %v2053
        %v2055 = vshll.u32 2102212464, %v2043
        %v2056 = vshrl.u32 920167782, %v2044
        %v2057 = vor.u32 %v2055, %v2056
        %v2058 = vshll.u32 920167782, %v2043
        %v2059 = vshrl.u32 1326507024, %v2044
        %v2060 = vor.u32 %v2058, %v2059
        %vm2061 = vcmp.lt.s32.totalorder %v2042, 1
        %vm2062 = vcmp.lt.s32.totalorder %v2042, 2
        %vm2063 = vcmp.lt.s32.totalorder %v2042, 3
        %vm2064 = vcmp.lt.s32.totalorder %v2042, 4
        %v2065 = vsel %vm2061, %v2045, %v2048
        %v2066 = vsel %vm2064, %v2054, 2102212464
        %v2067 = vsel %vm2063, %v2051, %v2066
        %v2068 = vsel %vm2062, %v2065, %v2067
        %v2069 = vsel %vm2061, %v2048, %v2051
        %v2070 = vsel %vm2064, %v2057, 920167782
        %v2071 = vsel %vm2063, %v2054, %v2070
        %v2072 = vsel %vm2062, %v2069, %v2071
        %v2073 = vsel %vm2061, %v2051, %v2054
        %v2074 = vsel %vm2064, %v2060, 1326507024
        %v2075 = vsel %vm2063, %v2057, %v2074
        %v2076 = vsel %vm2062, %v2073, %v2075
        %v2077 = vshll.u32 %v2037, 8
        %v2078 = vmul.u32.u64.compose %v2077, %v2076
        %v2079 = vextract.low.u32 %v2078
        %v2080 = vextract.high.u32 %v2078
        %v2081 = vmul.u32.u64.compose %v2077, %v2072
        %v2082 = vextract.low.u32 %v2081
        %v2083 = vextract.high.u32 %v2081
        %v2084 = vmul.u32 %v2077, %v2068
        %v2085 = vadd.s32 %v2080, %v2082
        %vm2086 = vc.u32 %v2080, %v2082
        %v2087 = vadd.s32 %v2083, 1
        %v2088 = vsel %vm2086, %v2087, %v2083
        %v2089 = vadd.s32 %v2084, %v2088
        %v2090 = vadd.s32 %v2089, 536870912
        %v2091 = vshrl.u32 %v2090, 30
        %v2092 = vshll.u32 %v2091, 30
        %v2093 = vsub.s32 %v2089, %v2092
        %vm2094 = vcmp.lt.s32.totalorder %v2093, 0
        %v2095 = vsub.s32 0, %v2093
        %v2096 = vsel %vm2094, %v2095, %v2093
        %v2097 = vclz %v2096
        %v2098 = vsub.s32 %v2097, 2
        %vm2099 = vcmp.gt.s32.totalorder 0, %v2098
        %v2100 = vsel %vm2099, 0, %v2098
        %v2101 = vsub.s32 32, %v2100
        %v2102 = vshll.u32 %v2093, %v2100
        %v2103 = vshrl.u32 %v2085, %v2101
        %v2104 = vor.u32 %v2102, %v2103
        %v2105 = vsub.s32 4294967266, %v2100
        %v2106 = vadd.s32 %v2105, 127
        %v2107 = vshll.u32 %v2106, 23
        %v2108 = vor.u32 4788187, %v2107
        %v2109 = vand.u32 2147483647, %v2108
        %v2111 = vcvt.s32.f32 %v2104
        %v2112 = vmul.f32 %v2111, %v2109
        %v2113 = vxor.u32 %v2112, 2147483648
        %v2114 = vsel %vm2031, %v2113, %v2112
        %v2115 = vsub.s32 4, %v2091
        %v2116 = vsel %vm2031, %v2115, %v2091
        %v2117 = vsel %vm2030, %v777, %v2114
        %v2118 = vsel %vm2030, 0, %v2116
        %v2119 = vcosq.f32.pop %v2117
        %v2120 = vsinq.f32.pop %v2117
        %vm2121 = vweird.f32 %v777
        %v2122 = vadd.s32 %v2118, 3
        %v2123 = vand.u32 %v2122, 3
        %vm2124 = vcmp.lt.s32.totalorder %v2123, 2
        %vm2125 = vcmp.eq.s32.totalorder %v2123, 0
        %v2126 = vxor.u32 %v2120, 2147483648
        %v2127 = vsel %vm2125, %v2119, %v2126
        %vm2128 = vcmp.eq.s32.totalorder %v2123, 2
        %v2129 = vxor.u32 %v2119, 2147483648
        %v2130 = vsel %vm2128, %v2129, %v2120
        %v2131 = vsel %vm2124, %v2127, %v2130
        %v2132 = vsel %vm2121, nan, %v2131
        %v2133 = vand.u32 2147483647, %v778
        %vm2134 = vcmp.le.f32.partialorder %v2133, 0.7853982
        %vm2135 = vcmp.lt.s32.totalorder %v778, 0
        %v2136 = vand.u32 %v778, 2139095040
        %v2137 = vshrl.u32 %v2136, 23
        %v2138 = vsub.s32 %v2137, 127
        %v2139 = vand.u32 2147483647, %v778
        %v2140 = vand.u32 %v2139, 8388607
        %v2141 = vor.u32 %v2140, 8388608
        %v2142 = vsub.s32 0, %v2141
        %v2143 = vadd.s32 %v2138, 1
        %vm2144 = vcmp.gt.s32.totalorder %v2143, 0
        %v2145 = vsel %vm2144, %v2143, 0
        %v2146 = vshrl.u32 %v2145, 5
        %v2147 = vand.u32 %v2145, 31
        %v2148 = vsub.s32 32, %v2147
        %v2149 = vshrl.u32 683565275, %v2148
        %v2150 = vshll.u32 683565275, %v2147
        %v2151 = vshrl.u32 2475754826, %v2148
        %v2152 = vor.u32 %v2150, %v2151
        %v2153 = vshll.u32 2475754826, %v2147
        %v2154 = vshrl.u32 2131351028, %v2148
        %v2155 = vor.u32 %v2153, %v2154
        %v2156 = vshll.u32 2131351028, %v2147
        %v2157 = vshrl.u32 2102212464, %v2148
        %v2158 = vor.u32 %v2156, %v2157
        %v2159 = vshll.u32 2102212464, %v2147
        %v2160 = vshrl.u32 920167782, %v2148
        %v2161 = vor.u32 %v2159, %v2160
        %v2162 = vshll.u32 920167782, %v2147
        %v2163 = vshrl.u32 1326507024, %v2148
        %v2164 = vor.u32 %v2162, %v2163
        %vm2165 = vcmp.lt.s32.totalorder %v2146, 1
        %vm2166 = vcmp.lt.s32.totalorder %v2146, 2
        %vm2167 = vcmp.lt.s32.totalorder %v2146, 3
        %vm2168 = vcmp.lt.s32.totalorder %v2146, 4
        %v2169 = vsel %vm2165, %v2149, %v2152
        %v2170 = vsel %vm2168, %v2158, 2102212464
        %v2171 = vsel %vm2167, %v2155, %v2170
        %v2172 = vsel %vm2166, %v2169, %v2171
        %v2173 = vsel %vm2165, %v2152, %v2155
        %v2174 = vsel %vm2168, %v2161, 920167782
        %v2175 = vsel %vm2167, %v2158, %v2174
        %v2176 = vsel %vm2166, %v2173, %v2175
        %v2177 = vsel %vm2165, %v2155, %v2158
        %v2178 = vsel %vm2168, %v2164, 1326507024
        %v2179 = vsel %vm2167, %v2161, %v2178
        %v2180 = vsel %vm2166, %v2177, %v2179
        %v2181 = vshll.u32 %v2141, 8
        %v2182 = vmul.u32.u64.compose %v2181, %v2180
        %v2183 = vextract.low.u32 %v2182
        %v2184 = vextract.high.u32 %v2182
        %v2185 = vmul.u32.u64.compose %v2181, %v2176
        %v2186 = vextract.low.u32 %v2185
        %v2187 = vextract.high.u32 %v2185
        %v2188 = vmul.u32 %v2181, %v2172
        %v2189 = vadd.s32 %v2184, %v2186
        %vm2190 = vc.u32 %v2184, %v2186
        %v2191 = vadd.s32 %v2187, 1
        %v2192 = vsel %vm2190, %v2191, %v2187
        %v2193 = vadd.s32 %v2188, %v2192
        %v2194 = vadd.s32 %v2193, 536870912
        %v2195 = vshrl.u32 %v2194, 30
        %v2196 = vshll.u32 %v2195, 30
        %v2197 = vsub.s32 %v2193, %v2196
        %vm2198 = vcmp.lt.s32.totalorder %v2197, 0
        %v2199 = vsub.s32 0, %v2197
        %v2200 = vsel %vm2198, %v2199, %v2197
        %v2201 = vclz %v2200
        %v2202 = vsub.s32 %v2201, 2
        %vm2203 = vcmp.gt.s32.totalorder 0, %v2202
        %v2204 = vsel %vm2203, 0, %v2202
        %v2205 = vsub.s32 32, %v2204
        %v2206 = vshll.u32 %v2197, %v2204
        %v2207 = vshrl.u32 %v2189, %v2205
        %v2208 = vor.u32 %v2206, %v2207
        %v2209 = vsub.s32 4294967266, %v2204
        %v2210 = vadd.s32 %v2209, 127
        %v2211 = vshll.u32 %v2210, 23
        %v2212 = vor.u32 4788187, %v2211
        %v2213 = vand.u32 2147483647, %v2212
        %v2215 = vcvt.s32.f32 %v2208
        %v2216 = vmul.f32 %v2215, %v2213
        %v2217 = vxor.u32 %v2216, 2147483648
        %v2218 = vsel %vm2135, %v2217, %v2216
        %v2219 = vsub.s32 4, %v2195
        %v2220 = vsel %vm2135, %v2219, %v2195
        %v2221 = vsel %vm2134, %v778, %v2218
        %v2222 = vsel %vm2134, 0, %v2220
        %v2223 = vcosq.f32.pop %v2221
        %v2224 = vsinq.f32.pop %v2221
        %vm2225 = vweird.f32 %v778
        %v2226 = vadd.s32 %v2222, 3
        %v2227 = vand.u32 %v2226, 3
        %vm2228 = vcmp.lt.s32.totalorder %v2227, 2
        %vm2229 = vcmp.eq.s32.totalorder %v2227, 0
        %v2230 = vxor.u32 %v2224, 2147483648
        %v2231 = vsel %vm2229, %v2223, %v2230
        %vm2232 = vcmp.eq.s32.totalorder %v2227, 2
        %v2233 = vxor.u32 %v2223, 2147483648
        %v2234 = vsel %vm2232, %v2233, %v2224
        %v2235 = vsel %vm2228, %v2231, %v2234
        %v2236 = vsel %vm2225, nan, %v2235
        %v2237 = vand.u32 2147483647, %v779
        %vm2238 = vcmp.le.f32.partialorder %v2237, 0.7853982
        %vm2239 = vcmp.lt.s32.totalorder %v779, 0
        %v2240 = vand.u32 %v779, 2139095040
        %v2241 = vshrl.u32 %v2240, 23
        %v2242 = vsub.s32 %v2241, 127
        %v2243 = vand.u32 2147483647, %v779
        %v2244 = vand.u32 %v2243, 8388607
        %v2245 = vor.u32 %v2244, 8388608
        %v2246 = vsub.s32 0, %v2245
        %v2247 = vadd.s32 %v2242, 1
        %vm2248 = vcmp.gt.s32.totalorder %v2247, 0
        %v2249 = vsel %vm2248, %v2247, 0
        %v2250 = vshrl.u32 %v2249, 5
        %v2251 = vand.u32 %v2249, 31
        %v2252 = vsub.s32 32, %v2251
        %v2253 = vshrl.u32 683565275, %v2252
        %v2254 = vshll.u32 683565275, %v2251
        %v2255 = vshrl.u32 2475754826, %v2252
        %v2256 = vor.u32 %v2254, %v2255
        %v2257 = vshll.u32 2475754826, %v2251
        %v2258 = vshrl.u32 2131351028, %v2252
        %v2259 = vor.u32 %v2257, %v2258
        %v2260 = vshll.u32 2131351028, %v2251
        %v2261 = vshrl.u32 2102212464, %v2252
        %v2262 = vor.u32 %v2260, %v2261
        %v2263 = vshll.u32 2102212464, %v2251
        %v2264 = vshrl.u32 920167782, %v2252
        %v2265 = vor.u32 %v2263, %v2264
        %v2266 = vshll.u32 920167782, %v2251
        %v2267 = vshrl.u32 1326507024, %v2252
        %v2268 = vor.u32 %v2266, %v2267
        %vm2269 = vcmp.lt.s32.totalorder %v2250, 1
        %vm2270 = vcmp.lt.s32.totalorder %v2250, 2
        %vm2271 = vcmp.lt.s32.totalorder %v2250, 3
        %vm2272 = vcmp.lt.s32.totalorder %v2250, 4
        %v2273 = vsel %vm2269, %v2253, %v2256
        %v2274 = vsel %vm2272, %v2262, 2102212464
        %v2275 = vsel %vm2271, %v2259, %v2274
        %v2276 = vsel %vm2270, %v2273, %v2275
        %v2277 = vsel %vm2269, %v2256, %v2259
        %v2278 = vsel %vm2272, %v2265, 920167782
        %v2279 = vsel %vm2271, %v2262, %v2278
        %v2280 = vsel %vm2270, %v2277, %v2279
        %v2281 = vsel %vm2269, %v2259, %v2262
        %v2282 = vsel %vm2272, %v2268, 1326507024
        %v2283 = vsel %vm2271, %v2265, %v2282
        %v2284 = vsel %vm2270, %v2281, %v2283
        %v2285 = vshll.u32 %v2245, 8
        %v2286 = vmul.u32.u64.compose %v2285, %v2284
        %v2287 = vextract.low.u32 %v2286
        %v2288 = vextract.high.u32 %v2286
        %v2289 = vmul.u32.u64.compose %v2285, %v2280
        %v2290 = vextract.low.u32 %v2289
        %v2291 = vextract.high.u32 %v2289
        %v2292 = vmul.u32 %v2285, %v2276
        %v2293 = vadd.s32 %v2288, %v2290
        %vm2294 = vc.u32 %v2288, %v2290
        %v2295 = vadd.s32 %v2291, 1
        %v2296 = vsel %vm2294, %v2295, %v2291
        %v2297 = vadd.s32 %v2292, %v2296
        %v2298 = vadd.s32 %v2297, 536870912
        %v2299 = vshrl.u32 %v2298, 30
        %v2300 = vshll.u32 %v2299, 30
        %v2301 = vsub.s32 %v2297, %v2300
        %vm2302 = vcmp.lt.s32.totalorder %v2301, 0
        %v2303 = vsub.s32 0, %v2301
        %v2304 = vsel %vm2302, %v2303, %v2301
        %v2305 = vclz %v2304
        %v2306 = vsub.s32 %v2305, 2
        %vm2307 = vcmp.gt.s32.totalorder 0, %v2306
        %v2308 = vsel %vm2307, 0, %v2306
        %v2309 = vsub.s32 32, %v2308
        %v2310 = vshll.u32 %v2301, %v2308
        %v2311 = vshrl.u32 %v2293, %v2309
        %v2312 = vor.u32 %v2310, %v2311
        %v2313 = vsub.s32 4294967266, %v2308
        %v2314 = vadd.s32 %v2313, 127
        %v2315 = vshll.u32 %v2314, 23
        %v2316 = vor.u32 4788187, %v2315
        %v2317 = vand.u32 2147483647, %v2316
        %v2319 = vcvt.s32.f32 %v2312
        %v2320 = vmul.f32 %v2319, %v2317
        %v2321 = vxor.u32 %v2320, 2147483648
        %v2322 = vsel %vm2239, %v2321, %v2320
        %v2323 = vsub.s32 4, %v2299
        %v2324 = vsel %vm2239, %v2323, %v2299
        %v2325 = vsel %vm2238, %v779, %v2322
        %v2326 = vsel %vm2238, 0, %v2324
        %v2327 = vcosq.f32.pop %v2325
        %v2328 = vsinq.f32.pop %v2325
        %vm2329 = vweird.f32 %v779
        %v2330 = vadd.s32 %v2326, 3
        %v2331 = vand.u32 %v2330, 3
        %vm2332 = vcmp.lt.s32.totalorder %v2331, 2
        %vm2333 = vcmp.eq.s32.totalorder %v2331, 0
        %v2334 = vxor.u32 %v2328, 2147483648
        %v2335 = vsel %vm2333, %v2327, %v2334
        %vm2336 = vcmp.eq.s32.totalorder %v2331, 2
        %v2337 = vxor.u32 %v2327, 2147483648
        %v2338 = vsel %vm2336, %v2337, %v2328
        %v2339 = vsel %vm2332, %v2335, %v2338
        %v2340 = vsel %vm2329, nan, %v2339
        %v2341 = vand.u32 2147483647, %v780
        %vm2342 = vcmp.le.f32.partialorder %v2341, 0.7853982
        %vm2343 = vcmp.lt.s32.totalorder %v780, 0
        %v2344 = vand.u32 %v780, 2139095040
        %v2345 = vshrl.u32 %v2344, 23
        %v2346 = vsub.s32 %v2345, 127
        %v2347 = vand.u32 2147483647, %v780
        %v2348 = vand.u32 %v2347, 8388607
        %v2349 = vor.u32 %v2348, 8388608
        %v2350 = vsub.s32 0, %v2349
        %v2351 = vadd.s32 %v2346, 1
        %vm2352 = vcmp.gt.s32.totalorder %v2351, 0
        %v2353 = vsel %vm2352, %v2351, 0
        %v2354 = vshrl.u32 %v2353, 5
        %v2355 = vand.u32 %v2353, 31
        %v2356 = vsub.s32 32, %v2355
        %v2357 = vshrl.u32 683565275, %v2356
        %v2358 = vshll.u32 683565275, %v2355
        %v2359 = vshrl.u32 2475754826, %v2356
        %v2360 = vor.u32 %v2358, %v2359
        %v2361 = vshll.u32 2475754826, %v2355
        %v2362 = vshrl.u32 2131351028, %v2356
        %v2363 = vor.u32 %v2361, %v2362
        %v2364 = vshll.u32 2131351028, %v2355
        %v2365 = vshrl.u32 2102212464, %v2356
        %v2366 = vor.u32 %v2364, %v2365
        %v2367 = vshll.u32 2102212464, %v2355
        %v2368 = vshrl.u32 920167782, %v2356
        %v2369 = vor.u32 %v2367, %v2368
        %v2370 = vshll.u32 920167782, %v2355
        %v2371 = vshrl.u32 1326507024, %v2356
        %v2372 = vor.u32 %v2370, %v2371
        %vm2373 = vcmp.lt.s32.totalorder %v2354, 1
        %vm2374 = vcmp.lt.s32.totalorder %v2354, 2
        %vm2375 = vcmp.lt.s32.totalorder %v2354, 3
        %vm2376 = vcmp.lt.s32.totalorder %v2354, 4
        %v2377 = vsel %vm2373, %v2357, %v2360
        %v2378 = vsel %vm2376, %v2366, 2102212464
        %v2379 = vsel %vm2375, %v2363, %v2378
        %v2380 = vsel %vm2374, %v2377, %v2379
        %v2381 = vsel %vm2373, %v2360, %v2363
        %v2382 = vsel %vm2376, %v2369, 920167782
        %v2383 = vsel %vm2375, %v2366, %v2382
        %v2384 = vsel %vm2374, %v2381, %v2383
        %v2385 = vsel %vm2373, %v2363, %v2366
        %v2386 = vsel %vm2376, %v2372, 1326507024
        %v2387 = vsel %vm2375, %v2369, %v2386
        %v2388 = vsel %vm2374, %v2385, %v2387
        %v2389 = vshll.u32 %v2349, 8
        %v2390 = vmul.u32.u64.compose %v2389, %v2388
        %v2391 = vextract.low.u32 %v2390
        %v2392 = vextract.high.u32 %v2390
        %v2393 = vmul.u32.u64.compose %v2389, %v2384
        %v2394 = vextract.low.u32 %v2393
        %v2395 = vextract.high.u32 %v2393
        %v2396 = vmul.u32 %v2389, %v2380
        %v2397 = vadd.s32 %v2392, %v2394
        %vm2398 = vc.u32 %v2392, %v2394
        %v2399 = vadd.s32 %v2395, 1
        %v2400 = vsel %vm2398, %v2399, %v2395
        %v2401 = vadd.s32 %v2396, %v2400
        %v2402 = vadd.s32 %v2401, 536870912
        %v2403 = vshrl.u32 %v2402, 30
        %v2404 = vshll.u32 %v2403, 30
        %v2405 = vsub.s32 %v2401, %v2404
        %vm2406 = vcmp.lt.s32.totalorder %v2405, 0
        %v2407 = vsub.s32 0, %v2405
        %v2408 = vsel %vm2406, %v2407, %v2405
        %v2409 = vclz %v2408
        %v2410 = vsub.s32 %v2409, 2
        %vm2411 = vcmp.gt.s32.totalorder 0, %v2410
        %v2412 = vsel %vm2411, 0, %v2410
        %v2413 = vsub.s32 32, %v2412
        %v2414 = vshll.u32 %v2405, %v2412
        %v2415 = vshrl.u32 %v2397, %v2413
        %v2416 = vor.u32 %v2414, %v2415
        %v2417 = vsub.s32 4294967266, %v2412
        %v2418 = vadd.s32 %v2417, 127
        %v2419 = vshll.u32 %v2418, 23
        %v2420 = vor.u32 4788187, %v2419
        %v2421 = vand.u32 2147483647, %v2420
        %v2423 = vcvt.s32.f32 %v2416
        %v2424 = vmul.f32 %v2423, %v2421
        %v2425 = vxor.u32 %v2424, 2147483648
        %v2426 = vsel %vm2343, %v2425, %v2424
        %v2427 = vsub.s32 4, %v2403
        %v2428 = vsel %vm2343, %v2427, %v2403
        %v2429 = vsel %vm2342, %v780, %v2426
        %v2430 = vsel %vm2342, 0, %v2428
        %v2431 = vcosq.f32.pop %v2429
        %v2432 = vsinq.f32.pop %v2429
        %vm2433 = vweird.f32 %v780
        %v2434 = vadd.s32 %v2430, 3
        %v2435 = vand.u32 %v2434, 3
        %vm2436 = vcmp.lt.s32.totalorder %v2435, 2
        %vm2437 = vcmp.eq.s32.totalorder %v2435, 0
        %v2438 = vxor.u32 %v2432, 2147483648
        %v2439 = vsel %vm2437, %v2431, %v2438
        %vm2440 = vcmp.eq.s32.totalorder %v2435, 2
        %v2441 = vxor.u32 %v2431, 2147483648
        %v2442 = vsel %vm2440, %v2441, %v2432
        %v2443 = vsel %vm2436, %v2439, %v2442
        %v2444 = vsel %vm2433, nan, %v2443
        %v2445 = vpack.c.bf16 %v988, %v884
        %v2446 = vpack.c.bf16 %v1196, %v1092
        %v2447 = vpack.c.bf16 %v1404, %v1300
        %v2448 = vpack.c.bf16 %v1612, %v1508
        %v2449 = vpack.c.bf16 %v1820, %v1716
        %v2450 = vpack.c.bf16 %v2028, %v1924
        %v2451 = vpack.c.bf16 %v2236, %v2132
        %v2452 = vpack.c.bf16 %v2444, %v2340
        %v2453 = vld [vmem:[#allocation2] sm:$0xf]
        %v2454 = vld [vmem:[#allocation2 + $0x4] sm:$0xf]
        %v2455 = vld [vmem:[#allocation2 + $0x8] sm:$0xf]
        %v2456 = vld [vmem:[#allocation2 + $0xc] sm:$0xf]
        %v2457 = vld [vmem:[#allocation2 + $0x10] sm:$0xf]
        %v2458 = vld [vmem:[#allocation2 + $0x14] sm:$0xf]
        %v2459 = vld [vmem:[#allocation2 + $0x18] sm:$0xf]
        %v2460 = vld [vmem:[#allocation2 + $0x1c] sm:$0xf]
        %v2461 = vld [vmem:[#allocation2 + $0x20] sm:$0xf]
        %v2462 = vld [vmem:[#allocation2 + $0x24] sm:$0xf]
        %v2463 = vld [vmem:[#allocation2 + $0x28] sm:$0xf]
        %v2464 = vld [vmem:[#allocation2 + $0x2c] sm:$0xf]
        %v2465 = vld [vmem:[#allocation2 + $0x30] sm:$0xf]
        %v2466 = vld [vmem:[#allocation2 + $0x34] sm:$0xf]
        %v2467 = vld [vmem:[#allocation2 + $0x38] sm:$0xf]
        %v2468 = vld [vmem:[#allocation2 + $0x3c] sm:$0xf]
        %v2469 = vld [vmem:[%s6] sm:$0x1]
        %v2471 = vlaneseq
        %v2472 = vshrl.u32 %v2471, 7
        %v2473 = vsub.s32 0, %v2472
        %v2474 = vrot.slane %v2469, %v2473
        %v2492 = vunpack.c.l.b16 %v2453
        %v2493 = vunpack.c.l.b16 %v2454
        %v2494 = vunpack.c.l.b16 %v2455
        %v2495 = vunpack.c.l.b16 %v2456
        %v2496 = vunpack.c.l.b16 %v2457
        %v2497 = vunpack.c.l.b16 %v2458
        %v2498 = vunpack.c.l.b16 %v2459
        %v2499 = vunpack.c.l.b16 %v2460
        %v2500 = vunpack.c.l.b16 %v2461
        %v2501 = vunpack.c.l.b16 %v2462
        %v2502 = vunpack.c.l.b16 %v2463
        %v2503 = vunpack.c.l.b16 %v2464
        %v2504 = vunpack.c.l.b16 %v2465
        %v2505 = vunpack.c.l.b16 %v2466
        %v2506 = vunpack.c.l.b16 %v2467
        %v2507 = vunpack.c.l.b16 %v2468
        %v2508 = vpack.c.b16 %v2493, %v2492
        %v2509 = vpack.c.b16 %v2495, %v2494
        %v2510 = vpack.c.b16 %v2497, %v2496
        %v2511 = vpack.c.b16 %v2499, %v2498
        %v2512 = vpack.c.b16 %v2501, %v2500
        %v2513 = vpack.c.b16 %v2503, %v2502
        %v2514 = vpack.c.b16 %v2505, %v2504
        %v2515 = vpack.c.b16 %v2507, %v2506
        %2524 = vmatprep.subr.bf16.mxu0 0
        %2525 = vmatpush1.bf16.msra.mxu0 %v2515
        %2526 = vmatprep.subr.bf16.mxu0 0
        %2527 = vmatpush1.bf16.msra.mxu0 %v2514
        %2528 = vmatprep.subr.bf16.mxu0 0
        %2529 = vmatpush1.bf16.msra.mxu0 %v2513
        %2530 = vmatprep.subr.bf16.mxu0 0
        %2531 = vmatpush1.bf16.msra.mxu0 %v2512
        %2532 = vmatprep.subr.bf16.mxu0 0
        %2533 = vmatpush1.bf16.msra.mxu0 %v2511
        %2534 = vmatprep.subr.bf16.mxu0 0
        %2535 = vmatpush1.bf16.msra.mxu0 %v2510
        %2536 = vmatprep.subr.bf16.mxu0 0
        %2537 = vmatpush1.bf16.msra.mxu0 %v2509
        %2538 = vmatprep.subr.bf16.mxu0 0
        %2539 = vmatpush1.bf16.msra.mxu0 %v2508
        %2540 = vmatprep.subr.bf16.mxu0 0
        %2541 = vmatpush2.bf16.msra.mxu0 0
        %2542 = vmatprep.subr.bf16.mxu0 0
        %2543 = vmatpush2.bf16.msra.mxu0 0
        %2544 = vmatprep.subr.bf16.mxu0 0
        %2545 = vmatpush2.bf16.msra.mxu0 0
        %2546 = vmatprep.subr.bf16.mxu0 0
        %2547 = vmatpush2.bf16.msra.mxu0 0
        %2548 = vmatprep.subr.bf16.mxu0 0
        %2549 = vmatpush2.bf16.msra.mxu0 0
        %2550 = vmatprep.subr.bf16.mxu0 0
        %2551 = vmatpush2.bf16.msra.mxu0 0
        %2552 = vmatprep.subr.bf16.mxu0 0
        %2553 = vmatpush2.bf16.msra.mxu0 0
        %2554 = vmatprep.subr.bf16.mxu0 0
        %2555 = vmatpush2.bf16.msra.mxu0 0
        %2556 = vmatprep.mubr.bf16.mxu0 0
        %2557 = vmatmul.mubr.bf16.gmra.mxu0 %v2445
        %v2558 = vpop.f32.mrf.mxu0
        %v2559 = vadd.f32 %v2474, %v2558
        %v2560 = vpop.f32.mrf.mxu0
        %v2561 = vpop.f32.mrf.mxu0
        %v2562 = vadd.f32 %v2474, %v2561
        %v2563 = vpop.f32.mrf.mxu0
        %2564 = vmatprep.mubr.bf16.mxu0 0
        %2565 = vmatmul.mubr.bf16.gmra.mxu0 %v2446
        %v2566 = vpop.f32.mrf.mxu0
        %v2567 = vadd.f32 %v2474, %v2566
        %v2568 = vpop.f32.mrf.mxu0
        %v2569 = vpop.f32.mrf.mxu0
        %v2570 = vadd.f32 %v2474, %v2569
        %v2571 = vpop.f32.mrf.mxu0
        %2572 = vmatprep.mubr.bf16.mxu0 0
        %2573 = vmatmul.mubr.bf16.gmra.mxu0 %v2447
        %v2574 = vpop.f32.mrf.mxu0
        %v2575 = vadd.f32 %v2474, %v2574
        %v2576 = vpop.f32.mrf.mxu0
        %v2577 = vpop.f32.mrf.mxu0
        %v2578 = vadd.f32 %v2474, %v2577
        %v2579 = vpop.f32.mrf.mxu0
        %2580 = vmatprep.mubr.bf16.mxu0 0
        %2581 = vmatmul.mubr.bf16.gmra.mxu0 %v2448
        %v2582 = vpop.f32.mrf.mxu0
        %v2583 = vadd.f32 %v2474, %v2582
        %v2584 = vpop.f32.mrf.mxu0
        %v2585 = vpop.f32.mrf.mxu0
        %v2586 = vadd.f32 %v2474, %v2585
        %v2587 = vpop.f32.mrf.mxu0
        %2588 = vmatprep.mubr.bf16.mxu0 0
        %2589 = vmatmul.mubr.bf16.gmra.mxu0 %v2449
        %v2590 = vpop.f32.mrf.mxu0
        %v2591 = vadd.f32 %v2474, %v2590
        %v2592 = vpop.f32.mrf.mxu0
        %v2593 = vpop.f32.mrf.mxu0
        %v2594 = vadd.f32 %v2474, %v2593
        %v2595 = vpop.f32.mrf.mxu0
        %2596 = vmatprep.mubr.bf16.mxu0 0
        %2597 = vmatmul.mubr.bf16.gmra.mxu0 %v2450
        %v2598 = vpop.f32.mrf.mxu0
        %v2599 = vadd.f32 %v2474, %v2598
        %v2600 = vpop.f32.mrf.mxu0
        %v2601 = vpop.f32.mrf.mxu0
        %v2602 = vadd.f32 %v2474, %v2601
        %v2603 = vpop.f32.mrf.mxu0
        %2604 = vmatprep.mubr.bf16.mxu0 0
        %2605 = vmatmul.mubr.bf16.gmra.mxu0 %v2451
        %v2606 = vpop.f32.mrf.mxu0
        %v2607 = vadd.f32 %v2474, %v2606
        %v2608 = vpop.f32.mrf.mxu0
        %v2609 = vpop.f32.mrf.mxu0
        %v2610 = vadd.f32 %v2474, %v2609
        %v2611 = vpop.f32.mrf.mxu0
        %2612 = vmatprep.mubr.bf16.mxu0 0
        %2613 = vmatmul.mubr.bf16.gmra.mxu0 %v2452
        %v2614 = vpop.f32.mrf.mxu0
        %v2615 = vadd.f32 %v2474, %v2614
        %v2616 = vpop.f32.mrf.mxu0
        %v2617 = vpop.f32.mrf.mxu0
        %v2618 = vadd.f32 %v2474, %v2617
        %v2619 = vpop.f32.mrf.mxu0
        %2620 = vdwg.mxu0
        %v2621 = vxor.u32 %v2559, 2147483648
        %v2622 = vxor.u32 %v2562, 2147483648
        %v2623 = vxor.u32 %v2567, 2147483648
        %v2624 = vxor.u32 %v2570, 2147483648
        %v2625 = vxor.u32 %v2575, 2147483648
        %v2626 = vxor.u32 %v2578, 2147483648
        %v2627 = vxor.u32 %v2583, 2147483648
        %v2628 = vxor.u32 %v2586, 2147483648
        %v2629 = vxor.u32 %v2591, 2147483648
        %v2630 = vxor.u32 %v2594, 2147483648
        %v2631 = vxor.u32 %v2599, 2147483648
        %v2632 = vxor.u32 %v2602, 2147483648
        %v2633 = vxor.u32 %v2607, 2147483648
        %v2634 = vxor.u32 %v2610, 2147483648
        %v2635 = vxor.u32 %v2615, 2147483648
        %v2636 = vxor.u32 %v2618, 2147483648
        %v2637 = vmul.f32 %v2621, 1.442695
        %v2638 = vpow.pop %v2637
        %v2639 = vmul.f32 %v2622, 1.442695
        %v2640 = vpow.pop %v2639
        %v2641 = vmul.f32 %v2623, 1.442695
        %v2642 = vpow.pop %v2641
        %v2643 = vmul.f32 %v2624, 1.442695
        %v2644 = vpow.pop %v2643
        %v2645 = vmul.f32 %v2625, 1.442695
        %v2646 = vpow.pop %v2645
        %v2647 = vmul.f32 %v2626, 1.442695
        %v2648 = vpow.pop %v2647
        %v2649 = vmul.f32 %v2627, 1.442695
        %v2650 = vpow.pop %v2649
        %v2651 = vmul.f32 %v2628, 1.442695
        %v2652 = vpow.pop %v2651
        %v2653 = vmul.f32 %v2629, 1.442695
        %v2654 = vpow.pop %v2653
        %v2655 = vmul.f32 %v2630, 1.442695
        %v2656 = vpow.pop %v2655
        %v2657 = vmul.f32 %v2631, 1.442695
        %v2658 = vpow.pop %v2657
        %v2659 = vmul.f32 %v2632, 1.442695
        %v2660 = vpow.pop %v2659
        %v2661 = vmul.f32 %v2633, 1.442695
        %v2662 = vpow.pop %v2661
        %v2663 = vmul.f32 %v2634, 1.442695
        %v2664 = vpow.pop %v2663
        %v2665 = vmul.f32 %v2635, 1.442695
        %v2666 = vpow.pop %v2665
        %v2667 = vmul.f32 %v2636, 1.442695
        %v2668 = vpow.pop %v2667
        %v2669 = vadd.f32 %v2638, 1.0
        %v2670 = vadd.f32 %v2640, 1.0
        %v2671 = vadd.f32 %v2642, 1.0
        %v2672 = vadd.f32 %v2644, 1.0
        %v2673 = vadd.f32 %v2646, 1.0
        %v2674 = vadd.f32 %v2648, 1.0
        %v2675 = vadd.f32 %v2650, 1.0
        %v2676 = vadd.f32 %v2652, 1.0
        %v2677 = vadd.f32 %v2654, 1.0
        %v2678 = vadd.f32 %v2656, 1.0
        %v2679 = vadd.f32 %v2658, 1.0
        %v2680 = vadd.f32 %v2660, 1.0
        %v2681 = vadd.f32 %v2662, 1.0
        %v2682 = vadd.f32 %v2664, 1.0
        %v2683 = vadd.f32 %v2666, 1.0
        %v2684 = vadd.f32 %v2668, 1.0
        %v2685 = vrcp.pop %v2669
        %v2686 = vmul.f32 1.0, %v2685
        %v2687 = vrcp.pop %v2670
        %v2688 = vmul.f32 1.0, %v2687
        %v2689 = vrcp.pop %v2671
        %v2690 = vmul.f32 1.0, %v2689
        %v2691 = vrcp.pop %v2672
        %v2692 = vmul.f32 1.0, %v2691
        %v2693 = vrcp.pop %v2673
        %v2694 = vmul.f32 1.0, %v2693
        %v2695 = vrcp.pop %v2674
        %v2696 = vmul.f32 1.0, %v2695
        %v2697 = vrcp.pop %v2675
        %v2698 = vmul.f32 1.0, %v2697
        %v2699 = vrcp.pop %v2676
        %v2700 = vmul.f32 1.0, %v2699
        %v2701 = vrcp.pop %v2677
        %v2702 = vmul.f32 1.0, %v2701
        %v2703 = vrcp.pop %v2678
        %v2704 = vmul.f32 1.0, %v2703
        %v2705 = vrcp.pop %v2679
        %v2706 = vmul.f32 1.0, %v2705
        %v2707 = vrcp.pop %v2680
        %v2708 = vmul.f32 1.0, %v2707
        %v2709 = vrcp.pop %v2681
        %v2710 = vmul.f32 1.0, %v2709
        %v2711 = vrcp.pop %v2682
        %v2712 = vmul.f32 1.0, %v2711
        %v2713 = vrcp.pop %v2683
        %v2714 = vmul.f32 1.0, %v2713
        %v2715 = vrcp.pop %v2684
        %v2716 = vmul.f32 1.0, %v2715
        %v2717 = vmul.f32 %v2559, %v2686
        %v2718 = vmul.f32 %v2562, %v2688
        %v2719 = vmul.f32 %v2567, %v2690
        %v2720 = vmul.f32 %v2570, %v2692
        %v2721 = vmul.f32 %v2575, %v2694
        %v2722 = vmul.f32 %v2578, %v2696
        %v2723 = vmul.f32 %v2583, %v2698
        %v2724 = vmul.f32 %v2586, %v2700
        %v2725 = vmul.f32 %v2591, %v2702
        %v2726 = vmul.f32 %v2594, %v2704
        %v2727 = vmul.f32 %v2599, %v2706
        %v2728 = vmul.f32 %v2602, %v2708
        %v2729 = vmul.f32 %v2607, %v2710
        %v2730 = vmul.f32 %v2610, %v2712
        %v2731 = vmul.f32 %v2615, %v2714
        %v2732 = vmul.f32 %v2618, %v2716
        %v2733 = vpack.c.bf16 %v2718, %v2717
        %v2734 = vpack.c.bf16 %v2720, %v2719
        %v2735 = vpack.c.bf16 %v2722, %v2721
        %v2736 = vpack.c.bf16 %v2724, %v2723
        %v2737 = vpack.c.bf16 %v2726, %v2725
        %v2738 = vpack.c.bf16 %v2728, %v2727
        %v2739 = vpack.c.bf16 %v2730, %v2729
        %v2740 = vpack.c.bf16 %v2732, %v2731
        %v2741 = vld [vmem:[#allocation5] sm:$0xf]
        %v2742 = vld [vmem:[#allocation5 + $0x4] sm:$0xf]
        %v2743 = vld [vmem:[#allocation5 + $0x8] sm:$0xf]
        %v2744 = vld [vmem:[#allocation5 + $0xc] sm:$0xf]
        %v2745 = vld [vmem:[#allocation5 + $0x10] sm:$0xf]
        %v2746 = vld [vmem:[#allocation5 + $0x14] sm:$0xf]
        %v2747 = vld [vmem:[#allocation5 + $0x18] sm:$0xf]
        %v2748 = vld [vmem:[#allocation5 + $0x1c] sm:$0xf]
        %v2749 = vld [vmem:[#allocation5 + $0x20] sm:$0xf]
        %v2750 = vld [vmem:[#allocation5 + $0x24] sm:$0xf]
        %v2751 = vld [vmem:[#allocation5 + $0x28] sm:$0xf]
        %v2752 = vld [vmem:[#allocation5 + $0x2c] sm:$0xf]
        %v2753 = vld [vmem:[#allocation5 + $0x30] sm:$0xf]
        %v2754 = vld [vmem:[#allocation5 + $0x34] sm:$0xf]
        %v2755 = vld [vmem:[#allocation5 + $0x38] sm:$0xf]
        %v2756 = vld [vmem:[#allocation5 + $0x3c] sm:$0xf]
        %v2757 = vld [vmem:[%s8] sm:$0x1]
        %v2759 = vlaneseq
        %v2760 = vshrl.u32 %v2759, 7
        %v2761 = vsub.s32 0, %v2760
        %v2762 = vrot.slane %v2757, %v2761
        %v2780 = vunpack.c.l.b16 %v2741
        %v2781 = vunpack.c.l.b16 %v2742
        %v2782 = vunpack.c.l.b16 %v2743
        %v2783 = vunpack.c.l.b16 %v2744
        %v2784 = vunpack.c.l.b16 %v2745
        %v2785 = vunpack.c.l.b16 %v2746
        %v2786 = vunpack.c.l.b16 %v2747
        %v2787 = vunpack.c.l.b16 %v2748
        %v2788 = vunpack.c.l.b16 %v2749
        %v2789 = vunpack.c.l.b16 %v2750
        %v2790 = vunpack.c.l.b16 %v2751
        %v2791 = vunpack.c.l.b16 %v2752
        %v2792 = vunpack.c.l.b16 %v2753
        %v2793 = vunpack.c.l.b16 %v2754
        %v2794 = vunpack.c.l.b16 %v2755
        %v2795 = vunpack.c.l.b16 %v2756
        %v2796 = vpack.c.b16 %v2781, %v2780
        %v2797 = vpack.c.b16 %v2783, %v2782
        %v2798 = vpack.c.b16 %v2785, %v2784
        %v2799 = vpack.c.b16 %v2787, %v2786
        %v2800 = vpack.c.b16 %v2789, %v2788
        %v2801 = vpack.c.b16 %v2791, %v2790
        %v2802 = vpack.c.b16 %v2793, %v2792
        %v2803 = vpack.c.b16 %v2795, %v2794
        %2812 = vmatprep.subr.bf16.mxu0 0
        %2813 = vmatpush1.bf16.msra.mxu0 %v2803
        %2814 = vmatprep.subr.bf16.mxu0 0
        %2815 = vmatpush1.bf16.msra.mxu0 %v2802
        %2816 = vmatprep.subr.bf16.mxu0 0
        %2817 = vmatpush1.bf16.msra.mxu0 %v2801
        %2818 = vmatprep.subr.bf16.mxu0 0
        %2819 = vmatpush1.bf16.msra.mxu0 %v2800
        %2820 = vmatprep.subr.bf16.mxu0 0
        %2821 = vmatpush1.bf16.msra.mxu0 %v2799
        %2822 = vmatprep.subr.bf16.mxu0 0
        %2823 = vmatpush1.bf16.msra.mxu0 %v2798
        %2824 = vmatprep.subr.bf16.mxu0 0
        %2825 = vmatpush1.bf16.msra.mxu0 %v2797
        %2826 = vmatprep.subr.bf16.mxu0 0
        %2827 = vmatpush1.bf16.msra.mxu0 %v2796
        %2828 = vmatprep.subr.bf16.mxu0 0
        %2829 = vmatpush2.bf16.msra.mxu0 0
        %2830 = vmatprep.subr.bf16.mxu0 0
        %2831 = vmatpush2.bf16.msra.mxu0 0
        %2832 = vmatprep.subr.bf16.mxu0 0
        %2833 = vmatpush2.bf16.msra.mxu0 0
        %2834 = vmatprep.subr.bf16.mxu0 0
        %2835 = vmatpush2.bf16.msra.mxu0 0
        %2836 = vmatprep.subr.bf16.mxu0 0
        %2837 = vmatpush2.bf16.msra.mxu0 0
        %2838 = vmatprep.subr.bf16.mxu0 0
        %2839 = vmatpush2.bf16.msra.mxu0 0
        %2840 = vmatprep.subr.bf16.mxu0 0
        %2841 = vmatpush2.bf16.msra.mxu0 0
        %2842 = vmatprep.subr.bf16.mxu0 0
        %2843 = vmatpush2.bf16.msra.mxu0 0
        %2844 = vmatprep.mubr.bf16.mxu0 0
        %2845 = vmatmul.mubr.bf16.gmra.mxu0 %v2733
        %v2846 = vpop.f32.mrf.mxu0
        %v2847 = vadd.f32 %v2762, %v2846
        %v2848 = vpop.f32.mrf.mxu0
        %v2849 = vpop.f32.mrf.mxu0
        %v2850 = vadd.f32 %v2762, %v2849
        %v2851 = vpop.f32.mrf.mxu0
        %2852 = vmatprep.mubr.bf16.mxu0 0
        %2853 = vmatmul.mubr.bf16.gmra.mxu0 %v2734
        %v2854 = vpop.f32.mrf.mxu0
        %v2855 = vadd.f32 %v2762, %v2854
        %v2856 = vpop.f32.mrf.mxu0
        %v2857 = vpop.f32.mrf.mxu0
        %v2858 = vadd.f32 %v2762, %v2857
        %v2859 = vpop.f32.mrf.mxu0
        %2860 = vmatprep.mubr.bf16.mxu0 0
        %2861 = vmatmul.mubr.bf16.gmra.mxu0 %v2735
        %v2862 = vpop.f32.mrf.mxu0
        %v2863 = vadd.f32 %v2762, %v2862
        %v2864 = vpop.f32.mrf.mxu0
        %v2865 = vpop.f32.mrf.mxu0
        %v2866 = vadd.f32 %v2762, %v2865
        %v2867 = vpop.f32.mrf.mxu0
        %2868 = vmatprep.mubr.bf16.mxu0 0
        %2869 = vmatmul.mubr.bf16.gmra.mxu0 %v2736
        %v2870 = vpop.f32.mrf.mxu0
        %v2871 = vadd.f32 %v2762, %v2870
        %v2872 = vpop.f32.mrf.mxu0
        %v2873 = vpop.f32.mrf.mxu0
        %v2874 = vadd.f32 %v2762, %v2873
        %v2875 = vpop.f32.mrf.mxu0
        %2876 = vmatprep.mubr.bf16.mxu0 0
        %2877 = vmatmul.mubr.bf16.gmra.mxu0 %v2737
        %v2878 = vpop.f32.mrf.mxu0
        %v2879 = vadd.f32 %v2762, %v2878
        %v2880 = vpop.f32.mrf.mxu0
        %v2881 = vpop.f32.mrf.mxu0
        %v2882 = vadd.f32 %v2762, %v2881
        %v2883 = vpop.f32.mrf.mxu0
        %2884 = vmatprep.mubr.bf16.mxu0 0
        %2885 = vmatmul.mubr.bf16.gmra.mxu0 %v2738
        %v2886 = vpop.f32.mrf.mxu0
        %v2887 = vadd.f32 %v2762, %v2886
        %v2888 = vpop.f32.mrf.mxu0
        %v2889 = vpop.f32.mrf.mxu0
        %v2890 = vadd.f32 %v2762, %v2889
        %v2891 = vpop.f32.mrf.mxu0
        %2892 = vmatprep.mubr.bf16.mxu0 0
        %2893 = vmatmul.mubr.bf16.gmra.mxu0 %v2739
        %v2894 = vpop.f32.mrf.mxu0
        %v2895 = vadd.f32 %v2762, %v2894
        %v2896 = vpop.f32.mrf.mxu0
        %v2897 = vpop.f32.mrf.mxu0
        %v2898 = vadd.f32 %v2762, %v2897
        %v2899 = vpop.f32.mrf.mxu0
        %2900 = vmatprep.mubr.bf16.mxu0 0
        %2901 = vmatmul.mubr.bf16.gmra.mxu0 %v2740
        %v2902 = vpop.f32.mrf.mxu0
        %v2903 = vadd.f32 %v2762, %v2902
        %v2904 = vpop.f32.mrf.mxu0
        %v2905 = vpop.f32.mrf.mxu0
        %v2906 = vadd.f32 %v2762, %v2905
        %v2907 = vpop.f32.mrf.mxu0
        %2908 = vdwg.mxu0
        %v2909 = vld [vmem:[%s635] sm:$0xf]
        %v2910 = vld [vmem:[%s635 + $0x4] sm:$0xf]
        %v2911 = vld [vmem:[%s635 + $0x8] sm:$0xf]
        %v2912 = vld [vmem:[%s635 + $0xc] sm:$0xf]
        %v2913 = vld [vmem:[%s635 + $0x10] sm:$0xf]
        %v2914 = vld [vmem:[%s635 + $0x14] sm:$0xf]
        %v2915 = vld [vmem:[%s635 + $0x18] sm:$0xf]
        %v2916 = vld [vmem:[%s635 + $0x1c] sm:$0xf]
        %v2917 = vld [vmem:[%s635 + $0x20] sm:$0xf]
        %v2918 = vld [vmem:[%s635 + $0x24] sm:$0xf]
        %v2919 = vld [vmem:[%s635 + $0x28] sm:$0xf]
        %v2920 = vld [vmem:[%s635 + $0x2c] sm:$0xf]
        %v2921 = vld [vmem:[%s635 + $0x30] sm:$0xf]
        %v2922 = vld [vmem:[%s635 + $0x34] sm:$0xf]
        %v2923 = vld [vmem:[%s635 + $0x38] sm:$0xf]
        %v2924 = vld [vmem:[%s635 + $0x3c] sm:$0xf]
        %v2925 = vunpack.c.l.bf16 %v2909
        %v2926 = vunpack.c.l.bf16 %v2910
        %v2927 = vunpack.c.l.bf16 %v2911
        %v2928 = vunpack.c.l.bf16 %v2912
        %v2929 = vunpack.c.l.bf16 %v2913
        %v2930 = vunpack.c.l.bf16 %v2914
        %v2931 = vunpack.c.l.bf16 %v2915
        %v2932 = vunpack.c.l.bf16 %v2916
        %v2933 = vunpack.c.l.bf16 %v2917
        %v2934 = vunpack.c.l.bf16 %v2918
        %v2935 = vunpack.c.l.bf16 %v2919
        %v2936 = vunpack.c.l.bf16 %v2920
        %v2937 = vunpack.c.l.bf16 %v2921
        %v2938 = vunpack.c.l.bf16 %v2922
        %v2939 = vunpack.c.l.bf16 %v2923
        %v2940 = vunpack.c.l.bf16 %v2924
        %v2941 = vadd.f32 %v2847, %v2925
        %v2942 = vadd.f32 %v2850, %v2926
        %v2943 = vadd.f32 %v2855, %v2927
        %v2944 = vadd.f32 %v2858, %v2928
        %v2945 = vadd.f32 %v2863, %v2929
        %v2946 = vadd.f32 %v2866, %v2930
        %v2947 = vadd.f32 %v2871, %v2931
        %v2948 = vadd.f32 %v2874, %v2932
        %v2949 = vadd.f32 %v2879, %v2933
        %v2950 = vadd.f32 %v2882, %v2934
        %v2951 = vadd.f32 %v2887, %v2935
        %v2952 = vadd.f32 %v2890, %v2936
        %v2953 = vadd.f32 %v2895, %v2937
        %v2954 = vadd.f32 %v2898, %v2938
        %v2955 = vadd.f32 %v2903, %v2939
        %v2956 = vadd.f32 %v2906, %v2940
        %v2957 = vld [vmem:[%s623] sm:$0xf]
        %v2958 = vld [vmem:[%s623 + $0x4] sm:$0xf]
        %v2959 = vld [vmem:[%s623 + $0x8] sm:$0xf]
        %v2960 = vld [vmem:[%s623 + $0xc] sm:$0xf]
        %v2961 = vld [vmem:[%s623 + $0x10] sm:$0xf]
        %v2962 = vld [vmem:[%s623 + $0x14] sm:$0xf]
        %v2963 = vld [vmem:[%s623 + $0x18] sm:$0xf]
        %v2964 = vld [vmem:[%s623 + $0x1c] sm:$0xf]
        %v2965 = vld [vmem:[%s623 + $0x20] sm:$0xf]
        %v2966 = vld [vmem:[%s623 + $0x24] sm:$0xf]
        %v2967 = vld [vmem:[%s623 + $0x28] sm:$0xf]
        %v2968 = vld [vmem:[%s623 + $0x2c] sm:$0xf]
        %v2969 = vld [vmem:[%s623 + $0x30] sm:$0xf]
        %v2970 = vld [vmem:[%s623 + $0x34] sm:$0xf]
        %v2971 = vld [vmem:[%s623 + $0x38] sm:$0xf]
        %v2972 = vld [vmem:[%s623 + $0x3c] sm:$0xf]
        %v2973 = vld [vmem:[%s9] sm:$0xf]
        %v2974 = vld [vmem:[%s9 + $0x4] sm:$0xf]
        %v2975 = vld [vmem:[%s9 + $0x8] sm:$0xf]
        %v2976 = vld [vmem:[%s10] sm:$0x1]
        %v2978 = vlaneseq
        %v2979 = vshrl.u32 %v2978, 7
        %v2980 = vsub.s32 0, %v2979
        %v2981 = vrot.slane %v2976, %v2980
        %v2999 = vunpack.c.l.b16 %v2957
        %v3000 = vunpack.c.l.b16 %v2958
        %v3001 = vunpack.c.l.b16 %v2959
        %v3002 = vunpack.c.l.b16 %v2960
        %v3003 = vunpack.c.l.b16 %v2961
        %v3004 = vunpack.c.l.b16 %v2962
        %v3005 = vunpack.c.l.b16 %v2963
        %v3006 = vunpack.c.l.b16 %v2964
        %v3007 = vunpack.c.l.b16 %v2965
        %v3008 = vunpack.c.l.b16 %v2966
        %v3009 = vunpack.c.l.b16 %v2967
        %v3010 = vunpack.c.l.b16 %v2968
        %v3011 = vunpack.c.l.b16 %v2969
        %v3012 = vunpack.c.l.b16 %v2970
        %v3013 = vunpack.c.l.b16 %v2971
        %v3014 = vunpack.c.l.b16 %v2972
        %v3015 = vpack.c.b16 %v3000, %v2999
        %v3016 = vpack.c.b16 %v3002, %v3001
        %v3017 = vpack.c.b16 %v3004, %v3003
        %v3018 = vpack.c.b16 %v3006, %v3005
        %v3019 = vpack.c.b16 %v3008, %v3007
        %v3020 = vpack.c.b16 %v3010, %v3009
        %v3021 = vpack.c.b16 %v3012, %v3011
        %v3022 = vpack.c.b16 %v3014, %v3013
        %v3026 = vunpack.c.l.b16 %v2973
        %v3027 = vunpack.c.l.b16 %v2974
        %v3028 = vunpack.c.l.b16 %v2975
        %v3029 = vpack.c.b16 %v3027, %v3026
        %v3030 = vpack.c.b16 %v3028, %v3028
        %vm3032 = vcmask 195584
        %v3034 = vsel %vm3032, %v3015, 0
        %v3037 = vsel %vm3032, %v3016, 0
        %v3040 = vsel %vm3032, %v3017, 0
        %v3043 = vsel %vm3032, %v3018, 0
        %v3046 = vsel %vm3032, %v3019, 0
        %v3049 = vsel %vm3032, %v3020, 0
        %v3052 = vsel %vm3032, %v3021, 0
        %v3055 = vsel %vm3032, %v3022, 0
        %vm3057 = vcmask 1043456
        %v3059 = vsel %vm3057, %v3030, 0
        %3061 = vmatprep.subr.bf16.mxu0 0
        %3062 = vmatpush1.bf16.msra.mxu0 0
        %3063 = vmatprep.subr.bf16.mxu0 0
        %3064 = vmatpush1.bf16.msra.mxu0 0
        %3065 = vmatprep.subr.bf16.mxu0 0
        %3066 = vmatpush1.bf16.msra.mxu0 0
        %3067 = vmatprep.subr.bf16.mxu0 0
        %3068 = vmatpush1.bf16.msra.mxu0 0
        %3069 = vmatprep.subr.bf16.mxu0 0
        %3070 = vmatpush1.bf16.msra.mxu0 0
        %3071 = vmatprep.subr.bf16.mxu0 0
        %3072 = vmatpush1.bf16.msra.mxu0 0
        %3073 = vmatprep.subr.bf16.mxu0 0
        %3074 = vmatpush1.bf16.msra.mxu0 %v3059
        %3075 = vmatprep.subr.bf16.mxu0 0
        %3076 = vmatpush1.bf16.msra.mxu0 %v3029
        %3077 = vmatprep.subr.bf16.mxu0 0
        %3078 = vmatpush2.bf16.msra.mxu0 0
        %3079 = vmatprep.subr.bf16.mxu0 0
        %3080 = vmatpush2.bf16.msra.mxu0 0
        %3081 = vmatprep.subr.bf16.mxu0 0
        %3082 = vmatpush2.bf16.msra.mxu0 0
        %3083 = vmatprep.subr.bf16.mxu0 0
        %3084 = vmatpush2.bf16.msra.mxu0 0
        %3085 = vmatprep.subr.bf16.mxu0 0
        %3086 = vmatpush2.bf16.msra.mxu0 0
        %3087 = vmatprep.subr.bf16.mxu0 0
        %3088 = vmatpush2.bf16.msra.mxu0 0
        %3089 = vmatprep.subr.bf16.mxu0 0
        %3090 = vmatpush2.bf16.msra.mxu0 0
        %3091 = vmatprep.subr.bf16.mxu0 0
        %3092 = vmatpush2.bf16.msra.mxu0 0
        %3093 = vmatprep.mubr.bf16.mxu0 0
        %3094 = vmatmul.mubr.bf16.gmra.mxu0 %v3034
        %v3095 = vpop.f32.mrf.mxu0
        %v3096 = vadd.f32 %v2981, %v3095
        %v3097 = vpop.f32.mrf.mxu0
        %v3098 = vpop.f32.mrf.mxu0
        %v3099 = vadd.f32 %v2981, %v3098
        %v3100 = vpop.f32.mrf.mxu0
        %3101 = vmatprep.mubr.bf16.mxu0 0
        %3102 = vmatmul.mubr.bf16.gmra.mxu0 %v3037
        %v3103 = vpop.f32.mrf.mxu0
        %v3104 = vadd.f32 %v2981, %v3103
        %v3105 = vpop.f32.mrf.mxu0
        %v3106 = vpop.f32.mrf.mxu0
        %v3107 = vadd.f32 %v2981, %v3106
        %v3108 = vpop.f32.mrf.mxu0
        %3109 = vmatprep.mubr.bf16.mxu0 0
        %3110 = vmatmul.mubr.bf16.gmra.mxu0 %v3040
        %v3111 = vpop.f32.mrf.mxu0
        %v3112 = vadd.f32 %v2981, %v3111
        %v3113 = vpop.f32.mrf.mxu0
        %v3114 = vpop.f32.mrf.mxu0
        %v3115 = vadd.f32 %v2981, %v3114
        %v3116 = vpop.f32.mrf.mxu0
        %3117 = vmatprep.mubr.bf16.mxu0 0
        %3118 = vmatmul.mubr.bf16.gmra.mxu0 %v3043
        %v3119 = vpop.f32.mrf.mxu0
        %v3120 = vadd.f32 %v2981, %v3119
        %v3121 = vpop.f32.mrf.mxu0
        %v3122 = vpop.f32.mrf.mxu0
        %v3123 = vadd.f32 %v2981, %v3122
        %v3124 = vpop.f32.mrf.mxu0
        %3125 = vmatprep.mubr.bf16.mxu0 0
        %3126 = vmatmul.mubr.bf16.gmra.mxu0 %v3046
        %v3127 = vpop.f32.mrf.mxu0
        %v3128 = vadd.f32 %v2981, %v3127
        %v3129 = vpop.f32.mrf.mxu0
        %v3130 = vpop.f32.mrf.mxu0
        %v3131 = vadd.f32 %v2981, %v3130
        %v3132 = vpop.f32.mrf.mxu0
        %3133 = vmatprep.mubr.bf16.mxu0 0
        %3134 = vmatmul.mubr.bf16.gmra.mxu0 %v3049
        %v3135 = vpop.f32.mrf.mxu0
        %v3136 = vadd.f32 %v2981, %v3135
        %v3137 = vpop.f32.mrf.mxu0
        %v3138 = vpop.f32.mrf.mxu0
        %v3139 = vadd.f32 %v2981, %v3138
        %v3140 = vpop.f32.mrf.mxu0
        %3141 = vmatprep.mubr.bf16.mxu0 0
        %3142 = vmatmul.mubr.bf16.gmra.mxu0 %v3052
        %v3143 = vpop.f32.mrf.mxu0
        %v3144 = vadd.f32 %v2981, %v3143
        %v3145 = vpop.f32.mrf.mxu0
        %v3146 = vpop.f32.mrf.mxu0
        %v3147 = vadd.f32 %v2981, %v3146
        %v3148 = vpop.f32.mrf.mxu0
        %3149 = vmatprep.mubr.bf16.mxu0 0
        %3150 = vmatmul.mubr.bf16.gmra.mxu0 %v3055
        %v3151 = vpop.f32.mrf.mxu0
        %v3152 = vadd.f32 %v2981, %v3151
        %v3153 = vpop.f32.mrf.mxu0
        %v3154 = vpop.f32.mrf.mxu0
        %v3155 = vadd.f32 %v2981, %v3154
        %v3156 = vpop.f32.mrf.mxu0
        %3157 = vdwg.mxu0
        %v3158 = vadd.f32 %v3096, %v2941
        %v3159 = vadd.f32 %v3099, %v2942
        %v3160 = vadd.f32 %v3104, %v2943
        %v3161 = vadd.f32 %v3107, %v2944
        %v3162 = vadd.f32 %v3112, %v2945
        %v3163 = vadd.f32 %v3115, %v2946
        %v3164 = vadd.f32 %v3120, %v2947
        %v3165 = vadd.f32 %v3123, %v2948
        %v3166 = vadd.f32 %v3128, %v2949
        %v3167 = vadd.f32 %v3131, %v2950
        %v3168 = vadd.f32 %v3136, %v2951
        %v3169 = vadd.f32 %v3139, %v2952
        %v3170 = vadd.f32 %v3144, %v2953
        %v3171 = vadd.f32 %v3147, %v2954
        %v3172 = vadd.f32 %v3152, %v2955
        %v3173 = vadd.f32 %v3155, %v2956
        %v3174 = vpack.c.bf16 %v3159, %v3158
        %v3175 = vpack.c.bf16 %v3161, %v3160
        %v3176 = vpack.c.bf16 %v3163, %v3162
        %v3177 = vpack.c.bf16 %v3165, %v3164
        %v3178 = vpack.c.bf16 %v3167, %v3166
        %v3179 = vpack.c.bf16 %v3169, %v3168
        %v3180 = vpack.c.bf16 %v3171, %v3170
        %v3181 = vpack.c.bf16 %v3173, %v3172
        %v3182 = vld [vmem:[%s11] sm:$0xff]
        %v3183 = vld [vmem:[%s11 + $0x8] sm:$0xff]
        %v3184 = vld [vmem:[%s11 + $0x10] sm:$0xff]
        %v3185 = vld [vmem:[%s11 + $0x18] sm:$0xff]
        %v3186 = vld [vmem:[%s11 + $0x20] sm:$0xff]
        %v3187 = vld [vmem:[%s11 + $0x28] sm:$0xff]
        %v3188 = vld [vmem:[%s11 + $0x30] sm:$0xff]
        %v3189 = vld [vmem:[%s11 + $0x38] sm:$0xff]
        %v3190 = vld [vmem:[%s11 + $0x40] sm:$0xff]
        %v3191 = vld [vmem:[%s11 + $0x48] sm:$0xff]
        %v3192 = vld [vmem:[%s11 + $0x50] sm:$0xff]
        %v3193 = vld [vmem:[%s11 + $0x58] sm:$0xff]
        %v3194 = vld [vmem:[%s11 + $0x60] sm:$0xff]
        %v3195 = vld [vmem:[%s11 + $0x68] sm:$0xff]
        %v3196 = vld [vmem:[%s11 + $0x70] sm:$0xff]
        %v3197 = vld [vmem:[%s11 + $0x78] sm:$0xff]
        %v3198 = vld [vmem:[%s12] sm:$0x3]
        %v3200 = vlaneseq
        %v3201 = vshrl.u32 %v3200, 7
        %v3202 = vsub.s32 0, %v3201
        %v3203 = vrot.slane %v3198, %v3202
        %v3204 = vlaneseq
        %v3205 = vshrl.u32 %v3204, 7
        %v3206 = vsub.s32 1, %v3205
        %v3207 = vrot.slane %v3198, %v3206
        %v3226 = vunpack.c.l.b16 %v3182
        %v3227 = vunpack.c.h.b16 %v3182
        %v3228 = vunpack.c.l.b16 %v3183
        %v3229 = vunpack.c.h.b16 %v3183
        %v3230 = vunpack.c.l.b16 %v3184
        %v3231 = vunpack.c.h.b16 %v3184
        %v3232 = vunpack.c.l.b16 %v3185
        %v3233 = vunpack.c.h.b16 %v3185
        %v3234 = vunpack.c.l.b16 %v3186
        %v3235 = vunpack.c.h.b16 %v3186
        %v3236 = vunpack.c.l.b16 %v3187
        %v3237 = vunpack.c.h.b16 %v3187
        %v3238 = vunpack.c.l.b16 %v3188
        %v3239 = vunpack.c.h.b16 %v3188
        %v3240 = vunpack.c.l.b16 %v3189
        %v3241 = vunpack.c.h.b16 %v3189
        %v3242 = vunpack.c.l.b16 %v3190
        %v3243 = vunpack.c.h.b16 %v3190
        %v3244 = vunpack.c.l.b16 %v3191
        %v3245 = vunpack.c.h.b16 %v3191
        %v3246 = vunpack.c.l.b16 %v3192
        %v3247 = vunpack.c.h.b16 %v3192
        %v3248 = vunpack.c.l.b16 %v3193
        %v3249 = vunpack.c.h.b16 %v3193
        %v3250 = vunpack.c.l.b16 %v3194
        %v3251 = vunpack.c.h.b16 %v3194
        %v3252 = vunpack.c.l.b16 %v3195
        %v3253 = vunpack.c.h.b16 %v3195
        %v3254 = vunpack.c.l.b16 %v3196
        %v3255 = vunpack.c.h.b16 %v3196
        %v3256 = vunpack.c.l.b16 %v3197
        %v3257 = vunpack.c.h.b16 %v3197
        %v3258 = vpack.c.b16 %v3228, %v3226
        %v3259 = vpack.c.b16 %v3229, %v3227
        %v3260 = vpack.c.b16 %v3232, %v3230
        %v3261 = vpack.c.b16 %v3233, %v3231
        %v3262 = vpack.c.b16 %v3236, %v3234
        %v3263 = vpack.c.b16 %v3237, %v3235
        %v3264 = vpack.c.b16 %v3240, %v3238
        %v3265 = vpack.c.b16 %v3241, %v3239
        %v3266 = vpack.c.b16 %v3244, %v3242
        %v3267 = vpack.c.b16 %v3245, %v3243
        %v3268 = vpack.c.b16 %v3248, %v3246
        %v3269 = vpack.c.b16 %v3249, %v3247
        %v3270 = vpack.c.b16 %v3252, %v3250
        %v3271 = vpack.c.b16 %v3253, %v3251
        %v3272 = vpack.c.b16 %v3256, %v3254
        %v3273 = vpack.c.b16 %v3257, %v3255
        %3290 = vmatprep.subr.bf16.mxu0 %v3273
        %3291 = vmatpush1.bf16.msra.mxu0 %v3272
        %3292 = vmatprep.subr.bf16.mxu0 %v3271
        %3293 = vmatpush1.bf16.msra.mxu0 %v3270
        %3294 = vmatprep.subr.bf16.mxu0 %v3269
        %3295 = vmatpush1.bf16.msra.mxu0 %v3268
        %3296 = vmatprep.subr.bf16.mxu0 %v3267
        %3297 = vmatpush1.bf16.msra.mxu0 %v3266
        %3298 = vmatprep.subr.bf16.mxu0 %v3265
        %3299 = vmatpush1.bf16.msra.mxu0 %v3264
        %3300 = vmatprep.subr.bf16.mxu0 %v3263
        %3301 = vmatpush1.bf16.msra.mxu0 %v3262
        %3302 = vmatprep.subr.bf16.mxu0 %v3261
        %3303 = vmatpush1.bf16.msra.mxu0 %v3260
        %3304 = vmatprep.subr.bf16.mxu0 %v3259
        %3305 = vmatpush1.bf16.msra.mxu0 %v3258
        %3306 = vmatprep.subr.bf16.mxu0 0
        %3307 = vmatpush2.bf16.msra.mxu0 0
        %3308 = vmatprep.subr.bf16.mxu0 0
        %3309 = vmatpush2.bf16.msra.mxu0 0
        %3310 = vmatprep.subr.bf16.mxu0 0
        %3311 = vmatpush2.bf16.msra.mxu0 0
        %3312 = vmatprep.subr.bf16.mxu0 0
        %3313 = vmatpush2.bf16.msra.mxu0 0
        %3314 = vmatprep.subr.bf16.mxu0 0
        %3315 = vmatpush2.bf16.msra.mxu0 0
        %3316 = vmatprep.subr.bf16.mxu0 0
        %3317 = vmatpush2.bf16.msra.mxu0 0
        %3318 = vmatprep.subr.bf16.mxu0 0
        %3319 = vmatpush2.bf16.msra.mxu0 0
        %3320 = vmatprep.subr.bf16.mxu0 0
        %3321 = vmatpush2.bf16.msra.mxu0 0
        %3322 = vmatprep.mubr.bf16.mxu0 0
        %3323 = vmatmul.mubr.bf16.gmra.mxu0 %v3174
        %v3324 = vpop.f32.mrf.mxu0
        %v3325 = vadd.f32 %v3203, %v3324
        %v3326 = vpop.f32.mrf.mxu0
        %v3327 = vadd.f32 %v3207, %v3326
        %v3328 = vpop.f32.mrf.mxu0
        %v3329 = vadd.f32 %v3203, %v3328
        %v3330 = vpop.f32.mrf.mxu0
        %v3331 = vadd.f32 %v3207, %v3330
        %3332 = vmatprep.mubr.bf16.mxu0 0
        %3333 = vmatmul.mubr.bf16.gmra.mxu0 %v3175
        %v3334 = vpop.f32.mrf.mxu0
        %v3335 = vadd.f32 %v3203, %v3334
        %v3336 = vpop.f32.mrf.mxu0
        %v3337 = vadd.f32 %v3207, %v3336
        %v3338 = vpop.f32.mrf.mxu0
        %v3339 = vadd.f32 %v3203, %v3338
        %v3340 = vpop.f32.mrf.mxu0
        %v3341 = vadd.f32 %v3207, %v3340
        %3342 = vmatprep.mubr.bf16.mxu0 0
        %3343 = vmatmul.mubr.bf16.gmra.mxu0 %v3176
        %v3344 = vpop.f32.mrf.mxu0
        %v3345 = vadd.f32 %v3203, %v3344
        %v3346 = vpop.f32.mrf.mxu0
        %v3347 = vadd.f32 %v3207, %v3346
        %v3348 = vpop.f32.mrf.mxu0
        %v3349 = vadd.f32 %v3203, %v3348
        %v3350 = vpop.f32.mrf.mxu0
        %v3351 = vadd.f32 %v3207, %v3350
        %3352 = vmatprep.mubr.bf16.mxu0 0
        %3353 = vmatmul.mubr.bf16.gmra.mxu0 %v3177
        %v3354 = vpop.f32.mrf.mxu0
        %v3355 = vadd.f32 %v3203, %v3354
        %v3356 = vpop.f32.mrf.mxu0
        %v3357 = vadd.f32 %v3207, %v3356
        %v3358 = vpop.f32.mrf.mxu0
        %v3359 = vadd.f32 %v3203, %v3358
        %v3360 = vpop.f32.mrf.mxu0
        %v3361 = vadd.f32 %v3207, %v3360
        %3362 = vmatprep.mubr.bf16.mxu0 0
        %3363 = vmatmul.mubr.bf16.gmra.mxu0 %v3178
        %v3364 = vpop.f32.mrf.mxu0
        %v3365 = vadd.f32 %v3203, %v3364
        %v3366 = vpop.f32.mrf.mxu0
        %v3367 = vadd.f32 %v3207, %v3366
        %v3368 = vpop.f32.mrf.mxu0
        %v3369 = vadd.f32 %v3203, %v3368
        %v3370 = vpop.f32.mrf.mxu0
        %v3371 = vadd.f32 %v3207, %v3370
        %3372 = vmatprep.mubr.bf16.mxu0 0
        %3373 = vmatmul.mubr.bf16.gmra.mxu0 %v3179
        %v3374 = vpop.f32.mrf.mxu0
        %v3375 = vadd.f32 %v3203, %v3374
        %v3376 = vpop.f32.mrf.mxu0
        %v3377 = vadd.f32 %v3207, %v3376
        %v3378 = vpop.f32.mrf.mxu0
        %v3379 = vadd.f32 %v3203, %v3378
        %v3380 = vpop.f32.mrf.mxu0
        %v3381 = vadd.f32 %v3207, %v3380
        %3382 = vmatprep.mubr.bf16.mxu0 0
        %3383 = vmatmul.mubr.bf16.gmra.mxu0 %v3180
        %v3384 = vpop.f32.mrf.mxu0
        %v3385 = vadd.f32 %v3203, %v3384
        %v3386 = vpop.f32.mrf.mxu0
        %v3387 = vadd.f32 %v3207, %v3386
        %v3388 = vpop.f32.mrf.mxu0
        %v3389 = vadd.f32 %v3203, %v3388
        %v3390 = vpop.f32.mrf.mxu0
        %v3391 = vadd.f32 %v3207, %v3390
        %3392 = vmatprep.mubr.bf16.mxu0 0
        %3393 = vmatmul.mubr.bf16.gmra.mxu0 %v3181
        %v3394 = vpop.f32.mrf.mxu0
        %v3395 = vadd.f32 %v3203, %v3394
        %v3396 = vpop.f32.mrf.mxu0
        %v3397 = vadd.f32 %v3207, %v3396
        %v3398 = vpop.f32.mrf.mxu0
        %v3399 = vadd.f32 %v3203, %v3398
        %v3400 = vpop.f32.mrf.mxu0
        %v3401 = vadd.f32 %v3207, %v3400
        %3402 = vdwg.mxu0
        %v3403 = vmax.f32 %v3325, 0.0
        %v3404 = vmax.f32 %v3327, 0.0
        %v3405 = vmax.f32 %v3329, 0.0
        %v3406 = vmax.f32 %v3331, 0.0
        %v3407 = vmax.f32 %v3335, 0.0
        %v3408 = vmax.f32 %v3337, 0.0
        %v3409 = vmax.f32 %v3339, 0.0
        %v3410 = vmax.f32 %v3341, 0.0
        %v3411 = vmax.f32 %v3345, 0.0
        %v3412 = vmax.f32 %v3347, 0.0
        %v3413 = vmax.f32 %v3349, 0.0
        %v3414 = vmax.f32 %v3351, 0.0
        %v3415 = vmax.f32 %v3355, 0.0
        %v3416 = vmax.f32 %v3357, 0.0
        %v3417 = vmax.f32 %v3359, 0.0
        %v3418 = vmax.f32 %v3361, 0.0
        %v3419 = vmax.f32 %v3365, 0.0
        %v3420 = vmax.f32 %v3367, 0.0
        %v3421 = vmax.f32 %v3369, 0.0
        %v3422 = vmax.f32 %v3371, 0.0
        %v3423 = vmax.f32 %v3375, 0.0
        %v3424 = vmax.f32 %v3377, 0.0
        %v3425 = vmax.f32 %v3379, 0.0
        %v3426 = vmax.f32 %v3381, 0.0
        %v3427 = vmax.f32 %v3385, 0.0
        %v3428 = vmax.f32 %v3387, 0.0
        %v3429 = vmax.f32 %v3389, 0.0
        %v3430 = vmax.f32 %v3391, 0.0
        %v3431 = vmax.f32 %v3395, 0.0
        %v3432 = vmax.f32 %v3397, 0.0
        %v3433 = vmax.f32 %v3399, 0.0
        %v3434 = vmax.f32 %v3401, 0.0
        %v3435 = vpack.c.bf16 %v3405, %v3403
        %v3436 = vpack.c.bf16 %v3406, %v3404
        %v3437 = vpack.c.bf16 %v3409, %v3407
        %v3438 = vpack.c.bf16 %v3410, %v3408
        %v3439 = vpack.c.bf16 %v3413, %v3411
        %v3440 = vpack.c.bf16 %v3414, %v3412
        %v3441 = vpack.c.bf16 %v3417, %v3415
        %v3442 = vpack.c.bf16 %v3418, %v3416
        %v3443 = vpack.c.bf16 %v3421, %v3419
        %v3444 = vpack.c.bf16 %v3422, %v3420
        %v3445 = vpack.c.bf16 %v3425, %v3423
        %v3446 = vpack.c.bf16 %v3426, %v3424
        %v3447 = vpack.c.bf16 %v3429, %v3427
        %v3448 = vpack.c.bf16 %v3430, %v3428
        %v3449 = vpack.c.bf16 %v3433, %v3431
        %v3450 = vpack.c.bf16 %v3434, %v3432
        %v3451 = vld [vmem:[%s13] sm:$0xff]
        %v3452 = vld [vmem:[%s13 + $0x8] sm:$0xff]
        %v3453 = vld [vmem:[%s13 + $0x10] sm:$0xff]
        %v3454 = vld [vmem:[%s13 + $0x18] sm:$0xff]
        %v3455 = vld [vmem:[%s13 + $0x20] sm:$0xff]
        %v3456 = vld [vmem:[%s13 + $0x28] sm:$0xff]
        %v3457 = vld [vmem:[%s13 + $0x30] sm:$0xff]
        %v3458 = vld [vmem:[%s13 + $0x38] sm:$0xff]
        %v3459 = vld [vmem:[%s13 + $0x40] sm:$0xff]
        %v3460 = vld [vmem:[%s13 + $0x48] sm:$0xff]
        %v3461 = vld [vmem:[%s13 + $0x50] sm:$0xff]
        %v3462 = vld [vmem:[%s13 + $0x58] sm:$0xff]
        %v3463 = vld [vmem:[%s13 + $0x60] sm:$0xff]
        %v3464 = vld [vmem:[%s13 + $0x68] sm:$0xff]
        %v3465 = vld [vmem:[%s13 + $0x70] sm:$0xff]
        %v3466 = vld [vmem:[%s13 + $0x78] sm:$0xff]
        %v3467 = vld [vmem:[%s13 + $0x80] sm:$0xff]
        %v3468 = vld [vmem:[%s13 + $0x88] sm:$0xff]
        %v3469 = vld [vmem:[%s13 + $0x90] sm:$0xff]
        %v3470 = vld [vmem:[%s13 + $0x98] sm:$0xff]
        %v3471 = vld [vmem:[%s13 + $0xa0] sm:$0xff]
        %v3472 = vld [vmem:[%s13 + $0xa8] sm:$0xff]
        %v3473 = vld [vmem:[%s13 + $0xb0] sm:$0xff]
        %v3474 = vld [vmem:[%s13 + $0xb8] sm:$0xff]
        %v3475 = vld [vmem:[%s13 + $0xc0] sm:$0xff]
        %v3476 = vld [vmem:[%s13 + $0xc8] sm:$0xff]
        %v3477 = vld [vmem:[%s13 + $0xd0] sm:$0xff]
        %v3478 = vld [vmem:[%s13 + $0xd8] sm:$0xff]
        %v3479 = vld [vmem:[%s13 + $0xe0] sm:$0xff]
        %v3480 = vld [vmem:[%s13 + $0xe8] sm:$0xff]
        %v3481 = vld [vmem:[%s13 + $0xf0] sm:$0xff]
        %v3482 = vld [vmem:[%s13 + $0xf8] sm:$0xff]
        %v3483 = vld [vmem:[%s14] sm:$0x3]
        %v3485 = vlaneseq
        %v3486 = vshrl.u32 %v3485, 7
        %v3487 = vsub.s32 0, %v3486
        %v3488 = vrot.slane %v3483, %v3487
        %v3489 = vlaneseq
        %v3490 = vshrl.u32 %v3489, 7
        %v3491 = vsub.s32 1, %v3490
        %v3492 = vrot.slane %v3483, %v3491
        %v3527 = vunpack.c.l.b16 %v3451
        %v3528 = vunpack.c.h.b16 %v3451
        %v3529 = vunpack.c.l.b16 %v3452
        %v3530 = vunpack.c.h.b16 %v3452
        %v3531 = vunpack.c.l.b16 %v3453
        %v3532 = vunpack.c.h.b16 %v3453
        %v3533 = vunpack.c.l.b16 %v3454
        %v3534 = vunpack.c.h.b16 %v3454
        %v3535 = vunpack.c.l.b16 %v3455
        %v3536 = vunpack.c.h.b16 %v3455
        %v3537 = vunpack.c.l.b16 %v3456
        %v3538 = vunpack.c.h.b16 %v3456
        %v3539 = vunpack.c.l.b16 %v3457
        %v3540 = vunpack.c.h.b16 %v3457
        %v3541 = vunpack.c.l.b16 %v3458
        %v3542 = vunpack.c.h.b16 %v3458
        %v3543 = vunpack.c.l.b16 %v3459
        %v3544 = vunpack.c.h.b16 %v3459
        %v3545 = vunpack.c.l.b16 %v3460
        %v3546 = vunpack.c.h.b16 %v3460
        %v3547 = vunpack.c.l.b16 %v3461
        %v3548 = vunpack.c.h.b16 %v3461
        %v3549 = vunpack.c.l.b16 %v3462
        %v3550 = vunpack.c.h.b16 %v3462
        %v3551 = vunpack.c.l.b16 %v3463
        %v3552 = vunpack.c.h.b16 %v3463
        %v3553 = vunpack.c.l.b16 %v3464
        %v3554 = vunpack.c.h.b16 %v3464
        %v3555 = vunpack.c.l.b16 %v3465
        %v3556 = vunpack.c.h.b16 %v3465
        %v3557 = vunpack.c.l.b16 %v3466
        %v3558 = vunpack.c.h.b16 %v3466
        %v3559 = vunpack.c.l.b16 %v3467
        %v3560 = vunpack.c.h.b16 %v3467
        %v3561 = vunpack.c.l.b16 %v3468
        %v3562 = vunpack.c.h.b16 %v3468
        %v3563 = vunpack.c.l.b16 %v3469
        %v3564 = vunpack.c.h.b16 %v3469
        %v3565 = vunpack.c.l.b16 %v3470
        %v3566 = vunpack.c.h.b16 %v3470
        %v3567 = vunpack.c.l.b16 %v3471
        %v3568 = vunpack.c.h.b16 %v3471
        %v3569 = vunpack.c.l.b16 %v3472
        %v3570 = vunpack.c.h.b16 %v3472
        %v3571 = vunpack.c.l.b16 %v3473
        %v3572 = vunpack.c.h.b16 %v3473
        %v3573 = vunpack.c.l.b16 %v3474
        %v3574 = vunpack.c.h.b16 %v3474
        %v3575 = vunpack.c.l.b16 %v3475
        %v3576 = vunpack.c.h.b16 %v3475
        %v3577 = vunpack.c.l.b16 %v3476
        %v3578 = vunpack.c.h.b16 %v3476
        %v3579 = vunpack.c.l.b16 %v3477
        %v3580 = vunpack.c.h.b16 %v3477
        %v3581 = vunpack.c.l.b16 %v3478
        %v3582 = vunpack.c.h.b16 %v3478
        %v3583 = vunpack.c.l.b16 %v3479
        %v3584 = vunpack.c.h.b16 %v3479
        %v3585 = vunpack.c.l.b16 %v3480
        %v3586 = vunpack.c.h.b16 %v3480
        %v3587 = vunpack.c.l.b16 %v3481
        %v3588 = vunpack.c.h.b16 %v3481
        %v3589 = vunpack.c.l.b16 %v3482
        %v3590 = vunpack.c.h.b16 %v3482
        %v3591 = vpack.c.b16 %v3529, %v3527
        %v3592 = vpack.c.b16 %v3530, %v3528
        %v3593 = vpack.c.b16 %v3533, %v3531
        %v3594 = vpack.c.b16 %v3534, %v3532
        %v3595 = vpack.c.b16 %v3537, %v3535
        %v3596 = vpack.c.b16 %v3538, %v3536
        %v3597 = vpack.c.b16 %v3541, %v3539
        %v3598 = vpack.c.b16 %v3542, %v3540
        %v3599 = vpack.c.b16 %v3545, %v3543
        %v3600 = vpack.c.b16 %v3546, %v3544
        %v3601 = vpack.c.b16 %v3549, %v3547
        %v3602 = vpack.c.b16 %v3550, %v3548
        %v3603 = vpack.c.b16 %v3553, %v3551
        %v3604 = vpack.c.b16 %v3554, %v3552
        %v3605 = vpack.c.b16 %v3557, %v3555
        %v3606 = vpack.c.b16 %v3558, %v3556
        %v3607 = vpack.c.b16 %v3561, %v3559
        %v3608 = vpack.c.b16 %v3562, %v3560
        %v3609 = vpack.c.b16 %v3565, %v3563
        %v3610 = vpack.c.b16 %v3566, %v3564
        %v3611 = vpack.c.b16 %v3569, %v3567
        %v3612 = vpack.c.b16 %v3570, %v3568
        %v3613 = vpack.c.b16 %v3573, %v3571
        %v3614 = vpack.c.b16 %v3574, %v3572
        %v3615 = vpack.c.b16 %v3577, %v3575
        %v3616 = vpack.c.b16 %v3578, %v3576
        %v3617 = vpack.c.b16 %v3581, %v3579
        %v3618 = vpack.c.b16 %v3582, %v3580
        %v3619 = vpack.c.b16 %v3585, %v3583
        %v3620 = vpack.c.b16 %v3586, %v3584
        %v3621 = vpack.c.b16 %v3589, %v3587
        %v3622 = vpack.c.b16 %v3590, %v3588
        %3655 = vmatprep.subr.bf16.mxu0 %v3606
        %3656 = vmatpush1.bf16.msra.mxu0 %v3605
        %3657 = vmatprep.subr.bf16.mxu0 %v3604
        %3658 = vmatpush1.bf16.msra.mxu0 %v3603
        %3659 = vmatprep.subr.bf16.mxu0 %v3602
        %3660 = vmatpush1.bf16.msra.mxu0 %v3601
        %3661 = vmatprep.subr.bf16.mxu0 %v3600
        %3662 = vmatpush1.bf16.msra.mxu0 %v3599
        %3663 = vmatprep.subr.bf16.mxu0 %v3598
        %3664 = vmatpush1.bf16.msra.mxu0 %v3597
        %3665 = vmatprep.subr.bf16.mxu0 %v3596
        %3666 = vmatpush1.bf16.msra.mxu0 %v3595
        %3667 = vmatprep.subr.bf16.mxu0 %v3594
        %3668 = vmatpush1.bf16.msra.mxu0 %v3593
        %3669 = vmatprep.subr.bf16.mxu0 %v3592
        %3670 = vmatpush1.bf16.msra.mxu0 %v3591
        %3671 = vmatprep.subr.bf16.mxu0 %v3622
        %3672 = vmatpush2.bf16.msra.mxu0 %v3621
        %3673 = vmatprep.subr.bf16.mxu0 %v3620
        %3674 = vmatpush2.bf16.msra.mxu0 %v3619
        %3675 = vmatprep.subr.bf16.mxu0 %v3618
        %3676 = vmatpush2.bf16.msra.mxu0 %v3617
        %3677 = vmatprep.subr.bf16.mxu0 %v3616
        %3678 = vmatpush2.bf16.msra.mxu0 %v3615
        %3679 = vmatprep.subr.bf16.mxu0 %v3614
        %3680 = vmatpush2.bf16.msra.mxu0 %v3613
        %3681 = vmatprep.subr.bf16.mxu0 %v3612
        %3682 = vmatpush2.bf16.msra.mxu0 %v3611
        %3683 = vmatprep.subr.bf16.mxu0 %v3610
        %3684 = vmatpush2.bf16.msra.mxu0 %v3609
        %3685 = vmatprep.subr.bf16.mxu0 %v3608
        %3686 = vmatpush2.bf16.msra.mxu0 %v3607
        %3687 = vmatprep.mubr.bf16.mxu0 %v3436
        %3688 = vmatmul.mubr.bf16.gmra.mxu0 %v3435
        %v3689 = vpop.f32.mrf.mxu0
        %v3690 = vadd.f32 %v3488, %v3689
        %v3691 = vpop.f32.mrf.mxu0
        %v3692 = vadd.f32 %v3492, %v3691
        %v3693 = vpop.f32.mrf.mxu0
        %v3694 = vadd.f32 %v3488, %v3693
        %v3695 = vpop.f32.mrf.mxu0
        %v3696 = vadd.f32 %v3492, %v3695
        %3697 = vmatprep.mubr.bf16.mxu0 %v3438
        %3698 = vmatmul.mubr.bf16.gmra.mxu0 %v3437
        %v3699 = vpop.f32.mrf.mxu0
        %v3700 = vadd.f32 %v3488, %v3699
        %v3701 = vpop.f32.mrf.mxu0
        %v3702 = vadd.f32 %v3492, %v3701
        %v3703 = vpop.f32.mrf.mxu0
        %v3704 = vadd.f32 %v3488, %v3703
        %v3705 = vpop.f32.mrf.mxu0
        %v3706 = vadd.f32 %v3492, %v3705
        %3707 = vmatprep.mubr.bf16.mxu0 %v3440
        %3708 = vmatmul.mubr.bf16.gmra.mxu0 %v3439
        %v3709 = vpop.f32.mrf.mxu0
        %v3710 = vadd.f32 %v3488, %v3709
        %v3711 = vpop.f32.mrf.mxu0
        %v3712 = vadd.f32 %v3492, %v3711
        %v3713 = vpop.f32.mrf.mxu0
        %v3714 = vadd.f32 %v3488, %v3713
        %v3715 = vpop.f32.mrf.mxu0
        %v3716 = vadd.f32 %v3492, %v3715
        %3717 = vmatprep.mubr.bf16.mxu0 %v3442
        %3718 = vmatmul.mubr.bf16.gmra.mxu0 %v3441
        %v3719 = vpop.f32.mrf.mxu0
        %v3720 = vadd.f32 %v3488, %v3719
        %v3721 = vpop.f32.mrf.mxu0
        %v3722 = vadd.f32 %v3492, %v3721
        %v3723 = vpop.f32.mrf.mxu0
        %v3724 = vadd.f32 %v3488, %v3723
        %v3725 = vpop.f32.mrf.mxu0
        %v3726 = vadd.f32 %v3492, %v3725
        %3727 = vmatprep.mubr.bf16.mxu0 %v3444
        %3728 = vmatmul.mubr.bf16.gmra.mxu0 %v3443
        %v3729 = vpop.f32.mrf.mxu0
        %v3730 = vadd.f32 %v3488, %v3729
        %v3731 = vpop.f32.mrf.mxu0
        %v3732 = vadd.f32 %v3492, %v3731
        %v3733 = vpop.f32.mrf.mxu0
        %v3734 = vadd.f32 %v3488, %v3733
        %v3735 = vpop.f32.mrf.mxu0
        %v3736 = vadd.f32 %v3492, %v3735
        %3737 = vmatprep.mubr.bf16.mxu0 %v3446
        %3738 = vmatmul.mubr.bf16.gmra.mxu0 %v3445
        %v3739 = vpop.f32.mrf.mxu0
        %v3740 = vadd.f32 %v3488, %v3739
        %v3741 = vpop.f32.mrf.mxu0
        %v3742 = vadd.f32 %v3492, %v3741
        %v3743 = vpop.f32.mrf.mxu0
        %v3744 = vadd.f32 %v3488, %v3743
        %v3745 = vpop.f32.mrf.mxu0
        %v3746 = vadd.f32 %v3492, %v3745
        %3747 = vmatprep.mubr.bf16.mxu0 %v3448
        %3748 = vmatmul.mubr.bf16.gmra.mxu0 %v3447
        %v3749 = vpop.f32.mrf.mxu0
        %v3750 = vadd.f32 %v3488, %v3749
        %v3751 = vpop.f32.mrf.mxu0
        %v3752 = vadd.f32 %v3492, %v3751
        %v3753 = vpop.f32.mrf.mxu0
        %v3754 = vadd.f32 %v3488, %v3753
        %v3755 = vpop.f32.mrf.mxu0
        %v3756 = vadd.f32 %v3492, %v3755
        %3757 = vmatprep.mubr.bf16.mxu0 %v3450
        %3758 = vmatmul.mubr.bf16.gmra.mxu0 %v3449
        %v3759 = vpop.f32.mrf.mxu0
        %v3760 = vadd.f32 %v3488, %v3759
        %v3761 = vpop.f32.mrf.mxu0
        %v3762 = vadd.f32 %v3492, %v3761
        %v3763 = vpop.f32.mrf.mxu0
        %v3764 = vadd.f32 %v3488, %v3763
        %v3765 = vpop.f32.mrf.mxu0
        %v3766 = vadd.f32 %v3492, %v3765
        %3767 = vdwg.mxu0
        %v3768 = vmax.f32 %v3690, 0.0
        %v3769 = vmax.f32 %v3692, 0.0
        %v3770 = vmax.f32 %v3694, 0.0
        %v3771 = vmax.f32 %v3696, 0.0
        %v3772 = vmax.f32 %v3700, 0.0
        %v3773 = vmax.f32 %v3702, 0.0
        %v3774 = vmax.f32 %v3704, 0.0
        %v3775 = vmax.f32 %v3706, 0.0
        %v3776 = vmax.f32 %v3710, 0.0
        %v3777 = vmax.f32 %v3712, 0.0
        %v3778 = vmax.f32 %v3714, 0.0
        %v3779 = vmax.f32 %v3716, 0.0
        %v3780 = vmax.f32 %v3720, 0.0
        %v3781 = vmax.f32 %v3722, 0.0
        %v3782 = vmax.f32 %v3724, 0.0
        %v3783 = vmax.f32 %v3726, 0.0
        %v3784 = vmax.f32 %v3730, 0.0
        %v3785 = vmax.f32 %v3732, 0.0
        %v3786 = vmax.f32 %v3734, 0.0
        %v3787 = vmax.f32 %v3736, 0.0
        %v3788 = vmax.f32 %v3740, 0.0
        %v3789 = vmax.f32 %v3742, 0.0
        %v3790 = vmax.f32 %v3744, 0.0
        %v3791 = vmax.f32 %v3746, 0.0
        %v3792 = vmax.f32 %v3750, 0.0
        %v3793 = vmax.f32 %v3752, 0.0
        %v3794 = vmax.f32 %v3754, 0.0
        %v3795 = vmax.f32 %v3756, 0.0
        %v3796 = vmax.f32 %v3760, 0.0
        %v3797 = vmax.f32 %v3762, 0.0
        %v3798 = vmax.f32 %v3764, 0.0
        %v3799 = vmax.f32 %v3766, 0.0
        %v3800 = vpack.c.bf16 %v3770, %v3768
        %v3801 = vpack.c.bf16 %v3771, %v3769
        %v3802 = vpack.c.bf16 %v3774, %v3772
        %v3803 = vpack.c.bf16 %v3775, %v3773
        %v3804 = vpack.c.bf16 %v3778, %v3776
        %v3805 = vpack.c.bf16 %v3779, %v3777
        %v3806 = vpack.c.bf16 %v3782, %v3780
        %v3807 = vpack.c.bf16 %v3783, %v3781
        %v3808 = vpack.c.bf16 %v3786, %v3784
        %v3809 = vpack.c.bf16 %v3787, %v3785
        %v3810 = vpack.c.bf16 %v3790, %v3788
        %v3811 = vpack.c.bf16 %v3791, %v3789
        %v3812 = vpack.c.bf16 %v3794, %v3792
        %v3813 = vpack.c.bf16 %v3795, %v3793
        %v3814 = vpack.c.bf16 %v3798, %v3796
        %v3815 = vpack.c.bf16 %v3799, %v3797
        %v3816 = vld [vmem:[#allocation7] sm:$0xf]
        %v3817 = vld [vmem:[#allocation7 + $0x4] sm:$0xf]
        %v3818 = vld [vmem:[#allocation7 + $0x8] sm:$0xf]
        %v3819 = vld [vmem:[#allocation7 + $0xc] sm:$0xf]
        %v3820 = vld [vmem:[#allocation7 + $0x10] sm:$0xf]
        %v3821 = vld [vmem:[#allocation7 + $0x14] sm:$0xf]
        %v3822 = vld [vmem:[#allocation7 + $0x18] sm:$0xf]
        %v3823 = vld [vmem:[#allocation7 + $0x1c] sm:$0xf]
        %v3824 = vld [vmem:[#allocation7 + $0x20] sm:$0xf]
        %v3825 = vld [vmem:[#allocation7 + $0x24] sm:$0xf]
        %v3826 = vld [vmem:[#allocation7 + $0x28] sm:$0xf]
        %v3827 = vld [vmem:[#allocation7 + $0x2c] sm:$0xf]
        %v3828 = vld [vmem:[#allocation7 + $0x30] sm:$0xf]
        %v3829 = vld [vmem:[#allocation7 + $0x34] sm:$0xf]
        %v3830 = vld [vmem:[#allocation7 + $0x38] sm:$0xf]
        %v3831 = vld [vmem:[#allocation7 + $0x3c] sm:$0xf]
        %v3832 = vld [vmem:[#allocation7 + $0x40] sm:$0xf]
        %v3833 = vld [vmem:[#allocation7 + $0x44] sm:$0xf]
        %v3834 = vld [vmem:[#allocation7 + $0x48] sm:$0xf]
        %v3835 = vld [vmem:[#allocation7 + $0x4c] sm:$0xf]
        %v3836 = vld [vmem:[#allocation7 + $0x50] sm:$0xf]
        %v3837 = vld [vmem:[#allocation7 + $0x54] sm:$0xf]
        %v3838 = vld [vmem:[#allocation7 + $0x58] sm:$0xf]
        %v3839 = vld [vmem:[#allocation7 + $0x5c] sm:$0xf]
        %v3840 = vld [vmem:[#allocation7 + $0x60] sm:$0xf]
        %v3841 = vld [vmem:[#allocation7 + $0x64] sm:$0xf]
        %v3842 = vld [vmem:[#allocation7 + $0x68] sm:$0xf]
        %v3843 = vld [vmem:[#allocation7 + $0x6c] sm:$0xf]
        %v3844 = vld [vmem:[#allocation7 + $0x70] sm:$0xf]
        %v3845 = vld [vmem:[#allocation7 + $0x74] sm:$0xf]
        %v3846 = vld [vmem:[#allocation7 + $0x78] sm:$0xf]
        %v3847 = vld [vmem:[#allocation7 + $0x7c] sm:$0xf]
        %v3848 = vld [vmem:[%s16] sm:$0x1]
        %v3850 = vlaneseq
        %v3851 = vshrl.u32 %v3850, 7
        %v3852 = vsub.s32 0, %v3851
        %v3853 = vrot.slane %v3848, %v3852
        %v3887 = vunpack.c.l.b16 %v3816
        %v3888 = vunpack.c.l.b16 %v3817
        %v3889 = vunpack.c.l.b16 %v3818
        %v3890 = vunpack.c.l.b16 %v3819
        %v3891 = vunpack.c.l.b16 %v3820
        %v3892 = vunpack.c.l.b16 %v3821
        %v3893 = vunpack.c.l.b16 %v3822
        %v3894 = vunpack.c.l.b16 %v3823
        %v3895 = vunpack.c.l.b16 %v3824
        %v3896 = vunpack.c.l.b16 %v3825
        %v3897 = vunpack.c.l.b16 %v3826
        %v3898 = vunpack.c.l.b16 %v3827
        %v3899 = vunpack.c.l.b16 %v3828
        %v3900 = vunpack.c.l.b16 %v3829
        %v3901 = vunpack.c.l.b16 %v3830
        %v3902 = vunpack.c.l.b16 %v3831
        %v3903 = vunpack.c.l.b16 %v3832
        %v3904 = vunpack.c.l.b16 %v3833
        %v3905 = vunpack.c.l.b16 %v3834
        %v3906 = vunpack.c.l.b16 %v3835
        %v3907 = vunpack.c.l.b16 %v3836
        %v3908 = vunpack.c.l.b16 %v3837
        %v3909 = vunpack.c.l.b16 %v3838
        %v3910 = vunpack.c.l.b16 %v3839
        %v3911 = vunpack.c.l.b16 %v3840
        %v3912 = vunpack.c.l.b16 %v3841
        %v3913 = vunpack.c.l.b16 %v3842
        %v3914 = vunpack.c.l.b16 %v3843
        %v3915 = vunpack.c.l.b16 %v3844
        %v3916 = vunpack.c.l.b16 %v3845
        %v3917 = vunpack.c.l.b16 %v3846
        %v3918 = vunpack.c.l.b16 %v3847
        %v3919 = vpack.c.b16 %v3888, %v3887
        %v3920 = vpack.c.b16 %v3890, %v3889
        %v3921 = vpack.c.b16 %v3892, %v3891
        %v3922 = vpack.c.b16 %v3894, %v3893
        %v3923 = vpack.c.b16 %v3896, %v3895
        %v3924 = vpack.c.b16 %v3898, %v3897
        %v3925 = vpack.c.b16 %v3900, %v3899
        %v3926 = vpack.c.b16 %v3902, %v3901
        %v3927 = vpack.c.b16 %v3904, %v3903
        %v3928 = vpack.c.b16 %v3906, %v3905
        %v3929 = vpack.c.b16 %v3908, %v3907
        %v3930 = vpack.c.b16 %v3910, %v3909
        %v3931 = vpack.c.b16 %v3912, %v3911
        %v3932 = vpack.c.b16 %v3914, %v3913
        %v3933 = vpack.c.b16 %v3916, %v3915
        %v3934 = vpack.c.b16 %v3918, %v3917
        %3951 = vmatprep.subr.bf16.mxu0 0
        %3952 = vmatpush1.bf16.msra.mxu0 %v3926
        %3953 = vmatprep.subr.bf16.mxu0 0
        %3954 = vmatpush1.bf16.msra.mxu0 %v3925
        %3955 = vmatprep.subr.bf16.mxu0 0
        %3956 = vmatpush1.bf16.msra.mxu0 %v3924
        %3957 = vmatprep.subr.bf16.mxu0 0
        %3958 = vmatpush1.bf16.msra.mxu0 %v3923
        %3959 = vmatprep.subr.bf16.mxu0 0
        %3960 = vmatpush1.bf16.msra.mxu0 %v3922
        %3961 = vmatprep.subr.bf16.mxu0 0
        %3962 = vmatpush1.bf16.msra.mxu0 %v3921
        %3963 = vmatprep.subr.bf16.mxu0 0
        %3964 = vmatpush1.bf16.msra.mxu0 %v3920
        %3965 = vmatprep.subr.bf16.mxu0 0
        %3966 = vmatpush1.bf16.msra.mxu0 %v3919
        %3967 = vmatprep.subr.bf16.mxu0 0
        %3968 = vmatpush2.bf16.msra.mxu0 %v3934
        %3969 = vmatprep.subr.bf16.mxu0 0
        %3970 = vmatpush2.bf16.msra.mxu0 %v3933
        %3971 = vmatprep.subr.bf16.mxu0 0
        %3972 = vmatpush2.bf16.msra.mxu0 %v3932
        %3973 = vmatprep.subr.bf16.mxu0 0
        %3974 = vmatpush2.bf16.msra.mxu0 %v3931
        %3975 = vmatprep.subr.bf16.mxu0 0
        %3976 = vmatpush2.bf16.msra.mxu0 %v3930
        %3977 = vmatprep.subr.bf16.mxu0 0
        %3978 = vmatpush2.bf16.msra.mxu0 %v3929
        %3979 = vmatprep.subr.bf16.mxu0 0
        %3980 = vmatpush2.bf16.msra.mxu0 %v3928
        %3981 = vmatprep.subr.bf16.mxu0 0
        %3982 = vmatpush2.bf16.msra.mxu0 %v3927
        %3983 = vmatprep.mubr.bf16.mxu0 %v3801
        %3984 = vmatmul.mubr.bf16.gmra.mxu0 %v3800
        %v3985 = vpop.f32.mrf.mxu0
        %v3986 = vadd.f32 %v3853, %v3985
        %v3987 = vpop.f32.mrf.mxu0
        %v3988 = vpop.f32.mrf.mxu0
        %v3989 = vadd.f32 %v3853, %v3988
        %v3990 = vpop.f32.mrf.mxu0
        %3991 = vmatprep.mubr.bf16.mxu0 %v3803
        %3992 = vmatmul.mubr.bf16.gmra.mxu0 %v3802
        %v3993 = vpop.f32.mrf.mxu0
        %v3994 = vadd.f32 %v3853, %v3993
        %v3995 = vpop.f32.mrf.mxu0
        %v3996 = vpop.f32.mrf.mxu0
        %v3997 = vadd.f32 %v3853, %v3996
        %v3998 = vpop.f32.mrf.mxu0
        %3999 = vmatprep.mubr.bf16.mxu0 %v3805
        %4000 = vmatmul.mubr.bf16.gmra.mxu0 %v3804
        %v4001 = vpop.f32.mrf.mxu0
        %v4002 = vadd.f32 %v3853, %v4001
        %v4003 = vpop.f32.mrf.mxu0
        %v4004 = vpop.f32.mrf.mxu0
        %v4005 = vadd.f32 %v3853, %v4004
        %v4006 = vpop.f32.mrf.mxu0
        %4007 = vmatprep.mubr.bf16.mxu0 %v3807
        %4008 = vmatmul.mubr.bf16.gmra.mxu0 %v3806
        %v4009 = vpop.f32.mrf.mxu0
        %v4010 = vadd.f32 %v3853, %v4009
        %v4011 = vpop.f32.mrf.mxu0
        %v4012 = vpop.f32.mrf.mxu0
        %v4013 = vadd.f32 %v3853, %v4012
        %v4014 = vpop.f32.mrf.mxu0
        %4015 = vmatprep.mubr.bf16.mxu0 %v3809
        %4016 = vmatmul.mubr.bf16.gmra.mxu0 %v3808
        %v4017 = vpop.f32.mrf.mxu0
        %v4018 = vadd.f32 %v3853, %v4017
        %v4019 = vpop.f32.mrf.mxu0
        %v4020 = vpop.f32.mrf.mxu0
        %v4021 = vadd.f32 %v3853, %v4020
        %v4022 = vpop.f32.mrf.mxu0
        %4023 = vmatprep.mubr.bf16.mxu0 %v3811
        %4024 = vmatmul.mubr.bf16.gmra.mxu0 %v3810
        %v4025 = vpop.f32.mrf.mxu0
        %v4026 = vadd.f32 %v3853, %v4025
        %v4027 = vpop.f32.mrf.mxu0
        %v4028 = vpop.f32.mrf.mxu0
        %v4029 = vadd.f32 %v3853, %v4028
        %v4030 = vpop.f32.mrf.mxu0
        %4031 = vmatprep.mubr.bf16.mxu0 %v3813
        %4032 = vmatmul.mubr.bf16.gmra.mxu0 %v3812
        %v4033 = vpop.f32.mrf.mxu0
        %v4034 = vadd.f32 %v3853, %v4033
        %v4035 = vpop.f32.mrf.mxu0
        %v4036 = vpop.f32.mrf.mxu0
        %v4037 = vadd.f32 %v3853, %v4036
        %v4038 = vpop.f32.mrf.mxu0
        %4039 = vmatprep.mubr.bf16.mxu0 %v3815
        %4040 = vmatmul.mubr.bf16.gmra.mxu0 %v3814
        %v4041 = vpop.f32.mrf.mxu0
        %v4042 = vadd.f32 %v3853, %v4041
        %v4043 = vpop.f32.mrf.mxu0
        %v4044 = vpop.f32.mrf.mxu0
        %v4045 = vadd.f32 %v3853, %v4044
        %v4046 = vpop.f32.mrf.mxu0
        %4047 = vdwg.mxu0
        %4048 = vst [vmem:[%s618] sm:$0xff] %v3986
        %4049 = vst [vmem:[%s618 + $0x8] sm:$0xff] %v3989
        %4050 = vst [vmem:[%s618 + $0x10] sm:$0xff] %v3994
        %4051 = vst [vmem:[%s618 + $0x18] sm:$0xff] %v3997
        %4052 = vst [vmem:[%s618 + $0x20] sm:$0xff] %v4002
        %4053 = vst [vmem:[%s618 + $0x28] sm:$0xff] %v4005
        %4054 = vst [vmem:[%s618 + $0x30] sm:$0xff] %v4010
        %4055 = vst [vmem:[%s618 + $0x38] sm:$0xff] %v4013
        %4056 = vst [vmem:[%s618 + $0x40] sm:$0xff] %v4018
        %4057 = vst [vmem:[%s618 + $0x48] sm:$0xff] %v4021
        %4058 = vst [vmem:[%s618 + $0x50] sm:$0xff] %v4026
        %4059 = vst [vmem:[%s618 + $0x58] sm:$0xff] %v4029
        %4060 = vst [vmem:[%s618 + $0x60] sm:$0xff] %v4034
        %4061 = vst [vmem:[%s618 + $0x68] sm:$0xff] %v4037
        %4062 = vst [vmem:[%s618 + $0x70] sm:$0xff] %v4042
        %4063 = vst [vmem:[%s618 + $0x78] sm:$0xff] %v4045
        %s4064 = sand.u32 %s413, 1
        %s4065 = scalar_lea.sflag [#allocation4], %s4064
        %s4066 = sand.u32 %s413, 1
        %s4067 = smul.addr %s4066, 128
        %s4068 = scalar_lea.vmem [#allocation8], %s4067
        // Predicated region
        $region101: #{tpu_custom_call.1} parent=87 // pred_check
          %p4069 = pneg %p423
        $region102: #{tpu_custom_call.1} parent=87 // pred_check_branch
          %4071 = sbr.rel (%p4069) target = $region104
        $region103: #{tpu_custom_call.1} parent=87 // pred_region
          %s4072 = smul.u32 16, %s33
          %s4074 = ssub.s32 2048, 2048
          %4075 = vsyncadd %s4065, %s4074
          %s4076 = smul.addr %s4072, 128
          %s4077 = scalar_lea.hbm %s17, %s4076
          %s4078 = sshll.u32 %s4068, 4
          %s4079 = int_to_ptr.vmem [resolvable:$true] %s4078
          %4084 = dma.vmem_to_hbm [thread:$0]  %s4079, 2048, %s4077, %s4065, 128, 128, 8
        $region104: #{tpu_custom_call.1} parent=87 // pred_fallthru
          _
      $region88: #{tpu_custom_call.1} parent=5 // pred_fallthru
        _
      %p4085 = scmp.le.s32.totalorder 2, %s28
      // Predicated region
      $region105: #{tpu_custom_call.1} parent=5 // pred_check
        %p4086 = pneg %p4085
      $region106: #{tpu_custom_call.1} parent=5 // pred_check_branch
        %4088 = sbr.rel (%p4086) target = $region108
      $region107: #{tpu_custom_call.1} parent=5 // pred_region
        %s4089 = ssub.s32 %s28, 2
        // Predicated region
        $region109: #{tpu_custom_call.1} parent=107 // pred_check
          %p4090 = pneg %p429
        $region110: #{tpu_custom_call.1} parent=107 // pred_check_branch
          %4092 = sbr.rel (%p4090) target = $region112
        $region111: #{tpu_custom_call.1} parent=107 // pred_region
          %s4093 = sand.u32 %s414, 1
          %s4094 = scalar_lea.sflag [#allocation4], %s4093
          %s4095 = sand.u32 %s414, 1
          %s4096 = smul.addr %s4095, 128
          %s4097 = scalar_lea.vmem [#allocation8], %s4096
          %4098 = dma.done %s4094, 2048
        $region112: #{tpu_custom_call.1} parent=107 // pred_fallthru
          _
      $region108: #{tpu_custom_call.1} parent=5 // pred_fallthru
        _
    $region6: #{tpu_custom_call.1} parent=1 // loop_footer
      %s32 = sadd.s32 1, %s28
    $region7: #{tpu_custom_call.1} parent=1 // loop_footer_branch
      %27 = sbr.rel target = $region3
    $region8: #{tpu_custom_call.1} parent=1 // loop_exit
      _
    %4099 = vsyncpa [#allocation3], 1
    %s4100 = scalar_lea.sflag [#allocation3], 1
    %4101 = vsyncpa %s4100, 1
    %4102 = vsyncpa [#allocation6], 1
    %4103 = vsyncpa [#allocation4], 1
    %s4104 = scalar_lea.sflag [#allocation4], 1
    %4105 = vsyncpa %s4104, 1

</llo_original>
